<compile_context>
chip_gen: v6e
topology: v6e:2x2x1
jax: 0.10.0
libtpu: 0.0.40
codegen_flags: <defaults>
</compile_context>

<pallas_src>
import math
import functools

import numpy as np
import jax
import jax.numpy as jnp
from jax import lax
from jax.experimental import pallas as pl
from jax.experimental.pallas import tpu as pltpu


# ----------------------------------------------------------------------------
# Positional encoding (same math as the PyTorch helper).
# ----------------------------------------------------------------------------
def positional_encoding(position, d_model):
    pos = np.arange(position)[:, None].astype(np.float64)
    i = np.arange(d_model)[None, :]
    angle_rates = 1.0 / np.power(10000, 2 * (i // 2) / np.float32(d_model))
    angle_rads = pos * angle_rates
    angle_rads[:, 0::2] = np.sin(angle_rads[:, 0::2])
    angle_rads[:, 1::2] = np.cos(angle_rads[:, 1::2])
    return jnp.asarray(angle_rads, dtype=jnp.float32)          # (position, d_model)


# ----------------------------------------------------------------------------
# Fused full-stack kernel: grid axis = layer index, activation resident in VMEM.
# ----------------------------------------------------------------------------
def encoder_stack_kernel(x_ref, mask_ref,
                         wq_ref, bq_ref, wk_ref, bk_ref, wv_ref, bv_ref,
                         wo_ref, bo_ref,
                         w1_ref, b1_ref, w2_ref, b2_ref,
                         g1_ref, be1_ref, g2_ref, be2_ref,
                         out_ref, x_scr, *, num_heads):
    layer = pl.program_id(0)

    # Layer 0: load the embedded+pos-encoded activation into the resident scratch.
    @pl.when(layer == 0)
    def _():
        x_scr[...] = x_ref[...]

    x = x_scr[...]                                   # (B, S, D) f32
    B, S, D = x.shape
    depth = D // num_heads
    inv_sqrt_dk = 1.0 / math.sqrt(depth)
    x2 = x.reshape(B * S, D)

    # --- projections: one big-M matmul each (M = B*S) ---------------------------
    q = jnp.dot(x2, wq_ref[0], preferred_element_type=jnp.float32) + bq_ref[0]
    k = jnp.dot(x2, wk_ref[0], preferred_element_type=jnp.float32) + bk_ref[0]
    v = jnp.dot(x2, wv_ref[0], preferred_element_type=jnp.float32) + bv_ref[0]
    q3 = q.reshape(B, S, D)
    k3 = k.reshape(B, S, D)
    v3 = v.reshape(B, S, D)

    # Hoisted additive padding mask (broadcast (B,1,S) over query rows & heads).
    neg_mask = mask_ref[...] * (-1e9)                # (B, 1, S)

    wo = wo_ref[0]                                   # (D, D)
    attn_out = jnp.zeros((B * S, D), jnp.float32)
    for h in range(num_heads):                       # heads unrolled; each op batched over B
        lo = h * depth
        qh = q3[:, :, lo:lo + depth]                 # (B, S, dh)
        kh = k3[:, :, lo:lo + depth]
        vh = v3[:, :, lo:lo + depth]
        logits = jnp.einsum("bqd,bkd->bqk", qh, kh,
                            preferred_element_type=jnp.float32) * inv_sqrt_dk
        logits = logits + neg_mask                   # (B, S, S)
        logits = logits - jnp.max(logits, axis=-1, keepdims=True)
        p = jnp.exp(logits)
        p = p * pl.reciprocal(jnp.sum(p, axis=-1, keepdims=True), approx=True)
        ctx = jnp.einsum("bqk,bkd->bqd", p, vh,
                         preferred_element_type=jnp.float32)    # (B, S, dh)
        # Accumulate the output projection per head (== concat + full Wo matmul,
        # without the lane-relayout concatenate).
        attn_out = attn_out + jnp.dot(ctx.reshape(B * S, depth),
                                      wo[lo:lo + depth, :],
                                      preferred_element_type=jnp.float32)
    attn_out = attn_out + bo_ref[0]

    # --- LayerNorm over the (S, D) slab per batch element (nn.LayerNorm([S, D])) --
    inv_n = 1.0 / float(S * D)

    def layernorm(h, gamma, beta, eps=1e-5):
        mu = jnp.sum(jnp.sum(h, axis=2, keepdims=True), axis=1, keepdims=True) * inv_n
        d = h - mu
        var = jnp.sum(jnp.sum(d * d, axis=2, keepdims=True), axis=1, keepdims=True) * inv_n
        return d * lax.rsqrt(var + eps) * gamma + beta

    out1 = layernorm(x + attn_out.reshape(B, S, D), g1_ref[0], be1_ref[0])

    # --- feed-forward network ---------------------------------------------------
    o2 = out1.reshape(B * S, D)
    hidden = jnp.dot(o2, w1_ref[0], preferred_element_type=jnp.float32) + b1_ref[0]
    hidden = jnp.maximum(hidden, 0.0)
    ffn = jnp.dot(hidden, w2_ref[0], preferred_element_type=jnp.float32) + b2_ref[0]

    out2 = layernorm(out1 + ffn.reshape(B, S, D), g2_ref[0], be2_ref[0])

    # Carry activation to the next layer; write HBM output only once, at the end.
    x_scr[...] = out2

    @pl.when(layer == pl.num_programs(0) - 1)
    def _():
        out_ref[...] = out2


def encoder_layers_fused(x, mask, sp, num_heads):
    """x: (B, S, D) f32; mask: (B, 1, S) f32; sp: dict of (L, ...) stacked params."""
    B, S, D = x.shape
    L = sp["wq"].shape[0]
    dff = sp["w1"].shape[-1]
    kernel = functools.partial(encoder_stack_kernel, num_heads=num_heads)

    def const(shape):
        # Whole-array block, identical for every layer -> fetched once, stays resident.
        return pl.BlockSpec(shape, lambda l: (0,) * len(shape))

    def per_layer(shape):
        # One layer's slice of an (L, ...) stacked parameter; pipelined across layers.
        nd = len(shape)
        return pl.BlockSpec((1,) + shape, lambda l: (l,) + (0,) * nd)

    in_specs = [
        const((B, S, D)),                                # x
        const((B, 1, S)),                                # mask
        per_layer((D, D)), per_layer((1, D)),            # wq, bq
        per_layer((D, D)), per_layer((1, D)),            # wk, bk
        per_layer((D, D)), per_layer((1, D)),            # wv, bv
        per_layer((D, D)), per_layer((1, D)),            # wo, bo
        per_layer((D, dff)), per_layer((1, dff)),        # w1, b1
        per_layer((dff, D)), per_layer((1, D)),          # w2, b2
        per_layer((S, D)), per_layer((S, D)),            # ln1 gamma, beta
        per_layer((S, D)), per_layer((S, D)),            # ln2 gamma, beta
    ]

    grid_spec = pltpu.PrefetchScalarGridSpec(
        num_scalar_prefetch=0,
        grid=(L,),
        in_specs=in_specs,
        out_specs=pl.BlockSpec((B, S, D), lambda l: (0, 0, 0)),
        scratch_shapes=[pltpu.VMEM((B, S, D), jnp.float32)],
    )

    return pl.pallas_call(
        kernel,
        out_shape=jax.ShapeDtypeStruct((B, S, D), jnp.float32),
        grid_spec=grid_spec,
        compiler_params=pltpu.CompilerParams(dimension_semantics=("arbitrary",)),
    )(x, mask,
      sp["wq"], sp["bq"], sp["wk"], sp["bk"], sp["wv"], sp["bv"],
      sp["wo"], sp["bo"], sp["w1"], sp["b1"], sp["w2"], sp["b2"],
      sp["g1"], sp["be1"], sp["g2"], sp["be2"])


# ----------------------------------------------------------------------------
# Encoder forward (embedding / pos-enc glue in plain JAX, layer stack in Pallas).
# ----------------------------------------------------------------------------
def encoder_forward(tokens, mask, embedding, pos_enc, stacked_params, num_heads):
    d_model = embedding.shape[1]
    seq_len = tokens.shape[1]
    x = jnp.take(embedding, tokens, axis=0)                  # (B, S, D)
    x = x * jnp.sqrt(jnp.float32(d_model))
    x = x + pos_enc[:seq_len][None, :, :]
    # dropout == identity at inference
    return encoder_layers_fused(x, mask, stacked_params, num_heads)


# ----------------------------------------------------------------------------
# Pure-JAX reference (mirrors the PyTorch math) for a correctness check.
# ----------------------------------------------------------------------------
def ref_forward(tokens, mask, embedding, pos_enc, layer_params, num_heads):
    d_model = embedding.shape[1]
    B, S = tokens.shape
    dh = d_model // num_heads
    x = jnp.take(embedding, tokens, axis=0) * jnp.sqrt(jnp.float32(d_model))
    x = x + pos_enc[:S][None]

    def ln(h, g, b, eps=1e-5):
        mu = h.mean(axis=(1, 2), keepdims=True)
        var = ((h - mu) ** 2).mean(axis=(1, 2), keepdims=True)
        return (h - mu) / jnp.sqrt(var + eps) * g + b

    for p in layer_params:
        q = (x @ p["wq"] + p["bq"]).reshape(B, S, num_heads, dh).transpose(0, 2, 1, 3)
        k = (x @ p["wk"] + p["bk"]).reshape(B, S, num_heads, dh).transpose(0, 2, 1, 3)
        v = (x @ p["wv"] + p["bv"]).reshape(B, S, num_heads, dh).transpose(0, 2, 1, 3)
        logits = jnp.einsum("bhqd,bhkd->bhqk", q, k) / math.sqrt(dh)
        logits = logits + mask[:, :, None, :] * (-1e9)
        w = jax.nn.softmax(logits, axis=-1)
        attn = jnp.einsum("bhqk,bhkd->bhqd", w, v).transpose(0, 2, 1, 3).reshape(B, S, d_model)
        attn = attn @ p["wo"] + p["bo"]
        out1 = ln(x + attn, p["g1"], p["be1"])
        ffn = jnp.maximum(out1 @ p["w1"] + p["b1"], 0.0) @ p["w2"] + p["b2"]
        x = ln(out1 + ffn, p["g2"], p["be2"])
    return x


# ----------------------------------------------------------------------------
# Deterministic parameter construction.
# ----------------------------------------------------------------------------
def make_params(key, num_layers, d_model, dff, seq_len, vocab_size):
    keys = jax.random.split(key, 1 + num_layers)
    embedding = jax.random.normal(keys[0], (vocab_size, d_model), jnp.float32) * 0.02

    def layer(k):
        ks = jax.random.split(k, 6)
        return {
            "wq": jax.random.normal(ks[0], (d_model, d_model), jnp.float32) * 0.02,
            "bq": jnp.zeros((1, d_model), jnp.float32),
            "wk": jax.random.normal(ks[1], (d_model, d_model), jnp.float32) * 0.02,
            "bk": jnp.zeros((1, d_model), jnp.float32),
            "wv": jax.random.normal(ks[2], (d_model, d_model), jnp.float32) * 0.02,
            "bv": jnp.zeros((1, d_model), jnp.float32),
            "wo": jax.random.normal(ks[3], (d_model, d_model), jnp.float32) * 0.02,
            "bo": jnp.zeros((1, d_model), jnp.float32),
            "w1": jax.random.normal(ks[4], (d_model, dff), jnp.float32) * 0.02,
            "b1": jnp.zeros((1, dff), jnp.float32),
            "w2": jax.random.normal(ks[5], (dff, d_model), jnp.float32) * 0.02,
            "b2": jnp.zeros((1, d_model), jnp.float32),
            # nn.LayerNorm([max_pos, d_model]) -> affine params of shape (S, D)
            "g1": jnp.ones((seq_len, d_model), jnp.float32),
            "be1": jnp.zeros((seq_len, d_model), jnp.float32),
            "g2": jnp.ones((seq_len, d_model), jnp.float32),
            "be2": jnp.zeros((seq_len, d_model), jnp.float32),
        }

    return embedding, [layer(keys[1 + i]) for i in range(num_layers)]


def stack_layer_params(layer_params):
    """List of per-layer dicts -> dict of (L, ...) stacked arrays."""
    return {k: jnp.stack([p[k] for p in layer_params], axis=0) for k in layer_params[0]}


if __name__ == "__main__":
    # Small shapes consistent with the module (S == maximum_position_encoding).
    B, S = 2, 8
    d_model, num_heads, dff, num_layers = 32, 4, 64, 2
    vocab_size = 50

    key = jax.random.PRNGKey(0)
    k_tok, k_par = jax.random.split(key)

    tokens = jax.random.randint(k_tok, (B, S), 1, vocab_size, dtype=jnp.int32)
    tokens = tokens.at[:, -2:].set(0)                         # pad tail positions
    # encoder padding mask: 1 where pad, broadcast over query positions -> (B, 1, S)
    mask = (tokens == 0).astype(jnp.float32)[:, None, :]

    embedding, layer_params = make_params(k_par, num_layers, d_model, dff, S, vocab_size)
    stacked_params = stack_layer_params(layer_params)
    pos_enc = positional_encoding(S, d_model)

    out = encoder_forward(tokens, mask, embedding, pos_enc, stacked_params, num_heads)
    out = jax.block_until_ready(out)

    ref = jax.block_until_ready(
        ref_forward(tokens, mask, embedding, pos_enc, layer_params, num_heads))
    np.testing.assert_allclose(np.asarray(out), np.asarray(ref), rtol=2e-2, atol=2e-2)

    print("KERNEL_OK")
</pallas_src>

<mosaic_0001>
module attributes {stable_mosaic.version = 11 : i64} {
  func.func @encoder_stack_kernel(%arg0: i32, %arg1: memref<2x8x32xf32, #tpu.memory_space<vmem>>, %arg2: memref<2x1x8xf32, #tpu.memory_space<vmem>>, %arg3: memref<1x32x32xf32, #tpu.memory_space<vmem>>, %arg4: memref<1x1x32xf32, #tpu.memory_space<vmem>>, %arg5: memref<1x32x32xf32, #tpu.memory_space<vmem>>, %arg6: memref<1x1x32xf32, #tpu.memory_space<vmem>>, %arg7: memref<1x32x32xf32, #tpu.memory_space<vmem>>, %arg8: memref<1x1x32xf32, #tpu.memory_space<vmem>>, %arg9: memref<1x32x32xf32, #tpu.memory_space<vmem>>, %arg10: memref<1x1x32xf32, #tpu.memory_space<vmem>>, %arg11: memref<1x32x64xf32, #tpu.memory_space<vmem>>, %arg12: memref<1x1x64xf32, #tpu.memory_space<vmem>>, %arg13: memref<1x64x32xf32, #tpu.memory_space<vmem>>, %arg14: memref<1x1x32xf32, #tpu.memory_space<vmem>>, %arg15: memref<1x8x32xf32, #tpu.memory_space<vmem>>, %arg16: memref<1x8x32xf32, #tpu.memory_space<vmem>>, %arg17: memref<1x8x32xf32, #tpu.memory_space<vmem>>, %arg18: memref<1x8x32xf32, #tpu.memory_space<vmem>>, %arg19: memref<2x8x32xf32, #tpu.memory_space<vmem>>, %arg20: memref<2x8x32xf32, #tpu.memory_space<vmem>>) attributes {dimension_semantics = [#tpu.dimension_semantics<arbitrary>], iteration_bounds = array<i64: 2>, scalar_prefetch = 0 : i64, scratch_operands = 1 : i64, tpu.core_type = #tpu.core_type<tc>, window_params = [{pipeline_mode = #tpu.pipeline_mode<synchronous>, transform_indices = @transform_0, window_bounds = array<i64: 2, 8, 32>}, {pipeline_mode = #tpu.pipeline_mode<synchronous>, transform_indices = @transform_1, window_bounds = array<i64: 2, 1, 8>}, {transform_indices = @transform_2, window_bounds = array<i64: 1, 32, 32>}, {transform_indices = @transform_3, window_bounds = array<i64: 1, 1, 32>}, {transform_indices = @transform_4, window_bounds = array<i64: 1, 32, 32>}, {transform_indices = @transform_5, window_bounds = array<i64: 1, 1, 32>}, {transform_indices = @transform_6, window_bounds = array<i64: 1, 32, 32>}, {transform_indices = @transform_7, window_bounds = array<i64: 1, 1, 32>}, {transform_indices = @transform_8, window_bounds = array<i64: 1, 32, 32>}, {transform_indices = @transform_9, window_bounds = array<i64: 1, 1, 32>}, {transform_indices = @transform_10, window_bounds = array<i64: 1, 32, 64>}, {transform_indices = @transform_11, window_bounds = array<i64: 1, 1, 64>}, {transform_indices = @transform_12, window_bounds = array<i64: 1, 64, 32>}, {transform_indices = @transform_13, window_bounds = array<i64: 1, 1, 32>}, {transform_indices = @transform_14, window_bounds = array<i64: 1, 8, 32>}, {transform_indices = @transform_15, window_bounds = array<i64: 1, 8, 32>}, {transform_indices = @transform_16, window_bounds = array<i64: 1, 8, 32>}, {transform_indices = @transform_17, window_bounds = array<i64: 1, 8, 32>}, {pipeline_mode = #tpu.pipeline_mode<synchronous>, transform_indices = @transform_18, window_bounds = array<i64: 2, 8, 32>}]} {
    %c0_i32 = arith.constant 0 : i32
    %0 = arith.cmpi eq, %arg0, %c0_i32 : i32
    %1 = arith.extui %0 : i1 to i32
    %c0_i32_0 = arith.constant 0 : i32
    %2 = arith.cmpi ne, %1, %c0_i32_0 : i32
    scf.if %2 {
      %c0_103 = arith.constant 0 : index
      %c0_104 = arith.constant 0 : index
      %c0_105 = arith.constant 0 : index
      %216 = vector.load %arg1[%c0_103, %c0_104, %c0_105] : memref<2x8x32xf32, #tpu.memory_space<vmem>>, vector<2x8x32xf32>
      %c0_106 = arith.constant 0 : index
      %c0_107 = arith.constant 0 : index
      %c0_108 = arith.constant 0 : index
      %217 = vector.load %arg20[%c0_106, %c0_107, %c0_108] : memref<2x8x32xf32, #tpu.memory_space<vmem>>, vector<2x8x32xf32>
      tpu.vector_store %arg20[%c0_106, %c0_107, %c0_108], %216 {strides = array<i32>} : memref<2x8x32xf32, #tpu.memory_space<vmem>>, vector<2x8x32xf32>,
    } else {
    }
    %c0 = arith.constant 0 : index
    %c0_1 = arith.constant 0 : index
    %c0_2 = arith.constant 0 : index
    %3 = vector.load %arg20[%c0, %c0_1, %c0_2] : memref<2x8x32xf32, #tpu.memory_space<vmem>>, vector<2x8x32xf32>
    %4 = vector.shape_cast %3 : vector<2x8x32xf32> to vector<16x32xf32>
    %c0_3 = arith.constant 0 : index
    %c0_4 = arith.constant 0 : index
    %c0_5 = arith.constant 0 : index
    %5 = vector.load %arg3[%c0_3, %c0_4, %c0_5] : memref<1x32x32xf32, #tpu.memory_space<vmem>>, vector<1x32x32xf32>
    %6 = vector.shape_cast %5 : vector<1x32x32xf32> to vector<32x32xf32>
    %cst = arith.constant dense<0.000000e+00> : vector<16x32xf32>
    %7 = tpu.matmul %4, %6, %cst {dimension_numbers = #tpu.dot_dimension_numbers<[1], [0], [0], [1], [0, 0, 1, 1], [], []>} : vector<16x32xf32>, vector<32x32xf32>, vector<16x32xf32> -> vector<16x32xf32>
    %c0_6 = arith.constant 0 : index
    %c0_7 = arith.constant 0 : index
    %c0_8 = arith.constant 0 : index
    %8 = vector.load %arg4[%c0_6, %c0_7, %c0_8] : memref<1x1x32xf32, #tpu.memory_space<vmem>>, vector<1x1x32xf32>
    %9 = vector.shape_cast %8 : vector<1x1x32xf32> to vector<1x32xf32>
    %10 = vector.broadcast %9 : vector<1x32xf32> to vector<16x32xf32>
    %11 = arith.addf %7, %10 : vector<16x32xf32>
    %c0_9 = arith.constant 0 : index
    %c0_10 = arith.constant 0 : index
    %c0_11 = arith.constant 0 : index
    %12 = vector.load %arg5[%c0_9, %c0_10, %c0_11] : memref<1x32x32xf32, #tpu.memory_space<vmem>>, vector<1x32x32xf32>
    %13 = vector.shape_cast %12 : vector<1x32x32xf32> to vector<32x32xf32>
    %cst_12 = arith.constant dense<0.000000e+00> : vector<16x32xf32>
    %14 = tpu.matmul %4, %13, %cst_12 {dimension_numbers = #tpu.dot_dimension_numbers<[1], [0], [0], [1], [0, 0, 1, 1], [], []>} : vector<16x32xf32>, vector<32x32xf32>, vector<16x32xf32> -> vector<16x32xf32>
    %c0_13 = arith.constant 0 : index
    %c0_14 = arith.constant 0 : index
    %c0_15 = arith.constant 0 : index
    %15 = vector.load %arg6[%c0_13, %c0_14, %c0_15] : memref<1x1x32xf32, #tpu.memory_space<vmem>>, vector<1x1x32xf32>
    %16 = vector.shape_cast %15 : vector<1x1x32xf32> to vector<1x32xf32>
    %17 = vector.broadcast %16 : vector<1x32xf32> to vector<16x32xf32>
    %18 = arith.addf %14, %17 : vector<16x32xf32>
    %c0_16 = arith.constant 0 : index
    %c0_17 = arith.constant 0 : index
    %c0_18 = arith.constant 0 : index
    %19 = vector.load %arg7[%c0_16, %c0_17, %c0_18] : memref<1x32x32xf32, #tpu.memory_space<vmem>>, vector<1x32x32xf32>
    %20 = vector.shape_cast %19 : vector<1x32x32xf32> to vector<32x32xf32>
    %cst_19 = arith.constant dense<0.000000e+00> : vector<16x32xf32>
    %21 = tpu.matmul %4, %20, %cst_19 {dimension_numbers = #tpu.dot_dimension_numbers<[1], [0], [0], [1], [0, 0, 1, 1], [], []>} : vector<16x32xf32>, vector<32x32xf32>, vector<16x32xf32> -> vector<16x32xf32>
    %c0_20 = arith.constant 0 : index
    %c0_21 = arith.constant 0 : index
    %c0_22 = arith.constant 0 : index
    %22 = vector.load %arg8[%c0_20, %c0_21, %c0_22] : memref<1x1x32xf32, #tpu.memory_space<vmem>>, vector<1x1x32xf32>
    %23 = vector.shape_cast %22 : vector<1x1x32xf32> to vector<1x32xf32>
    %24 = vector.broadcast %23 : vector<1x32xf32> to vector<16x32xf32>
    %25 = arith.addf %21, %24 : vector<16x32xf32>
    %26 = vector.shape_cast %11 : vector<16x32xf32> to vector<2x8x32xf32>
    %27 = vector.shape_cast %18 : vector<16x32xf32> to vector<2x8x32xf32>
    %28 = vector.shape_cast %25 : vector<16x32xf32> to vector<2x8x32xf32>
    %c0_23 = arith.constant 0 : index
    %c0_24 = arith.constant 0 : index
    %c0_25 = arith.constant 0 : index
    %29 = vector.load %arg2[%c0_23, %c0_24, %c0_25] : memref<2x1x8xf32, #tpu.memory_space<vmem>>, vector<2x1x8xf32>
    %cst_26 = arith.constant -1.000000e+09 : f32
    %30 = vector.broadcast %cst_26 : f32 to vector<2x1x8xf32>
    %31 = arith.mulf %29, %30 : vector<2x1x8xf32>
    %c0_27 = arith.constant 0 : index
    %c0_28 = arith.constant 0 : index
    %c0_29 = arith.constant 0 : index
    %32 = vector.load %arg9[%c0_27, %c0_28, %c0_29] : memref<1x32x32xf32, #tpu.memory_space<vmem>>, vector<1x32x32xf32>
    %33 = vector.shape_cast %32 : vector<1x32x32xf32> to vector<32x32xf32>
    %cst_30 = arith.constant 0.000000e+00 : f32
    %34 = vector.broadcast %cst_30 : f32 to vector<16x32xf32>
    %35 = vector.extract_strided_slice %26 {offsets = [0, 0, 0], sizes = [2, 8, 8], strides = [1, 1, 1]} : vector<2x8x32xf32> to vector<2x8x8xf32>
    %36 = vector.extract_strided_slice %27 {offsets = [0, 0, 0], sizes = [2, 8, 8], strides = [1, 1, 1]} : vector<2x8x32xf32> to vector<2x8x8xf32>
    %37 = vector.extract_strided_slice %28 {offsets = [0, 0, 0], sizes = [2, 8, 8], strides = [1, 1, 1]} : vector<2x8x32xf32> to vector<2x8x8xf32>
    "tpu.trace_start"() <{level = 10 : i32, message = "bqd,bkd->bqk"}> : () -> ()
    %cst_31 = arith.constant dense<0.000000e+00> : vector<2x8x8xf32>
    %38 = tpu.matmul %35, %36, %cst_31 {dimension_numbers = #tpu.dot_dimension_numbers<[2], [2], [1], [1], [0, 0, 0, 1, 1, 1], [0], [0]>} : vector<2x8x8xf32>, vector<2x8x8xf32>, vector<2x8x8xf32> -> vector<2x8x8xf32>
    "tpu.trace_stop"() : () -> ()
    %cst_32 = arith.constant 0.353553385 : f32
    %39 = vector.broadcast %cst_32 : f32 to vector<2x8x8xf32>
    %40 = arith.mulf %38, %39 : vector<2x8x8xf32>
    %41 = vector.broadcast %31 : vector<2x1x8xf32> to vector<2x8x8xf32>
    %42 = arith.addf %40, %41 : vector<2x8x8xf32>
    %cst_33 = arith.constant dense<0xFF800000> : vector<2x8xf32>
    %43 = vector.multi_reduction <maximumf>, %42, %cst_33 [2] : vector<2x8x8xf32> to vector<2x8xf32>
    %44 = vector.shape_cast %43 : vector<2x8xf32> to vector<2x8x1xf32>
    %45 = vector.broadcast %44 : vector<2x8x1xf32> to vector<2x8x8xf32>
    %46 = arith.subf %42, %45 : vector<2x8x8xf32>
    %47 = math.exp %46 : vector<2x8x8xf32>
    %cst_34 = arith.constant dense<0.000000e+00> : vector<2x8xf32>
    %48 = vector.multi_reduction <add>, %47, %cst_34 [2] : vector<2x8x8xf32> to vector<2x8xf32>
    %49 = vector.shape_cast %48 : vector<2x8xf32> to vector<2x8x1xf32>
    %50 = tpu.reciprocal %49 {approx = true} : vector<2x8x1xf32> -> vector<2x8x1xf32>
    %51 = vector.broadcast %50 : vector<2x8x1xf32> to vector<2x8x8xf32>
    %52 = arith.mulf %47, %51 : vector<2x8x8xf32>
    "tpu.trace_start"() <{level = 10 : i32, message = "bqk,bkd->bqd"}> : () -> ()
    %cst_35 = arith.constant dense<0.000000e+00> : vector<2x8x8xf32>
    %53 = tpu.matmul %52, %37, %cst_35 {dimension_numbers = #tpu.dot_dimension_numbers<[2], [1], [1], [2], [0, 0, 0, 1, 1, 2], [0], [0]>} : vector<2x8x8xf32>, vector<2x8x8xf32>, vector<2x8x8xf32> -> vector<2x8x8xf32>
    "tpu.trace_stop"() : () -> ()
    %54 = vector.shape_cast %53 : vector<2x8x8xf32> to vector<16x8xf32>
    %55 = vector.extract_strided_slice %33 {offsets = [0, 0], sizes = [8, 32], strides = [1, 1]} : vector<32x32xf32> to vector<8x32xf32>
    %cst_36 = arith.constant dense<0.000000e+00> : vector<16x32xf32>
    %56 = tpu.matmul %54, %55, %cst_36 {dimension_numbers = #tpu.dot_dimension_numbers<[1], [0], [0], [1], [0, 0, 1, 1], [], []>} : vector<16x8xf32>, vector<8x32xf32>, vector<16x32xf32> -> vector<16x32xf32>
    %57 = arith.addf %34, %56 : vector<16x32xf32>
    %58 = vector.extract_strided_slice %26 {offsets = [0, 0, 8], sizes = [2, 8, 8], strides = [1, 1, 1]} : vector<2x8x32xf32> to vector<2x8x8xf32>
    %59 = vector.extract_strided_slice %27 {offsets = [0, 0, 8], sizes = [2, 8, 8], strides = [1, 1, 1]} : vector<2x8x32xf32> to vector<2x8x8xf32>
    %60 = vector.extract_strided_slice %28 {offsets = [0, 0, 8], sizes = [2, 8, 8], strides = [1, 1, 1]} : vector<2x8x32xf32> to vector<2x8x8xf32>
    "tpu.trace_start"() <{level = 10 : i32, message = "bqd,bkd->bqk"}> : () -> ()
    %cst_37 = arith.constant dense<0.000000e+00> : vector<2x8x8xf32>
    %61 = tpu.matmul %58, %59, %cst_37 {dimension_numbers = #tpu.dot_dimension_numbers<[2], [2], [1], [1], [0, 0, 0, 1, 1, 1], [0], [0]>} : vector<2x8x8xf32>, vector<2x8x8xf32>, vector<2x8x8xf32> -> vector<2x8x8xf32>
    "tpu.trace_stop"() : () -> ()
    %cst_38 = arith.constant 0.353553385 : f32
    %62 = vector.broadcast %cst_38 : f32 to vector<2x8x8xf32>
    %63 = arith.mulf %61, %62 : vector<2x8x8xf32>
    %64 = vector.broadcast %31 : vector<2x1x8xf32> to vector<2x8x8xf32>
    %65 = arith.addf %63, %64 : vector<2x8x8xf32>
    %cst_39 = arith.constant dense<0xFF800000> : vector<2x8xf32>
    %66 = vector.multi_reduction <maximumf>, %65, %cst_39 [2] : vector<2x8x8xf32> to vector<2x8xf32>
    %67 = vector.shape_cast %66 : vector<2x8xf32> to vector<2x8x1xf32>
    %68 = vector.broadcast %67 : vector<2x8x1xf32> to vector<2x8x8xf32>
    %69 = arith.subf %65, %68 : vector<2x8x8xf32>
    %70 = math.exp %69 : vector<2x8x8xf32>
    %cst_40 = arith.constant dense<0.000000e+00> : vector<2x8xf32>
    %71 = vector.multi_reduction <add>, %70, %cst_40 [2] : vector<2x8x8xf32> to vector<2x8xf32>
    %72 = vector.shape_cast %71 : vector<2x8xf32> to vector<2x8x1xf32>
    %73 = tpu.reciprocal %72 {approx = true} : vector<2x8x1xf32> -> vector<2x8x1xf32>
    %74 = vector.broadcast %73 : vector<2x8x1xf32> to vector<2x8x8xf32>
    %75 = arith.mulf %70, %74 : vector<2x8x8xf32>
    "tpu.trace_start"() <{level = 10 : i32, message = "bqk,bkd->bqd"}> : () -> ()
    %cst_41 = arith.constant dense<0.000000e+00> : vector<2x8x8xf32>
    %76 = tpu.matmul %75, %60, %cst_41 {dimension_numbers = #tpu.dot_dimension_numbers<[2], [1], [1], [2], [0, 0, 0, 1, 1, 2], [0], [0]>} : vector<2x8x8xf32>, vector<2x8x8xf32>, vector<2x8x8xf32> -> vector<2x8x8xf32>
    "tpu.trace_stop"() : () -> ()
    %77 = vector.shape_cast %76 : vector<2x8x8xf32> to vector<16x8xf32>
    %78 = vector.extract_strided_slice %33 {offsets = [8, 0], sizes = [8, 32], strides = [1, 1]} : vector<32x32xf32> to vector<8x32xf32>
    %cst_42 = arith.constant dense<0.000000e+00> : vector<16x32xf32>
    %79 = tpu.matmul %77, %78, %cst_42 {dimension_numbers = #tpu.dot_dimension_numbers<[1], [0], [0], [1], [0, 0, 1, 1], [], []>} : vector<16x8xf32>, vector<8x32xf32>, vector<16x32xf32> -> vector<16x32xf32>
    %80 = arith.addf %57, %79 : vector<16x32xf32>
    %81 = vector.extract_strided_slice %26 {offsets = [0, 0, 16], sizes = [2, 8, 8], strides = [1, 1, 1]} : vector<2x8x32xf32> to vector<2x8x8xf32>
    %82 = vector.extract_strided_slice %27 {offsets = [0, 0, 16], sizes = [2, 8, 8], strides = [1, 1, 1]} : vector<2x8x32xf32> to vector<2x8x8xf32>
    %83 = vector.extract_strided_slice %28 {offsets = [0, 0, 16], sizes = [2, 8, 8], strides = [1, 1, 1]} : vector<2x8x32xf32> to vector<2x8x8xf32>
    "tpu.trace_start"() <{level = 10 : i32, message = "bqd,bkd->bqk"}> : () -> ()
    %cst_43 = arith.constant dense<0.000000e+00> : vector<2x8x8xf32>
    %84 = tpu.matmul %81, %82, %cst_43 {dimension_numbers = #tpu.dot_dimension_numbers<[2], [2], [1], [1], [0, 0, 0, 1, 1, 1], [0], [0]>} : vector<2x8x8xf32>, vector<2x8x8xf32>, vector<2x8x8xf32> -> vector<2x8x8xf32>
    "tpu.trace_stop"() : () -> ()
    %cst_44 = arith.constant 0.353553385 : f32
    %85 = vector.broadcast %cst_44 : f32 to vector<2x8x8xf32>
    %86 = arith.mulf %84, %85 : vector<2x8x8xf32>
    %87 = vector.broadcast %31 : vector<2x1x8xf32> to vector<2x8x8xf32>
    %88 = arith.addf %86, %87 : vector<2x8x8xf32>
    %cst_45 = arith.constant dense<0xFF800000> : vector<2x8xf32>
    %89 = vector.multi_reduction <maximumf>, %88, %cst_45 [2] : vector<2x8x8xf32> to vector<2x8xf32>
    %90 = vector.shape_cast %89 : vector<2x8xf32> to vector<2x8x1xf32>
    %91 = vector.broadcast %90 : vector<2x8x1xf32> to vector<2x8x8xf32>
    %92 = arith.subf %88, %91 : vector<2x8x8xf32>
    %93 = math.exp %92 : vector<2x8x8xf32>
    %cst_46 = arith.constant dense<0.000000e+00> : vector<2x8xf32>
    %94 = vector.multi_reduction <add>, %93, %cst_46 [2] : vector<2x8x8xf32> to vector<2x8xf32>
    %95 = vector.shape_cast %94 : vector<2x8xf32> to vector<2x8x1xf32>
    %96 = tpu.reciprocal %95 {approx = true} : vector<2x8x1xf32> -> vector<2x8x1xf32>
    %97 = vector.broadcast %96 : vector<2x8x1xf32> to vector<2x8x8xf32>
    %98 = arith.mulf %93, %97 : vector<2x8x8xf32>
    "tpu.trace_start"() <{level = 10 : i32, message = "bqk,bkd->bqd"}> : () -> ()
    %cst_47 = arith.constant dense<0.000000e+00> : vector<2x8x8xf32>
    %99 = tpu.matmul %98, %83, %cst_47 {dimension_numbers = #tpu.dot_dimension_numbers<[2], [1], [1], [2], [0, 0, 0, 1, 1, 2], [0], [0]>} : vector<2x8x8xf32>, vector<2x8x8xf32>, vector<2x8x8xf32> -> vector<2x8x8xf32>
    "tpu.trace_stop"() : () -> ()
    %100 = vector.shape_cast %99 : vector<2x8x8xf32> to vector<16x8xf32>
    %101 = vector.extract_strided_slice %33 {offsets = [16, 0], sizes = [8, 32], strides = [1, 1]} : vector<32x32xf32> to vector<8x32xf32>
    %cst_48 = arith.constant dense<0.000000e+00> : vector<16x32xf32>
    %102 = tpu.matmul %100, %101, %cst_48 {dimension_numbers = #tpu.dot_dimension_numbers<[1], [0], [0], [1], [0, 0, 1, 1], [], []>} : vector<16x8xf32>, vector<8x32xf32>, vector<16x32xf32> -> vector<16x32xf32>
    %103 = arith.addf %80, %102 : vector<16x32xf32>
    %104 = vector.extract_strided_slice %26 {offsets = [0, 0, 24], sizes = [2, 8, 8], strides = [1, 1, 1]} : vector<2x8x32xf32> to vector<2x8x8xf32>
    %105 = vector.extract_strided_slice %27 {offsets = [0, 0, 24], sizes = [2, 8, 8], strides = [1, 1, 1]} : vector<2x8x32xf32> to vector<2x8x8xf32>
    %106 = vector.extract_strided_slice %28 {offsets = [0, 0, 24], sizes = [2, 8, 8], strides = [1, 1, 1]} : vector<2x8x32xf32> to vector<2x8x8xf32>
    "tpu.trace_start"() <{level = 10 : i32, message = "bqd,bkd->bqk"}> : () -> ()
    %cst_49 = arith.constant dense<0.000000e+00> : vector<2x8x8xf32>
    %107 = tpu.matmul %104, %105, %cst_49 {dimension_numbers = #tpu.dot_dimension_numbers<[2], [2], [1], [1], [0, 0, 0, 1, 1, 1], [0], [0]>} : vector<2x8x8xf32>, vector<2x8x8xf32>, vector<2x8x8xf32> -> vector<2x8x8xf32>
    "tpu.trace_stop"() : () -> ()
    %cst_50 = arith.constant 0.353553385 : f32
    %108 = vector.broadcast %cst_50 : f32 to vector<2x8x8xf32>
    %109 = arith.mulf %107, %108 : vector<2x8x8xf32>
    %110 = vector.broadcast %31 : vector<2x1x8xf32> to vector<2x8x8xf32>
    %111 = arith.addf %109, %110 : vector<2x8x8xf32>
    %cst_51 = arith.constant dense<0xFF800000> : vector<2x8xf32>
    %112 = vector.multi_reduction <maximumf>, %111, %cst_51 [2] : vector<2x8x8xf32> to vector<2x8xf32>
    %113 = vector.shape_cast %112 : vector<2x8xf32> to vector<2x8x1xf32>
    %114 = vector.broadcast %113 : vector<2x8x1xf32> to vector<2x8x8xf32>
    %115 = arith.subf %111, %114 : vector<2x8x8xf32>
    %116 = math.exp %115 : vector<2x8x8xf32>
    %cst_52 = arith.constant dense<0.000000e+00> : vector<2x8xf32>
    %117 = vector.multi_reduction <add>, %116, %cst_52 [2] : vector<2x8x8xf32> to vector<2x8xf32>
    %118 = vector.shape_cast %117 : vector<2x8xf32> to vector<2x8x1xf32>
    %119 = tpu.reciprocal %118 {approx = true} : vector<2x8x1xf32> -> vector<2x8x1xf32>
    %120 = vector.broadcast %119 : vector<2x8x1xf32> to vector<2x8x8xf32>
    %121 = arith.mulf %116, %120 : vector<2x8x8xf32>
    "tpu.trace_start"() <{level = 10 : i32, message = "bqk,bkd->bqd"}> : () -> ()
    %cst_53 = arith.constant dense<0.000000e+00> : vector<2x8x8xf32>
    %122 = tpu.matmul %121, %106, %cst_53 {dimension_numbers = #tpu.dot_dimension_numbers<[2], [1], [1], [2], [0, 0, 0, 1, 1, 2], [0], [0]>} : vector<2x8x8xf32>, vector<2x8x8xf32>, vector<2x8x8xf32> -> vector<2x8x8xf32>
    "tpu.trace_stop"() : () -> ()
    %123 = vector.shape_cast %122 : vector<2x8x8xf32> to vector<16x8xf32>
    %124 = vector.extract_strided_slice %33 {offsets = [24, 0], sizes = [8, 32], strides = [1, 1]} : vector<32x32xf32> to vector<8x32xf32>
    %cst_54 = arith.constant dense<0.000000e+00> : vector<16x32xf32>
    %125 = tpu.matmul %123, %124, %cst_54 {dimension_numbers = #tpu.dot_dimension_numbers<[1], [0], [0], [1], [0, 0, 1, 1], [], []>} : vector<16x8xf32>, vector<8x32xf32>, vector<16x32xf32> -> vector<16x32xf32>
    %126 = arith.addf %103, %125 : vector<16x32xf32>
    %c0_55 = arith.constant 0 : index
    %c0_56 = arith.constant 0 : index
    %c0_57 = arith.constant 0 : index
    %127 = vector.load %arg10[%c0_55, %c0_56, %c0_57] : memref<1x1x32xf32, #tpu.memory_space<vmem>>, vector<1x1x32xf32>
    %128 = vector.shape_cast %127 : vector<1x1x32xf32> to vector<1x32xf32>
    %129 = vector.broadcast %128 : vector<1x32xf32> to vector<16x32xf32>
    %130 = arith.addf %126, %129 : vector<16x32xf32>
    %131 = vector.shape_cast %130 : vector<16x32xf32> to vector<2x8x32xf32>
    %132 = arith.addf %3, %131 : vector<2x8x32xf32>
    %c0_58 = arith.constant 0 : index
    %c0_59 = arith.constant 0 : index
    %c0_60 = arith.constant 0 : index
    %133 = vector.load %arg15[%c0_58, %c0_59, %c0_60] : memref<1x8x32xf32, #tpu.memory_space<vmem>>, vector<1x8x32xf32>
    %134 = vector.shape_cast %133 : vector<1x8x32xf32> to vector<8x32xf32>
    %c0_61 = arith.constant 0 : index
    %c0_62 = arith.constant 0 : index
    %c0_63 = arith.constant 0 : index
    %135 = vector.load %arg16[%c0_61, %c0_62, %c0_63] : memref<1x8x32xf32, #tpu.memory_space<vmem>>, vector<1x8x32xf32>
    %136 = vector.shape_cast %135 : vector<1x8x32xf32> to vector<8x32xf32>
    %cst_64 = arith.constant dense<0.000000e+00> : vector<2x8xf32>
    %137 = vector.multi_reduction <add>, %132, %cst_64 [2] : vector<2x8x32xf32> to vector<2x8xf32>
    %138 = vector.shape_cast %137 : vector<2x8xf32> to vector<2x8x1xf32>
    %cst_65 = arith.constant dense<0.000000e+00> : vector<2x1xf32>
    %139 = vector.multi_reduction <add>, %138, %cst_65 [1] : vector<2x8x1xf32> to vector<2x1xf32>
    %140 = vector.shape_cast %139 : vector<2x1xf32> to vector<2x1x1xf32>
    %cst_66 = arith.constant 3.906250e-03 : f32
    %141 = vector.broadcast %cst_66 : f32 to vector<2x1x1xf32>
    %142 = arith.mulf %140, %141 : vector<2x1x1xf32>
    %143 = vector.broadcast %142 : vector<2x1x1xf32> to vector<2x8x32xf32>
    %144 = arith.subf %132, %143 : vector<2x8x32xf32>
    %145 = arith.mulf %144, %144 : vector<2x8x32xf32>
    %cst_67 = arith.constant dense<0.000000e+00> : vector<2x8xf32>
    %146 = vector.multi_reduction <add>, %145, %cst_67 [2] : vector<2x8x32xf32> to vector<2x8xf32>
    %147 = vector.shape_cast %146 : vector<2x8xf32> to vector<2x8x1xf32>
    %cst_68 = arith.constant dense<0.000000e+00> : vector<2x1xf32>
    %148 = vector.multi_reduction <add>, %147, %cst_68 [1] : vector<2x8x1xf32> to vector<2x1xf32>
    %149 = vector.shape_cast %148 : vector<2x1xf32> to vector<2x1x1xf32>
    %cst_69 = arith.constant 3.906250e-03 : f32
    %150 = vector.broadcast %cst_69 : f32 to vector<2x1x1xf32>
    %151 = arith.mulf %149, %150 : vector<2x1x1xf32>
    %cst_70 = arith.constant 9.99999974E-6 : f32
    %152 = vector.broadcast %cst_70 : f32 to vector<2x1x1xf32>
    %153 = arith.addf %151, %152 : vector<2x1x1xf32>
    %154 = math.rsqrt %153 : vector<2x1x1xf32>
    %155 = vector.broadcast %154 : vector<2x1x1xf32> to vector<2x8x32xf32>
    %156 = arith.mulf %144, %155 : vector<2x8x32xf32>
    %157 = vector.shape_cast %134 : vector<8x32xf32> to vector<1x8x32xf32>
    %158 = vector.broadcast %157 : vector<1x8x32xf32> to vector<2x8x32xf32>
    %159 = arith.mulf %156, %158 : vector<2x8x32xf32>
    %160 = vector.shape_cast %136 : vector<8x32xf32> to vector<1x8x32xf32>
    %161 = vector.broadcast %160 : vector<1x8x32xf32> to vector<2x8x32xf32>
    %162 = arith.addf %159, %161 : vector<2x8x32xf32>
    %163 = vector.shape_cast %162 : vector<2x8x32xf32> to vector<16x32xf32>
    %c0_71 = arith.constant 0 : index
    %c0_72 = arith.constant 0 : index
    %c0_73 = arith.constant 0 : index
    %164 = vector.load %arg11[%c0_71, %c0_72, %c0_73] : memref<1x32x64xf32, #tpu.memory_space<vmem>>, vector<1x32x64xf32>
    %165 = vector.shape_cast %164 : vector<1x32x64xf32> to vector<32x64xf32>
    %cst_74 = arith.constant dense<0.000000e+00> : vector<16x64xf32>
    %166 = tpu.matmul %163, %165, %cst_74 {dimension_numbers = #tpu.dot_dimension_numbers<[1], [0], [0], [1], [0, 0, 1, 1], [], []>} : vector<16x32xf32>, vector<32x64xf32>, vector<16x64xf32> -> vector<16x64xf32>
    %c0_75 = arith.constant 0 : index
    %c0_76 = arith.constant 0 : index
    %c0_77 = arith.constant 0 : index
    %167 = vector.load %arg12[%c0_75, %c0_76, %c0_77] : memref<1x1x64xf32, #tpu.memory_space<vmem>>, vector<1x1x64xf32>
    %168 = vector.shape_cast %167 : vector<1x1x64xf32> to vector<1x64xf32>
    %169 = vector.broadcast %168 : vector<1x64xf32> to vector<16x64xf32>
    %170 = arith.addf %166, %169 : vector<16x64xf32>
    %cst_78 = arith.constant 0.000000e+00 : f32
    %171 = vector.broadcast %cst_78 : f32 to vector<16x64xf32>
    %172 = arith.maximumf %170, %171 : vector<16x64xf32>
    %c0_79 = arith.constant 0 : index
    %c0_80 = arith.constant 0 : index
    %c0_81 = arith.constant 0 : index
    %173 = vector.load %arg13[%c0_79, %c0_80, %c0_81] : memref<1x64x32xf32, #tpu.memory_space<vmem>>, vector<1x64x32xf32>
    %174 = vector.shape_cast %173 : vector<1x64x32xf32> to vector<64x32xf32>
    %cst_82 = arith.constant dense<0.000000e+00> : vector<16x32xf32>
    %175 = tpu.matmul %172, %174, %cst_82 {dimension_numbers = #tpu.dot_dimension_numbers<[1], [0], [0], [1], [0, 0, 1, 1], [], []>} : vector<16x64xf32>, vector<64x32xf32>, vector<16x32xf32> -> vector<16x32xf32>
    %c0_83 = arith.constant 0 : index
    %c0_84 = arith.constant 0 : index
    %c0_85 = arith.constant 0 : index
    %176 = vector.load %arg14[%c0_83, %c0_84, %c0_85] : memref<1x1x32xf32, #tpu.memory_space<vmem>>, vector<1x1x32xf32>
    %177 = vector.shape_cast %176 : vector<1x1x32xf32> to vector<1x32xf32>
    %178 = vector.broadcast %177 : vector<1x32xf32> to vector<16x32xf32>
    %179 = arith.addf %175, %178 : vector<16x32xf32>
    %180 = vector.shape_cast %179 : vector<16x32xf32> to vector<2x8x32xf32>
    %181 = arith.addf %162, %180 : vector<2x8x32xf32>
    %c0_86 = arith.constant 0 : index
    %c0_87 = arith.constant 0 : index
    %c0_88 = arith.constant 0 : index
    %182 = vector.load %arg17[%c0_86, %c0_87, %c0_88] : memref<1x8x32xf32, #tpu.memory_space<vmem>>, vector<1x8x32xf32>
    %183 = vector.shape_cast %182 : vector<1x8x32xf32> to vector<8x32xf32>
    %c0_89 = arith.constant 0 : index
    %c0_90 = arith.constant 0 : index
    %c0_91 = arith.constant 0 : index
    %184 = vector.load %arg18[%c0_89, %c0_90, %c0_91] : memref<1x8x32xf32, #tpu.memory_space<vmem>>, vector<1x8x32xf32>
    %185 = vector.shape_cast %184 : vector<1x8x32xf32> to vector<8x32xf32>
    %cst_92 = arith.constant dense<0.000000e+00> : vector<2x8xf32>
    %186 = vector.multi_reduction <add>, %181, %cst_92 [2] : vector<2x8x32xf32> to vector<2x8xf32>
    %187 = vector.shape_cast %186 : vector<2x8xf32> to vector<2x8x1xf32>
    %cst_93 = arith.constant dense<0.000000e+00> : vector<2x1xf32>
    %188 = vector.multi_reduction <add>, %187, %cst_93 [1] : vector<2x8x1xf32> to vector<2x1xf32>
    %189 = vector.shape_cast %188 : vector<2x1xf32> to vector<2x1x1xf32>
    %cst_94 = arith.constant 3.906250e-03 : f32
    %190 = vector.broadcast %cst_94 : f32 to vector<2x1x1xf32>
    %191 = arith.mulf %189, %190 : vector<2x1x1xf32>
    %192 = vector.broadcast %191 : vector<2x1x1xf32> to vector<2x8x32xf32>
    %193 = arith.subf %181, %192 : vector<2x8x32xf32>
    %194 = arith.mulf %193, %193 : vector<2x8x32xf32>
    %cst_95 = arith.constant dense<0.000000e+00> : vector<2x8xf32>
    %195 = vector.multi_reduction <add>, %194, %cst_95 [2] : vector<2x8x32xf32> to vector<2x8xf32>
    %196 = vector.shape_cast %195 : vector<2x8xf32> to vector<2x8x1xf32>
    %cst_96 = arith.constant dense<0.000000e+00> : vector<2x1xf32>
    %197 = vector.multi_reduction <add>, %196, %cst_96 [1] : vector<2x8x1xf32> to vector<2x1xf32>
    %198 = vector.shape_cast %197 : vector<2x1xf32> to vector<2x1x1xf32>
    %cst_97 = arith.constant 3.906250e-03 : f32
    %199 = vector.broadcast %cst_97 : f32 to vector<2x1x1xf32>
    %200 = arith.mulf %198, %199 : vector<2x1x1xf32>
    %cst_98 = arith.constant 9.99999974E-6 : f32
    %201 = vector.broadcast %cst_98 : f32 to vector<2x1x1xf32>
    %202 = arith.addf %200, %201 : vector<2x1x1xf32>
    %203 = math.rsqrt %202 : vector<2x1x1xf32>
    %204 = vector.broadcast %203 : vector<2x1x1xf32> to vector<2x8x32xf32>
    %205 = arith.mulf %193, %204 : vector<2x8x32xf32>
    %206 = vector.shape_cast %183 : vector<8x32xf32> to vector<1x8x32xf32>
    %207 = vector.broadcast %206 : vector<1x8x32xf32> to vector<2x8x32xf32>
    %208 = arith.mulf %205, %207 : vector<2x8x32xf32>
    %209 = vector.shape_cast %185 : vector<8x32xf32> to vector<1x8x32xf32>
    %210 = vector.broadcast %209 : vector<1x8x32xf32> to vector<2x8x32xf32>
    %211 = arith.addf %208, %210 : vector<2x8x32xf32>
    %c0_99 = arith.constant 0 : index
    %c0_100 = arith.constant 0 : index
    %c0_101 = arith.constant 0 : index
    %212 = vector.load %arg20[%c0_99, %c0_100, %c0_101] : memref<2x8x32xf32, #tpu.memory_space<vmem>>, vector<2x8x32xf32>
    tpu.vector_store %arg20[%c0_99, %c0_100, %c0_101], %211 {strides = array<i32>} : memref<2x8x32xf32, #tpu.memory_space<vmem>>, vector<2x8x32xf32>,
    %c1_i32 = arith.constant 1 : i32
    %213 = arith.cmpi eq, %arg0, %c1_i32 : i32
    %214 = arith.extui %213 : i1 to i32
    %c0_i32_102 = arith.constant 0 : i32
    %215 = arith.cmpi ne, %214, %c0_i32_102 : i32
    scf.if %215 {
      %c0_103 = arith.constant 0 : index
      %c0_104 = arith.constant 0 : index
      %c0_105 = arith.constant 0 : index
      %216 = vector.load %arg19[%c0_103, %c0_104, %c0_105] : memref<2x8x32xf32, #tpu.memory_space<vmem>>, vector<2x8x32xf32>
      tpu.vector_store %arg19[%c0_103, %c0_104, %c0_105], %211 {strides = array<i32>} : memref<2x8x32xf32, #tpu.memory_space<vmem>>, vector<2x8x32xf32>,
    } else {
    }
    return
  }
  func.func @transform_0(%arg0: i32) -> (i32, i32, i32) {
    %c0_i32 = arith.constant 0 : i32
    %c0_i32_0 = arith.constant 0 : i32
    %c0_i32_1 = arith.constant 0 : i32
    %c0_i32_2 = arith.constant 0 : i32
    return %c0_i32, %c0_i32_0, %c0_i32_1 : i32, i32, i32
  }
  func.func @transform_1(%arg0: i32) -> (i32, i32, i32) {
    %c0_i32 = arith.constant 0 : i32
    %c0_i32_0 = arith.constant 0 : i32
    %c0_i32_1 = arith.constant 0 : i32
    %c0_i32_2 = arith.constant 0 : i32
    return %c0_i32, %c0_i32_0, %c0_i32_1 : i32, i32, i32
  }
  func.func @transform_2(%arg0: i32) -> (i32, i32, i32) {
    %c0_i32 = arith.constant 0 : i32
    %c0_i32_0 = arith.constant 0 : i32
    %c0_i32_1 = arith.constant 0 : i32
    return %arg0, %c0_i32, %c0_i32_0 : i32, i32, i32
  }
  func.func @transform_3(%arg0: i32) -> (i32, i32, i32) {
    %c0_i32 = arith.constant 0 : i32
    %c0_i32_0 = arith.constant 0 : i32
    %c0_i32_1 = arith.constant 0 : i32
    return %arg0, %c0_i32, %c0_i32_0 : i32, i32, i32
  }
  func.func @transform_4(%arg0: i32) -> (i32, i32, i32) {
    %c0_i32 = arith.constant 0 : i32
    %c0_i32_0 = arith.constant 0 : i32
    %c0_i32_1 = arith.constant 0 : i32
    return %arg0, %c0_i32, %c0_i32_0 : i32, i32, i32
  }
  func.func @transform_5(%arg0: i32) -> (i32, i32, i32) {
    %c0_i32 = arith.constant 0 : i32
    %c0_i32_0 = arith.constant 0 : i32
    %c0_i32_1 = arith.constant 0 : i32
    return %arg0, %c0_i32, %c0_i32_0 : i32, i32, i32
  }
  func.func @transform_6(%arg0: i32) -> (i32, i32, i32) {
    %c0_i32 = arith.constant 0 : i32
    %c0_i32_0 = arith.constant 0 : i32
    %c0_i32_1 = arith.constant 0 : i32
    return %arg0, %c0_i32, %c0_i32_0 : i32, i32, i32
  }
  func.func @transform_7(%arg0: i32) -> (i32, i32, i32) {
    %c0_i32 = arith.constant 0 : i32
    %c0_i32_0 = arith.constant 0 : i32
    %c0_i32_1 = arith.constant 0 : i32
    return %arg0, %c0_i32, %c0_i32_0 : i32, i32, i32
  }
  func.func @transform_8(%arg0: i32) -> (i32, i32, i32) {
    %c0_i32 = arith.constant 0 : i32
    %c0_i32_0 = arith.constant 0 : i32
    %c0_i32_1 = arith.constant 0 : i32
    return %arg0, %c0_i32, %c0_i32_0 : i32, i32, i32
  }
  func.func @transform_9(%arg0: i32) -> (i32, i32, i32) {
    %c0_i32 = arith.constant 0 : i32
    %c0_i32_0 = arith.constant 0 : i32
    %c0_i32_1 = arith.constant 0 : i32
    return %arg0, %c0_i32, %c0_i32_0 : i32, i32, i32
  }
  func.func @transform_10(%arg0: i32) -> (i32, i32, i32) {
    %c0_i32 = arith.constant 0 : i32
    %c0_i32_0 = arith.constant 0 : i32
    %c0_i32_1 = arith.constant 0 : i32
    return %arg0, %c0_i32, %c0_i32_0 : i32, i32, i32
  }
  func.func @transform_11(%arg0: i32) -> (i32, i32, i32) {
    %c0_i32 = arith.constant 0 : i32
    %c0_i32_0 = arith.constant 0 : i32
    %c0_i32_1 = arith.constant 0 : i32
    return %arg0, %c0_i32, %c0_i32_0 : i32, i32, i32
  }
  func.func @transform_12(%arg0: i32) -> (i32, i32, i32) {
    %c0_i32 = arith.constant 0 : i32
    %c0_i32_0 = arith.constant 0 : i32
    %c0_i32_1 = arith.constant 0 : i32
    return %arg0, %c0_i32, %c0_i32_0 : i32, i32, i32
  }
  func.func @transform_13(%arg0: i32) -> (i32, i32, i32) {
    %c0_i32 = arith.constant 0 : i32
    %c0_i32_0 = arith.constant 0 : i32
    %c0_i32_1 = arith.constant 0 : i32
    return %arg0, %c0_i32, %c0_i32_0 : i32, i32, i32
  }
  func.func @transform_14(%arg0: i32) -> (i32, i32, i32) {
    %c0_i32 = arith.constant 0 : i32
    %c0_i32_0 = arith.constant 0 : i32
    %c0_i32_1 = arith.constant 0 : i32
    return %arg0, %c0_i32, %c0_i32_0 : i32, i32, i32
  }
  func.func @transform_15(%arg0: i32) -> (i32, i32, i32) {
    %c0_i32 = arith.constant 0 : i32
    %c0_i32_0 = arith.constant 0 : i32
    %c0_i32_1 = arith.constant 0 : i32
    return %arg0, %c0_i32, %c0_i32_0 : i32, i32, i32
  }
  func.func @transform_16(%arg0: i32) -> (i32, i32, i32) {
    %c0_i32 = arith.constant 0 : i32
    %c0_i32_0 = arith.constant 0 : i32
    %c0_i32_1 = arith.constant 0 : i32
    return %arg0, %c0_i32, %c0_i32_0 : i32, i32, i32
  }
  func.func @transform_17(%arg0: i32) -> (i32, i32, i32) {
    %c0_i32 = arith.constant 0 : i32
    %c0_i32_0 = arith.constant 0 : i32
    %c0_i32_1 = arith.constant 0 : i32
    return %arg0, %c0_i32, %c0_i32_0 : i32, i32, i32
  }
  func.func @transform_18(%arg0: i32) -> (i32, i32, i32) {
    %c0_i32 = arith.constant 0 : i32
    %c0_i32_0 = arith.constant 0 : i32
    %c0_i32_1 = arith.constant 0 : i32
    %c0_i32_2 = arith.constant 0 : i32
    return %c0_i32, %c0_i32_0, %c0_i32_1 : i32, i32, i32
  }
}

</mosaic_0001>

<llo_original>
// kernel: tpu_custom_call.1
$region0: #{tpu_custom_call.1}
  #allocation0 [shape = 'u32[]', space=smem, size = 0x4, offset = 0x4, fixed_abs, tag = 'smem constant byte address 0x4 - core index']
  #allocation1 [shape = 'u32[144,128]{1,0:T(1,128)}', space=vmem, size = 0x12000, scoped, tag = 'internal scratch']
  #allocation2 [shape = 'f32[2,8,32]{2,1,0:T(8,128)}', space=vmem, size = 0x2000, scoped, tag = 'scratch operand']
  %s0 = inlined_call_operand.hbm [shape: f32[2,8,32], index: 0, kind: input, shape index: {}]
  %s1 = inlined_call_operand.hbm [shape: f32[2,1,8], index: 1, kind: input, shape index: {}]
  %s2 = inlined_call_operand.vmem [shape: f32[2,32,32], index: 2, kind: input, shape index: {}]
  %s3 = inlined_call_operand.vmem [shape: f32[2,1,32], index: 3, kind: input, shape index: {}]
  %s4 = inlined_call_operand.vmem [shape: f32[2,32,32], index: 4, kind: input, shape index: {}]
  %s5 = inlined_call_operand.hbm [shape: f32[2,1,32], index: 5, kind: input, shape index: {}]
  %s6 = inlined_call_operand.vmem [shape: f32[2,32,32], index: 6, kind: input, shape index: {}]
  %s7 = inlined_call_operand.hbm [shape: f32[2,1,32], index: 7, kind: input, shape index: {}]
  %s8 = inlined_call_operand.hbm [shape: f32[2,32,32], index: 8, kind: input, shape index: {}]
  %s9 = inlined_call_operand.hbm [shape: f32[2,1,32], index: 9, kind: input, shape index: {}]
  %s10 = inlined_call_operand.hbm [shape: f32[2,32,64], index: 10, kind: input, shape index: {}]
  %s11 = inlined_call_operand.hbm [shape: f32[2,1,64], index: 11, kind: input, shape index: {}]
  %s12 = inlined_call_operand.vmem [shape: f32[2,64,32], index: 12, kind: input, shape index: {}]
  %s13 = inlined_call_operand.vmem [shape: f32[2,1,32], index: 13, kind: input, shape index: {}]
  %s14 = inlined_call_operand.vmem [shape: f32[2,8,32], index: 14, kind: input, shape index: {}]
  %s15 = inlined_call_operand.hbm [shape: f32[2,8,32], index: 15, kind: input, shape index: {}]
  %s16 = inlined_call_operand.hbm [shape: f32[2,8,32], index: 16, kind: input, shape index: {}]
  %s17 = inlined_call_operand.hbm [shape: f32[2,8,32], index: 17, kind: input, shape index: {}]
  %s18 = inlined_call_operand.hbm [shape: f32[2,8,32], index: 18, kind: output, shape index: {}]
  %s19 = sld [smem:[#allocation0]]
  $region157: #{tpu_custom_call.1} parent=0
    _
  %s21 = ssub.s32 1, %s19
  %s22 = scalar_select 0, %s21, %s19
  $region1: #{tpu_custom_call.1} parent=0
    #allocation3 [shape = 'u8[8192]{0}', space=vmem, size = 0x2000, scoped, tag = 'input window, operand 0, single buffered']
    #allocation4 [shape = 's32[2]{0}', space=sflag, size = 0x8, scoped, tag = 'scoped memory for tpu_custom_call.1']
    #allocation5 [shape = 's32[2]{0}', space=sflag, size = 0x8, scoped, tag = 'scoped memory for tpu_custom_call.1']
    #allocation6 [shape = 'u8[1024]{0}', space=vmem, size = 0x400, scoped, tag = 'input window, operand 1, single buffered']
    #allocation7 [shape = 's32[1]{0}', space=sflag, size = 0x4, scoped, tag = 'scoped memory for tpu_custom_call.1']
    #allocation8 [shape = 'u8[1024]{0}', space=vmem, size = 0x400, scoped, tag = 'input window, operand 5']
    #allocation9 [shape = 'u8[1024]{0}', space=vmem, size = 0x400, scoped, tag = 'input window, operand 7']
    #allocation10 [shape = 'u8[32768]{0}', space=vmem, size = 0x8000, scoped, tag = 'input window, operand 8']
    #allocation11 [shape = 'u8[1024]{0}', space=vmem, size = 0x400, scoped, tag = 'input window, operand 9']
    #allocation12 [shape = 'u8[32768]{0}', space=vmem, size = 0x8000, scoped, tag = 'input window, operand 10']
    #allocation13 [shape = 'u8[1024]{0}', space=vmem, size = 0x400, scoped, tag = 'input window, operand 11']
    #allocation14 [shape = 'u8[8192]{0}', space=vmem, size = 0x2000, scoped, tag = 'input window, operand 15']
    #allocation15 [shape = 'u8[8192]{0}', space=vmem, size = 0x2000, scoped, tag = 'input window, operand 16']
    #allocation16 [shape = 'u8[8192]{0}', space=vmem, size = 0x2000, scoped, tag = 'input window, operand 17']
    #allocation17 [shape = 'u8[8192]{0}', space=vmem, size = 0x2000, scoped, tag = 'output window, operand 0, single buffered']
    %23 = vsyncpa [#allocation4], 0
    %24 = vsyncpa [#allocation7], 0
    %25 = vsyncpa [#allocation5], 0
    loop: start=0, step=1, limit=4
    $region2: #{tpu_custom_call.1} parent=1 // loop_pre_header
      _
    $region3: #{tpu_custom_call.1} parent=1 // loop_header
      %s27 = sphi 0, %s31
      %p28 = scmp.ge.s32.totalorder %s27, 4
      %s35 = sphi 0, %s35
      %s37 = sphi 0, %s35
      %s38 = sphi 0, %s37
      %s52 = sphi 0, %s38
      %s56 = sphi 0, %s56
      %s58 = sphi 0, %s56
      %s59 = sphi 0, %s58
      %s73 = sphi 0, %s59
      %s79 = sphi 0, %s81
      %s82 = sphi 0, %s79
      %s83 = sphi 0, %s82
      %s99 = sphi 0, %s83
      %s105 = sphi 0, %s107
      %s108 = sphi 0, %s105
      %s109 = sphi 0, %s108
      %s125 = sphi 0, %s109
      %s131 = sphi 0, %s133
      %s134 = sphi 0, %s131
      %s135 = sphi 0, %s134
      %s151 = sphi 0, %s135
      %s157 = sphi 0, %s159
      %s160 = sphi 0, %s157
      %s161 = sphi 0, %s160
      %s177 = sphi 0, %s161
      %s183 = sphi 0, %s185
      %s186 = sphi 0, %s183
      %s187 = sphi 0, %s186
      %s203 = sphi 0, %s187
      %s209 = sphi 0, %s211
      %s212 = sphi 0, %s209
      %s213 = sphi 0, %s212
      %s229 = sphi 0, %s213
      %s235 = sphi 0, %s237
      %s238 = sphi 0, %s235
      %s239 = sphi 0, %s238
      %s255 = sphi 0, %s239
      %s261 = sphi 0, %s263
      %s264 = sphi 0, %s261
      %s265 = sphi 0, %s264
      %s281 = sphi 0, %s265
      %s287 = sphi 0, %s289
      %s290 = sphi 0, %s287
      %s291 = sphi 0, %s290
      %s307 = sphi 0, %s291
      %s313 = sphi 0, %s315
      %s316 = sphi 0, %s313
      %s317 = sphi 0, %s316
      %s333 = sphi 0, %s317
      %s339 = sphi 0, %s341
      %s342 = sphi 0, %s339
      %s343 = sphi 0, %s342
      %s359 = sphi 0, %s343
      %s365 = sphi 0, %s367
      %s368 = sphi 0, %s365
      %s369 = sphi 0, %s368
      %s385 = sphi 0, %s369
      %s391 = sphi 0, %s393
      %s394 = sphi 0, %s391
      %s395 = sphi 0, %s394
      %s411 = sphi 0, %s395
      %s417 = sphi 0, %s419
      %s420 = sphi 0, %s417
      %s421 = sphi 0, %s420
      %s437 = sphi 0, %s421
      %s443 = sphi 0, %s445
      %s446 = sphi 0, %s443
      %s447 = sphi 0, %s446
      %s463 = sphi 0, %s447
      %s469 = sphi 0, %s471
      %s472 = sphi 0, %s469
      %s473 = sphi 0, %s472
      %s489 = sphi 0, %s473
      %s493 = sphi 0, %s493
      %s495 = sphi 0, %s493
      %s496 = sphi 0, %s495
      %s510 = sphi 0, %s496
    $region4: #{tpu_custom_call.1} parent=1 // loop_header_branch
      %30 = sbr.rel (%p28) target = $region8
    $region5: #{tpu_custom_call.1} parent=1 // loop_body
      %s32 = ssub.s32 %s27, 1
      %s33 = ssub.s32 %s27, 2
      %s34 = sadd.s32 %s27, 1
      %s36 = sadd.s32 %s35, 1
      %p39 = scmp.eq.s32.totalorder %s27, 1
      %p40 = scmp.ne.s32.totalorder %s35, %s37
      %p41 = scmp.eq.s32.totalorder %s27, 0
      %p42 = por %p40, %p41
      %p43 = scmp.ne.s32.totalorder %s35, %s37
      %p44 = scmp.eq.s32.totalorder %s32, 1
      %p45 = por %p43, %p44
      %p46 = scmp.ne.s32.totalorder %s37, %s38
      %p47 = scmp.eq.s32.totalorder %s32, 0
      %p48 = por %p46, %p47
      %p49 = scmp.ne.s32.totalorder %s37, %s38
      %p50 = scmp.eq.s32.totalorder %s33, 1
      %p51 = por %p49, %p50
      %p53 = scmp.ne.s32.totalorder %s38, %s52
      %p54 = scmp.eq.s32.totalorder %s33, 0
      %p55 = por %p53, %p54
      %s57 = sadd.s32 %s56, 1
      %p60 = scmp.eq.s32.totalorder %s27, 1
      %p61 = scmp.ne.s32.totalorder %s56, %s58
      %p62 = scmp.eq.s32.totalorder %s27, 0
      %p63 = por %p61, %p62
      %p64 = scmp.ne.s32.totalorder %s56, %s58
      %p65 = scmp.eq.s32.totalorder %s32, 1
      %p66 = por %p64, %p65
      %p67 = scmp.ne.s32.totalorder %s58, %s59
      %p68 = scmp.eq.s32.totalorder %s32, 0
      %p69 = por %p67, %p68
      %p70 = scmp.ne.s32.totalorder %s58, %s59
      %p71 = scmp.eq.s32.totalorder %s33, 1
      %p72 = por %p70, %p71
      %p74 = scmp.ne.s32.totalorder %s59, %s73
      %p75 = scmp.eq.s32.totalorder %s33, 0
      %p76 = por %p74, %p75
      %s77 = ssub.s32 %s27, %s34
      %p78 = scmp.eq.s32.totalorder %s77, 0
      %s80 = sadd.s32 %s79, 1
      %s81 = scalar_select %p78, %s79, %s80
      %p84 = pneg %p78
      %p85 = scmp.eq.s32.totalorder %s27, 1
      %p86 = por %p84, %p85
      %p87 = scmp.ne.s32.totalorder %s79, %s82
      %p88 = scmp.eq.s32.totalorder %s27, 0
      %p89 = por %p87, %p88
      %p90 = scmp.ne.s32.totalorder %s79, %s82
      %p91 = scmp.eq.s32.totalorder %s32, 1
      %p92 = por %p90, %p91
      %p93 = scmp.ne.s32.totalorder %s82, %s83
      %p94 = scmp.eq.s32.totalorder %s32, 0
      %p95 = por %p93, %p94
      %p96 = scmp.ne.s32.totalorder %s82, %s83
      %p97 = scmp.eq.s32.totalorder %s33, 1
      %p98 = por %p96, %p97
      %p100 = scmp.ne.s32.totalorder %s83, %s99
      %p101 = scmp.eq.s32.totalorder %s33, 0
      %p102 = por %p100, %p101
      %s103 = ssub.s32 %s27, %s34
      %p104 = scmp.eq.s32.totalorder %s103, 0
      %s106 = sadd.s32 %s105, 1
      %s107 = scalar_select %p104, %s105, %s106
      %p110 = pneg %p104
      %p111 = scmp.eq.s32.totalorder %s27, 1
      %p112 = por %p110, %p111
      %p113 = scmp.ne.s32.totalorder %s105, %s108
      %p114 = scmp.eq.s32.totalorder %s27, 0
      %p115 = por %p113, %p114
      %p116 = scmp.ne.s32.totalorder %s105, %s108
      %p117 = scmp.eq.s32.totalorder %s32, 1
      %p118 = por %p116, %p117
      %p119 = scmp.ne.s32.totalorder %s108, %s109
      %p120 = scmp.eq.s32.totalorder %s32, 0
      %p121 = por %p119, %p120
      %p122 = scmp.ne.s32.totalorder %s108, %s109
      %p123 = scmp.eq.s32.totalorder %s33, 1
      %p124 = por %p122, %p123
      %p126 = scmp.ne.s32.totalorder %s109, %s125
      %p127 = scmp.eq.s32.totalorder %s33, 0
      %p128 = por %p126, %p127
      %s129 = ssub.s32 %s27, %s34
      %p130 = scmp.eq.s32.totalorder %s129, 0
      %s132 = sadd.s32 %s131, 1
      %s133 = scalar_select %p130, %s131, %s132
      %p136 = pneg %p130
      %p137 = scmp.eq.s32.totalorder %s27, 1
      %p138 = por %p136, %p137
      %p139 = scmp.ne.s32.totalorder %s131, %s134
      %p140 = scmp.eq.s32.totalorder %s27, 0
      %p141 = por %p139, %p140
      %p142 = scmp.ne.s32.totalorder %s131, %s134
      %p143 = scmp.eq.s32.totalorder %s32, 1
      %p144 = por %p142, %p143
      %p145 = scmp.ne.s32.totalorder %s134, %s135
      %p146 = scmp.eq.s32.totalorder %s32, 0
      %p147 = por %p145, %p146
      %p148 = scmp.ne.s32.totalorder %s134, %s135
      %p149 = scmp.eq.s32.totalorder %s33, 1
      %p150 = por %p148, %p149
      %p152 = scmp.ne.s32.totalorder %s135, %s151
      %p153 = scmp.eq.s32.totalorder %s33, 0
      %p154 = por %p152, %p153
      %s155 = ssub.s32 %s27, %s34
      %p156 = scmp.eq.s32.totalorder %s155, 0
      %s158 = sadd.s32 %s157, 1
      %s159 = scalar_select %p156, %s157, %s158
      %p162 = pneg %p156
      %p163 = scmp.eq.s32.totalorder %s27, 1
      %p164 = por %p162, %p163
      %p165 = scmp.ne.s32.totalorder %s157, %s160
      %p166 = scmp.eq.s32.totalorder %s27, 0
      %p167 = por %p165, %p166
      %p168 = scmp.ne.s32.totalorder %s157, %s160
      %p169 = scmp.eq.s32.totalorder %s32, 1
      %p170 = por %p168, %p169
      %p171 = scmp.ne.s32.totalorder %s160, %s161
      %p172 = scmp.eq.s32.totalorder %s32, 0
      %p173 = por %p171, %p172
      %p174 = scmp.ne.s32.totalorder %s160, %s161
      %p175 = scmp.eq.s32.totalorder %s33, 1
      %p176 = por %p174, %p175
      %p178 = scmp.ne.s32.totalorder %s161, %s177
      %p179 = scmp.eq.s32.totalorder %s33, 0
      %p180 = por %p178, %p179
      %s181 = ssub.s32 %s27, %s34
      %p182 = scmp.eq.s32.totalorder %s181, 0
      %s184 = sadd.s32 %s183, 1
      %s185 = scalar_select %p182, %s183, %s184
      %p188 = pneg %p182
      %p189 = scmp.eq.s32.totalorder %s27, 1
      %p190 = por %p188, %p189
      %p191 = scmp.ne.s32.totalorder %s183, %s186
      %p192 = scmp.eq.s32.totalorder %s27, 0
      %p193 = por %p191, %p192
      %p194 = scmp.ne.s32.totalorder %s183, %s186
      %p195 = scmp.eq.s32.totalorder %s32, 1
      %p196 = por %p194, %p195
      %p197 = scmp.ne.s32.totalorder %s186, %s187
      %p198 = scmp.eq.s32.totalorder %s32, 0
      %p199 = por %p197, %p198
      %p200 = scmp.ne.s32.totalorder %s186, %s187
      %p201 = scmp.eq.s32.totalorder %s33, 1
      %p202 = por %p200, %p201
      %p204 = scmp.ne.s32.totalorder %s187, %s203
      %p205 = scmp.eq.s32.totalorder %s33, 0
      %p206 = por %p204, %p205
      %s207 = ssub.s32 %s27, %s34
      %p208 = scmp.eq.s32.totalorder %s207, 0
      %s210 = sadd.s32 %s209, 1
      %s211 = scalar_select %p208, %s209, %s210
      %p214 = pneg %p208
      %p215 = scmp.eq.s32.totalorder %s27, 1
      %p216 = por %p214, %p215
      %p217 = scmp.ne.s32.totalorder %s209, %s212
      %p218 = scmp.eq.s32.totalorder %s27, 0
      %p219 = por %p217, %p218
      %p220 = scmp.ne.s32.totalorder %s209, %s212
      %p221 = scmp.eq.s32.totalorder %s32, 1
      %p222 = por %p220, %p221
      %p223 = scmp.ne.s32.totalorder %s212, %s213
      %p224 = scmp.eq.s32.totalorder %s32, 0
      %p225 = por %p223, %p224
      %p226 = scmp.ne.s32.totalorder %s212, %s213
      %p227 = scmp.eq.s32.totalorder %s33, 1
      %p228 = por %p226, %p227
      %p230 = scmp.ne.s32.totalorder %s213, %s229
      %p231 = scmp.eq.s32.totalorder %s33, 0
      %p232 = por %p230, %p231
      %s233 = ssub.s32 %s27, %s34
      %p234 = scmp.eq.s32.totalorder %s233, 0
      %s236 = sadd.s32 %s235, 1
      %s237 = scalar_select %p234, %s235, %s236
      %p240 = pneg %p234
      %p241 = scmp.eq.s32.totalorder %s27, 1
      %p242 = por %p240, %p241
      %p243 = scmp.ne.s32.totalorder %s235, %s238
      %p244 = scmp.eq.s32.totalorder %s27, 0
      %p245 = por %p243, %p244
      %p246 = scmp.ne.s32.totalorder %s235, %s238
      %p247 = scmp.eq.s32.totalorder %s32, 1
      %p248 = por %p246, %p247
      %p249 = scmp.ne.s32.totalorder %s238, %s239
      %p250 = scmp.eq.s32.totalorder %s32, 0
      %p251 = por %p249, %p250
      %p252 = scmp.ne.s32.totalorder %s238, %s239
      %p253 = scmp.eq.s32.totalorder %s33, 1
      %p254 = por %p252, %p253
      %p256 = scmp.ne.s32.totalorder %s239, %s255
      %p257 = scmp.eq.s32.totalorder %s33, 0
      %p258 = por %p256, %p257
      %s259 = ssub.s32 %s27, %s34
      %p260 = scmp.eq.s32.totalorder %s259, 0
      %s262 = sadd.s32 %s261, 1
      %s263 = scalar_select %p260, %s261, %s262
      %p266 = pneg %p260
      %p267 = scmp.eq.s32.totalorder %s27, 1
      %p268 = por %p266, %p267
      %p269 = scmp.ne.s32.totalorder %s261, %s264
      %p270 = scmp.eq.s32.totalorder %s27, 0
      %p271 = por %p269, %p270
      %p272 = scmp.ne.s32.totalorder %s261, %s264
      %p273 = scmp.eq.s32.totalorder %s32, 1
      %p274 = por %p272, %p273
      %p275 = scmp.ne.s32.totalorder %s264, %s265
      %p276 = scmp.eq.s32.totalorder %s32, 0
      %p277 = por %p275, %p276
      %p278 = scmp.ne.s32.totalorder %s264, %s265
      %p279 = scmp.eq.s32.totalorder %s33, 1
      %p280 = por %p278, %p279
      %p282 = scmp.ne.s32.totalorder %s265, %s281
      %p283 = scmp.eq.s32.totalorder %s33, 0
      %p284 = por %p282, %p283
      %s285 = ssub.s32 %s27, %s34
      %p286 = scmp.eq.s32.totalorder %s285, 0
      %s288 = sadd.s32 %s287, 1
      %s289 = scalar_select %p286, %s287, %s288
      %p292 = pneg %p286
      %p293 = scmp.eq.s32.totalorder %s27, 1
      %p294 = por %p292, %p293
      %p295 = scmp.ne.s32.totalorder %s287, %s290
      %p296 = scmp.eq.s32.totalorder %s27, 0
      %p297 = por %p295, %p296
      %p298 = scmp.ne.s32.totalorder %s287, %s290
      %p299 = scmp.eq.s32.totalorder %s32, 1
      %p300 = por %p298, %p299
      %p301 = scmp.ne.s32.totalorder %s290, %s291
      %p302 = scmp.eq.s32.totalorder %s32, 0
      %p303 = por %p301, %p302
      %p304 = scmp.ne.s32.totalorder %s290, %s291
      %p305 = scmp.eq.s32.totalorder %s33, 1
      %p306 = por %p304, %p305
      %p308 = scmp.ne.s32.totalorder %s291, %s307
      %p309 = scmp.eq.s32.totalorder %s33, 0
      %p310 = por %p308, %p309
      %s311 = ssub.s32 %s27, %s34
      %p312 = scmp.eq.s32.totalorder %s311, 0
      %s314 = sadd.s32 %s313, 1
      %s315 = scalar_select %p312, %s313, %s314
      %p318 = pneg %p312
      %p319 = scmp.eq.s32.totalorder %s27, 1
      %p320 = por %p318, %p319
      %p321 = scmp.ne.s32.totalorder %s313, %s316
      %p322 = scmp.eq.s32.totalorder %s27, 0
      %p323 = por %p321, %p322
      %p324 = scmp.ne.s32.totalorder %s313, %s316
      %p325 = scmp.eq.s32.totalorder %s32, 1
      %p326 = por %p324, %p325
      %p327 = scmp.ne.s32.totalorder %s316, %s317
      %p328 = scmp.eq.s32.totalorder %s32, 0
      %p329 = por %p327, %p328
      %p330 = scmp.ne.s32.totalorder %s316, %s317
      %p331 = scmp.eq.s32.totalorder %s33, 1
      %p332 = por %p330, %p331
      %p334 = scmp.ne.s32.totalorder %s317, %s333
      %p335 = scmp.eq.s32.totalorder %s33, 0
      %p336 = por %p334, %p335
      %s337 = ssub.s32 %s27, %s34
      %p338 = scmp.eq.s32.totalorder %s337, 0
      %s340 = sadd.s32 %s339, 1
      %s341 = scalar_select %p338, %s339, %s340
      %p344 = pneg %p338
      %p345 = scmp.eq.s32.totalorder %s27, 1
      %p346 = por %p344, %p345
      %p347 = scmp.ne.s32.totalorder %s339, %s342
      %p348 = scmp.eq.s32.totalorder %s27, 0
      %p349 = por %p347, %p348
      %p350 = scmp.ne.s32.totalorder %s339, %s342
      %p351 = scmp.eq.s32.totalorder %s32, 1
      %p352 = por %p350, %p351
      %p353 = scmp.ne.s32.totalorder %s342, %s343
      %p354 = scmp.eq.s32.totalorder %s32, 0
      %p355 = por %p353, %p354
      %p356 = scmp.ne.s32.totalorder %s342, %s343
      %p357 = scmp.eq.s32.totalorder %s33, 1
      %p358 = por %p356, %p357
      %p360 = scmp.ne.s32.totalorder %s343, %s359
      %p361 = scmp.eq.s32.totalorder %s33, 0
      %p362 = por %p360, %p361
      %s363 = ssub.s32 %s27, %s34
      %p364 = scmp.eq.s32.totalorder %s363, 0
      %s366 = sadd.s32 %s365, 1
      %s367 = scalar_select %p364, %s365, %s366
      %p370 = pneg %p364
      %p371 = scmp.eq.s32.totalorder %s27, 1
      %p372 = por %p370, %p371
      %p373 = scmp.ne.s32.totalorder %s365, %s368
      %p374 = scmp.eq.s32.totalorder %s27, 0
      %p375 = por %p373, %p374
      %p376 = scmp.ne.s32.totalorder %s365, %s368
      %p377 = scmp.eq.s32.totalorder %s32, 1
      %p378 = por %p376, %p377
      %p379 = scmp.ne.s32.totalorder %s368, %s369
      %p380 = scmp.eq.s32.totalorder %s32, 0
      %p381 = por %p379, %p380
      %p382 = scmp.ne.s32.totalorder %s368, %s369
      %p383 = scmp.eq.s32.totalorder %s33, 1
      %p384 = por %p382, %p383
      %p386 = scmp.ne.s32.totalorder %s369, %s385
      %p387 = scmp.eq.s32.totalorder %s33, 0
      %p388 = por %p386, %p387
      %s389 = ssub.s32 %s27, %s34
      %p390 = scmp.eq.s32.totalorder %s389, 0
      %s392 = sadd.s32 %s391, 1
      %s393 = scalar_select %p390, %s391, %s392
      %p396 = pneg %p390
      %p397 = scmp.eq.s32.totalorder %s27, 1
      %p398 = por %p396, %p397
      %p399 = scmp.ne.s32.totalorder %s391, %s394
      %p400 = scmp.eq.s32.totalorder %s27, 0
      %p401 = por %p399, %p400
      %p402 = scmp.ne.s32.totalorder %s391, %s394
      %p403 = scmp.eq.s32.totalorder %s32, 1
      %p404 = por %p402, %p403
      %p405 = scmp.ne.s32.totalorder %s394, %s395
      %p406 = scmp.eq.s32.totalorder %s32, 0
      %p407 = por %p405, %p406
      %p408 = scmp.ne.s32.totalorder %s394, %s395
      %p409 = scmp.eq.s32.totalorder %s33, 1
      %p410 = por %p408, %p409
      %p412 = scmp.ne.s32.totalorder %s395, %s411
      %p413 = scmp.eq.s32.totalorder %s33, 0
      %p414 = por %p412, %p413
      %s415 = ssub.s32 %s27, %s34
      %p416 = scmp.eq.s32.totalorder %s415, 0
      %s418 = sadd.s32 %s417, 1
      %s419 = scalar_select %p416, %s417, %s418
      %p422 = pneg %p416
      %p423 = scmp.eq.s32.totalorder %s27, 1
      %p424 = por %p422, %p423
      %p425 = scmp.ne.s32.totalorder %s417, %s420
      %p426 = scmp.eq.s32.totalorder %s27, 0
      %p427 = por %p425, %p426
      %p428 = scmp.ne.s32.totalorder %s417, %s420
      %p429 = scmp.eq.s32.totalorder %s32, 1
      %p430 = por %p428, %p429
      %p431 = scmp.ne.s32.totalorder %s420, %s421
      %p432 = scmp.eq.s32.totalorder %s32, 0
      %p433 = por %p431, %p432
      %p434 = scmp.ne.s32.totalorder %s420, %s421
      %p435 = scmp.eq.s32.totalorder %s33, 1
      %p436 = por %p434, %p435
      %p438 = scmp.ne.s32.totalorder %s421, %s437
      %p439 = scmp.eq.s32.totalorder %s33, 0
      %p440 = por %p438, %p439
      %s441 = ssub.s32 %s27, %s34
      %p442 = scmp.eq.s32.totalorder %s441, 0
      %s444 = sadd.s32 %s443, 1
      %s445 = scalar_select %p442, %s443, %s444
      %p448 = pneg %p442
      %p449 = scmp.eq.s32.totalorder %s27, 1
      %p450 = por %p448, %p449
      %p451 = scmp.ne.s32.totalorder %s443, %s446
      %p452 = scmp.eq.s32.totalorder %s27, 0
      %p453 = por %p451, %p452
      %p454 = scmp.ne.s32.totalorder %s443, %s446
      %p455 = scmp.eq.s32.totalorder %s32, 1
      %p456 = por %p454, %p455
      %p457 = scmp.ne.s32.totalorder %s446, %s447
      %p458 = scmp.eq.s32.totalorder %s32, 0
      %p459 = por %p457, %p458
      %p460 = scmp.ne.s32.totalorder %s446, %s447
      %p461 = scmp.eq.s32.totalorder %s33, 1
      %p462 = por %p460, %p461
      %p464 = scmp.ne.s32.totalorder %s447, %s463
      %p465 = scmp.eq.s32.totalorder %s33, 0
      %p466 = por %p464, %p465
      %s467 = ssub.s32 %s27, %s34
      %p468 = scmp.eq.s32.totalorder %s467, 0
      %s470 = sadd.s32 %s469, 1
      %s471 = scalar_select %p468, %s469, %s470
      %p474 = pneg %p468
      %p475 = scmp.eq.s32.totalorder %s27, 1
      %p476 = por %p474, %p475
      %p477 = scmp.ne.s32.totalorder %s469, %s472
      %p478 = scmp.eq.s32.totalorder %s27, 0
      %p479 = por %p477, %p478
      %p480 = scmp.ne.s32.totalorder %s469, %s472
      %p481 = scmp.eq.s32.totalorder %s32, 1
      %p482 = por %p480, %p481
      %p483 = scmp.ne.s32.totalorder %s472, %s473
      %p484 = scmp.eq.s32.totalorder %s32, 0
      %p485 = por %p483, %p484
      %p486 = scmp.ne.s32.totalorder %s472, %s473
      %p487 = scmp.eq.s32.totalorder %s33, 1
      %p488 = por %p486, %p487
      %p490 = scmp.ne.s32.totalorder %s473, %s489
      %p491 = scmp.eq.s32.totalorder %s33, 0
      %p492 = por %p490, %p491
      %s494 = sadd.s32 %s493, 1
      %p497 = scmp.eq.s32.totalorder %s27, 1
      %p498 = scmp.ne.s32.totalorder %s493, %s495
      %p499 = scmp.eq.s32.totalorder %s27, 0
      %p500 = por %p498, %p499
      %p501 = scmp.ne.s32.totalorder %s493, %s495
      %p502 = scmp.eq.s32.totalorder %s32, 1
      %p503 = por %p501, %p502
      %p504 = scmp.ne.s32.totalorder %s495, %s496
      %p505 = scmp.eq.s32.totalorder %s32, 0
      %p506 = por %p504, %p505
      %p507 = scmp.ne.s32.totalorder %s495, %s496
      %p508 = scmp.eq.s32.totalorder %s33, 1
      %p509 = por %p507, %p508
      %p511 = scmp.ne.s32.totalorder %s496, %s510
      %p512 = scmp.eq.s32.totalorder %s33, 0
      %p513 = por %p511, %p512
      %p514 = scmp.le.s32.totalorder 1, %s27
      %p515 = scmp.lt.s32.totalorder %s27, 3
      %p516 = pnand %p514, %p515
      %p517 = pneg %p516
      // Predicated region
      $region9: #{tpu_custom_call.1} parent=5 // pred_check
        _
      $region10: #{tpu_custom_call.1} parent=5 // pred_check_branch
        %519 = sbr.rel (%p516) target = $region12
      $region11: #{tpu_custom_call.1} parent=5 // pred_region
        %s520 = ssub.s32 %s27, 1
        // Predicated region
        $region13: #{tpu_custom_call.1} parent=11 // pred_check
          %p521 = pneg %p48
        $region14: #{tpu_custom_call.1} parent=11 // pred_check_branch
          %523 = sbr.rel (%p521) target = $region16
        $region15: #{tpu_custom_call.1} parent=11 // pred_region
          %s525 = ssub.s32 256, 256
          %526 = vsyncadd [#allocation4], %s525
          %s527 = sshll.u32 [#allocation3], 4
          %s528 = int_to_ptr.vmem [resolvable:$true] %s527
          %533 = dma.hbm_to_vmem [thread:$0]  %s0, 256, %s528, [#allocation4], 128, 128, 8
        $region16: #{tpu_custom_call.1} parent=11 // pred_fallthru
          _
        // Predicated region
        $region17: #{tpu_custom_call.1} parent=11 // pred_check
          %p534 = pneg %p69
        $region18: #{tpu_custom_call.1} parent=11 // pred_check_branch
          %536 = sbr.rel (%p534) target = $region20
        $region19: #{tpu_custom_call.1} parent=11 // pred_region
          %s538 = ssub.s32 32, 32
          %539 = vsyncadd [#allocation7], %s538
          %s540 = sshll.u32 [#allocation6], 4
          %s541 = int_to_ptr.vmem [resolvable:$true] %s540
          %546 = dma.hbm_to_vmem [thread:$0]  %s1, 32, %s541, [#allocation7], 16, 16, 1
        $region20: #{tpu_custom_call.1} parent=11 // pred_fallthru
          _
      $region12: #{tpu_custom_call.1} parent=5 // pred_fallthru
        _
      %p547 = scmp.lt.s32.totalorder %s27, 2
      // Predicated region
      $region21: #{tpu_custom_call.1} parent=5 // pred_check
        %p548 = pneg %p547
      $region22: #{tpu_custom_call.1} parent=5 // pred_check_branch
        %550 = sbr.rel (%p548) target = $region24
      $region23: #{tpu_custom_call.1} parent=5 // pred_region
        // Predicated region
        $region25: #{tpu_custom_call.1} parent=23 // pred_check
          %p551 = pneg %p89
        $region26: #{tpu_custom_call.1} parent=23 // pred_check_branch
          %553 = sbr.rel (%p551) target = $region28
        $region27: #{tpu_custom_call.1} parent=23 // pred_region
          %p554 = scmp.lt.s32.totalorder %s27, 1
          %s555 = scalar_select %p554, %s27, 1
          %s556 = smul.addr %s555, 4
          %s557 = smul.addr %s556, 8
          %s558 = scalar_lea.vmem %s2, %s557
        $region28: #{tpu_custom_call.1} parent=23 // pred_fallthru
          _
        // Predicated region
        $region29: #{tpu_custom_call.1} parent=23 // pred_check
          %p559 = pneg %p115
        $region30: #{tpu_custom_call.1} parent=23 // pred_check_branch
          %561 = sbr.rel (%p559) target = $region32
        $region31: #{tpu_custom_call.1} parent=23 // pred_region
          %p562 = scmp.lt.s32.totalorder %s27, 1
          %s563 = scalar_select %p562, %s27, 1
          %s564 = scalar_lea.vmem %s3, %s563
        $region32: #{tpu_custom_call.1} parent=23 // pred_fallthru
          _
        // Predicated region
        $region33: #{tpu_custom_call.1} parent=23 // pred_check
          %p565 = pneg %p141
        $region34: #{tpu_custom_call.1} parent=23 // pred_check_branch
          %567 = sbr.rel (%p565) target = $region36
        $region35: #{tpu_custom_call.1} parent=23 // pred_region
          %p568 = scmp.lt.s32.totalorder %s27, 1
          %s569 = scalar_select %p568, %s27, 1
          %s570 = smul.addr %s569, 4
          %s571 = smul.addr %s570, 8
          %s572 = scalar_lea.vmem %s4, %s571
        $region36: #{tpu_custom_call.1} parent=23 // pred_fallthru
          _
        // Predicated region
        $region37: #{tpu_custom_call.1} parent=23 // pred_check
          %p573 = pneg %p167
        $region38: #{tpu_custom_call.1} parent=23 // pred_check_branch
          %575 = sbr.rel (%p573) target = $region40
        $region39: #{tpu_custom_call.1} parent=23 // pred_region
          %s576 = sand.u32 %s27, 1
          %s577 = scalar_lea.sflag [#allocation4], %s576
          %s578 = sand.u32 %s157, 1
          %s579 = scalar_lea.vmem [#allocation8], %s578
          %s581 = ssub.s32 16, 16
          %582 = vsyncadd %s577, %s581
          %s583 = smul.addr %s27, 16
          %s584 = scalar_lea.hbm %s5, %s583
          %s586 = sshll.u32 %s579, 4
          %s587 = int_to_ptr.vmem [resolvable:$true] %s586
          %589 = dma.hbm_to_vmem [thread:$0]  %s584, 16, %s587, %s577
        $region40: #{tpu_custom_call.1} parent=23 // pred_fallthru
          _
        // Predicated region
        $region41: #{tpu_custom_call.1} parent=23 // pred_check
          %p590 = pneg %p193
        $region42: #{tpu_custom_call.1} parent=23 // pred_check_branch
          %592 = sbr.rel (%p590) target = $region44
        $region43: #{tpu_custom_call.1} parent=23 // pred_region
          %p593 = scmp.lt.s32.totalorder %s27, 1
          %s594 = scalar_select %p593, %s27, 1
          %s595 = smul.addr %s594, 4
          %s596 = smul.addr %s595, 8
          %s597 = scalar_lea.vmem %s6, %s596
        $region44: #{tpu_custom_call.1} parent=23 // pred_fallthru
          _
        // Predicated region
        $region45: #{tpu_custom_call.1} parent=23 // pred_check
          %p598 = pneg %p219
        $region46: #{tpu_custom_call.1} parent=23 // pred_check_branch
          %600 = sbr.rel (%p598) target = $region48
        $region47: #{tpu_custom_call.1} parent=23 // pred_region
          %s601 = sand.u32 %s27, 1
          %s602 = scalar_lea.sflag [#allocation4], %s601
          %s603 = sand.u32 %s209, 1
          %s604 = scalar_lea.vmem [#allocation9], %s603
          %s606 = ssub.s32 16, 16
          %607 = vsyncadd %s602, %s606
          %s608 = smul.addr %s27, 16
          %s609 = scalar_lea.hbm %s7, %s608
          %s611 = sshll.u32 %s604, 4
          %s612 = int_to_ptr.vmem [resolvable:$true] %s611
          %614 = dma.hbm_to_vmem [thread:$0]  %s609, 16, %s612, %s602
        $region48: #{tpu_custom_call.1} parent=23 // pred_fallthru
          _
        // Predicated region
        $region49: #{tpu_custom_call.1} parent=23 // pred_check
          %p615 = pneg %p245
        $region50: #{tpu_custom_call.1} parent=23 // pred_check_branch
          %617 = sbr.rel (%p615) target = $region52
        $region51: #{tpu_custom_call.1} parent=23 // pred_region
          %s618 = sand.u32 %s27, 1
          %s619 = scalar_lea.sflag [#allocation4], %s618
          %s620 = sand.u32 %s235, 1
          %s621 = smul.addr %s620, 32
          %s622 = scalar_lea.vmem [#allocation10], %s621
          %s624 = ssub.s32 512, 512
          %625 = vsyncadd %s619, %s624
          %s626 = smul.addr %s27, 4
          %s627 = smul.addr %s626, 128
          %s628 = scalar_lea.hbm %s8, %s627
          %s629 = sshll.u32 %s622, 4
          %s630 = int_to_ptr.vmem [resolvable:$true] %s629
          %635 = dma.hbm_to_vmem [thread:$0]  %s628, 512, %s630, %s619, 128, 128, 8
        $region52: #{tpu_custom_call.1} parent=23 // pred_fallthru
          _
        // Predicated region
        $region53: #{tpu_custom_call.1} parent=23 // pred_check
          %p636 = pneg %p271
        $region54: #{tpu_custom_call.1} parent=23 // pred_check_branch
          %638 = sbr.rel (%p636) target = $region56
        $region55: #{tpu_custom_call.1} parent=23 // pred_region
          %s639 = sand.u32 %s27, 1
          %s640 = scalar_lea.sflag [#allocation4], %s639
          %s641 = sand.u32 %s261, 1
          %s642 = scalar_lea.vmem [#allocation11], %s641
          %s644 = ssub.s32 16, 16
          %645 = vsyncadd %s640, %s644
          %s646 = smul.addr %s27, 16
          %s647 = scalar_lea.hbm %s9, %s646
          %s649 = sshll.u32 %s642, 4
          %s650 = int_to_ptr.vmem [resolvable:$true] %s649
          %652 = dma.hbm_to_vmem [thread:$0]  %s647, 16, %s650, %s640
        $region56: #{tpu_custom_call.1} parent=23 // pred_fallthru
          _
        // Predicated region
        $region57: #{tpu_custom_call.1} parent=23 // pred_check
          %p653 = pneg %p297
        $region58: #{tpu_custom_call.1} parent=23 // pred_check_branch
          %655 = sbr.rel (%p653) target = $region60
        $region59: #{tpu_custom_call.1} parent=23 // pred_region
          %s656 = sand.u32 %s27, 1
          %s657 = scalar_lea.sflag [#allocation4], %s656
          %s658 = sand.u32 %s287, 1
          %s659 = smul.addr %s658, 32
          %s660 = scalar_lea.vmem [#allocation12], %s659
          %s662 = ssub.s32 512, 512
          %663 = vsyncadd %s657, %s662
          %s664 = smul.addr %s27, 4
          %s665 = smul.addr %s664, 128
          %s666 = scalar_lea.hbm %s10, %s665
          %s667 = sshll.u32 %s660, 4
          %s668 = int_to_ptr.vmem [resolvable:$true] %s667
          %673 = dma.hbm_to_vmem [thread:$0]  %s666, 512, %s668, %s657, 128, 128, 8
        $region60: #{tpu_custom_call.1} parent=23 // pred_fallthru
          _
        // Predicated region
        $region61: #{tpu_custom_call.1} parent=23 // pred_check
          %p674 = pneg %p323
        $region62: #{tpu_custom_call.1} parent=23 // pred_check_branch
          %676 = sbr.rel (%p674) target = $region64
        $region63: #{tpu_custom_call.1} parent=23 // pred_region
          %s677 = sand.u32 %s27, 1
          %s678 = scalar_lea.sflag [#allocation4], %s677
          %s679 = sand.u32 %s313, 1
          %s680 = scalar_lea.vmem [#allocation13], %s679
          %s682 = ssub.s32 16, 16
          %683 = vsyncadd %s678, %s682
          %s684 = smul.addr %s27, 16
          %s685 = scalar_lea.hbm %s11, %s684
          %s687 = sshll.u32 %s680, 4
          %s688 = int_to_ptr.vmem [resolvable:$true] %s687
          %690 = dma.hbm_to_vmem [thread:$0]  %s685, 16, %s688, %s678
        $region64: #{tpu_custom_call.1} parent=23 // pred_fallthru
          _
        // Predicated region
        $region65: #{tpu_custom_call.1} parent=23 // pred_check
          %p691 = pneg %p349
        $region66: #{tpu_custom_call.1} parent=23 // pred_check_branch
          %693 = sbr.rel (%p691) target = $region68
        $region67: #{tpu_custom_call.1} parent=23 // pred_region
          %p694 = scmp.lt.s32.totalorder %s27, 1
          %s695 = scalar_select %p694, %s27, 1
          %s696 = smul.addr %s695, 8
          %s697 = smul.addr %s696, 8
          %s698 = scalar_lea.vmem %s12, %s697
        $region68: #{tpu_custom_call.1} parent=23 // pred_fallthru
          _
        // Predicated region
        $region69: #{tpu_custom_call.1} parent=23 // pred_check
          %p699 = pneg %p375
        $region70: #{tpu_custom_call.1} parent=23 // pred_check_branch
          %701 = sbr.rel (%p699) target = $region72
        $region71: #{tpu_custom_call.1} parent=23 // pred_region
          %p702 = scmp.lt.s32.totalorder %s27, 1
          %s703 = scalar_select %p702, %s27, 1
          %s704 = scalar_lea.vmem %s13, %s703
        $region72: #{tpu_custom_call.1} parent=23 // pred_fallthru
          _
        // Predicated region
        $region73: #{tpu_custom_call.1} parent=23 // pred_check
          %p705 = pneg %p401
        $region74: #{tpu_custom_call.1} parent=23 // pred_check_branch
          %707 = sbr.rel (%p705) target = $region76
        $region75: #{tpu_custom_call.1} parent=23 // pred_region
          %p708 = scmp.lt.s32.totalorder %s27, 1
          %s709 = scalar_select %p708, %s27, 1
          %s710 = smul.addr %s709, 8
          %s711 = scalar_lea.vmem %s14, %s710
        $region76: #{tpu_custom_call.1} parent=23 // pred_fallthru
          _
        // Predicated region
        $region77: #{tpu_custom_call.1} parent=23 // pred_check
          %p712 = pneg %p427
        $region78: #{tpu_custom_call.1} parent=23 // pred_check_branch
          %714 = sbr.rel (%p712) target = $region80
        $region79: #{tpu_custom_call.1} parent=23 // pred_region
          %s715 = sand.u32 %s27, 1
          %s716 = scalar_lea.sflag [#allocation4], %s715
          %s717 = sand.u32 %s417, 1
          %s718 = smul.addr %s717, 8
          %s719 = scalar_lea.vmem [#allocation14], %s718
          %s721 = ssub.s32 128, 128
          %722 = vsyncadd %s716, %s721
          %s723 = smul.addr %s27, 128
          %s724 = scalar_lea.hbm %s15, %s723
          %s726 = sshll.u32 %s719, 4
          %s727 = int_to_ptr.vmem [resolvable:$true] %s726
          %729 = dma.hbm_to_vmem [thread:$0]  %s724, 128, %s727, %s716
        $region80: #{tpu_custom_call.1} parent=23 // pred_fallthru
          _
        // Predicated region
        $region81: #{tpu_custom_call.1} parent=23 // pred_check
          %p730 = pneg %p453
        $region82: #{tpu_custom_call.1} parent=23 // pred_check_branch
          %732 = sbr.rel (%p730) target = $region84
        $region83: #{tpu_custom_call.1} parent=23 // pred_region
          %s733 = sand.u32 %s27, 1
          %s734 = scalar_lea.sflag [#allocation4], %s733
          %s735 = sand.u32 %s443, 1
          %s736 = smul.addr %s735, 8
          %s737 = scalar_lea.vmem [#allocation15], %s736
          %s739 = ssub.s32 128, 128
          %740 = vsyncadd %s734, %s739
          %s741 = smul.addr %s27, 128
          %s742 = scalar_lea.hbm %s16, %s741
          %s744 = sshll.u32 %s737, 4
          %s745 = int_to_ptr.vmem [resolvable:$true] %s744
          %747 = dma.hbm_to_vmem [thread:$0]  %s742, 128, %s745, %s734
        $region84: #{tpu_custom_call.1} parent=23 // pred_fallthru
          _
        // Predicated region
        $region85: #{tpu_custom_call.1} parent=23 // pred_check
          %p748 = pneg %p479
        $region86: #{tpu_custom_call.1} parent=23 // pred_check_branch
          %750 = sbr.rel (%p748) target = $region88
        $region87: #{tpu_custom_call.1} parent=23 // pred_region
          %s751 = sand.u32 %s27, 1
          %s752 = scalar_lea.sflag [#allocation4], %s751
          %s753 = sand.u32 %s469, 1
          %s754 = smul.addr %s753, 8
          %s755 = scalar_lea.vmem [#allocation16], %s754
          %s757 = ssub.s32 128, 128
          %758 = vsyncadd %s752, %s757
          %s759 = smul.addr %s27, 128
          %s760 = scalar_lea.hbm %s17, %s759
          %s762 = sshll.u32 %s755, 4
          %s763 = int_to_ptr.vmem [resolvable:$true] %s762
          %765 = dma.hbm_to_vmem [thread:$0]  %s760, 128, %s763, %s752
        $region88: #{tpu_custom_call.1} parent=23 // pred_fallthru
          _
      $region24: #{tpu_custom_call.1} parent=5 // pred_fallthru
        _
      %p766 = scmp.le.s32.totalorder 1, %s27
      %p767 = scmp.lt.s32.totalorder %s27, 3
      %p768 = pnand %p766, %p767
      %p769 = pneg %p768
      // Predicated region
      $region89: #{tpu_custom_call.1} parent=5 // pred_check
        _
      $region90: #{tpu_custom_call.1} parent=5 // pred_check_branch
        %771 = sbr.rel (%p768) target = $region92
      $region91: #{tpu_custom_call.1} parent=5 // pred_region
        %s772 = ssub.s32 %s27, 1
        // Predicated region
        $region93: #{tpu_custom_call.1} parent=91 // pred_check
          %p773 = pneg %p48
        $region94: #{tpu_custom_call.1} parent=91 // pred_check_branch
          %775 = sbr.rel (%p773) target = $region96
        $region95: #{tpu_custom_call.1} parent=91 // pred_region
          %776 = dma.done [#allocation4], 256
        $region96: #{tpu_custom_call.1} parent=91 // pred_fallthru
          _
        // Predicated region
        $region97: #{tpu_custom_call.1} parent=91 // pred_check
          %p777 = pneg %p69
        $region98: #{tpu_custom_call.1} parent=91 // pred_check_branch
          %779 = sbr.rel (%p777) target = $region100
        $region99: #{tpu_custom_call.1} parent=91 // pred_region
          %780 = dma.done [#allocation7], 32
        $region100: #{tpu_custom_call.1} parent=91 // pred_fallthru
          _
        %s781 = sand.u32 %s32, 1
        %s782 = scalar_lea.sflag [#allocation4], %s781
        %s783 = sand.u32 %s160, 1
        %s784 = scalar_lea.vmem [#allocation8], %s783
        // Predicated region
        $region101: #{tpu_custom_call.1} parent=91 // pred_check
          %p785 = pneg %p173
        $region102: #{tpu_custom_call.1} parent=91 // pred_check_branch
          %787 = sbr.rel (%p785) target = $region104
        $region103: #{tpu_custom_call.1} parent=91 // pred_region
          %788 = dma.done %s782, 16
        $region104: #{tpu_custom_call.1} parent=91 // pred_fallthru
          _
        %s789 = sand.u32 %s32, 1
        %s790 = scalar_lea.sflag [#allocation4], %s789
        %s791 = sand.u32 %s212, 1
        %s792 = scalar_lea.vmem [#allocation9], %s791
        // Predicated region
        $region105: #{tpu_custom_call.1} parent=91 // pred_check
          %p793 = pneg %p225
        $region106: #{tpu_custom_call.1} parent=91 // pred_check_branch
          %795 = sbr.rel (%p793) target = $region108
        $region107: #{tpu_custom_call.1} parent=91 // pred_region
          %796 = dma.done %s790, 16
        $region108: #{tpu_custom_call.1} parent=91 // pred_fallthru
          _
        %s797 = sand.u32 %s32, 1
        %s798 = scalar_lea.sflag [#allocation4], %s797
        %s799 = sand.u32 %s238, 1
        %s800 = smul.addr %s799, 32
        %s801 = scalar_lea.vmem [#allocation10], %s800
        // Predicated region
        $region109: #{tpu_custom_call.1} parent=91 // pred_check
          %p802 = pneg %p251
        $region110: #{tpu_custom_call.1} parent=91 // pred_check_branch
          %804 = sbr.rel (%p802) target = $region112
        $region111: #{tpu_custom_call.1} parent=91 // pred_region
          %805 = dma.done %s798, 512
        $region112: #{tpu_custom_call.1} parent=91 // pred_fallthru
          _
        %s806 = sand.u32 %s32, 1
        %s807 = scalar_lea.sflag [#allocation4], %s806
        %s808 = sand.u32 %s264, 1
        %s809 = scalar_lea.vmem [#allocation11], %s808
        // Predicated region
        $region113: #{tpu_custom_call.1} parent=91 // pred_check
          %p810 = pneg %p277
        $region114: #{tpu_custom_call.1} parent=91 // pred_check_branch
          %812 = sbr.rel (%p810) target = $region116
        $region115: #{tpu_custom_call.1} parent=91 // pred_region
          %813 = dma.done %s807, 16
        $region116: #{tpu_custom_call.1} parent=91 // pred_fallthru
          _
        %s814 = sand.u32 %s32, 1
        %s815 = scalar_lea.sflag [#allocation4], %s814
        %s816 = sand.u32 %s290, 1
        %s817 = smul.addr %s816, 32
        %s818 = scalar_lea.vmem [#allocation12], %s817
        // Predicated region
        $region117: #{tpu_custom_call.1} parent=91 // pred_check
          %p819 = pneg %p303
        $region118: #{tpu_custom_call.1} parent=91 // pred_check_branch
          %821 = sbr.rel (%p819) target = $region120
        $region119: #{tpu_custom_call.1} parent=91 // pred_region
          %822 = dma.done %s815, 512
        $region120: #{tpu_custom_call.1} parent=91 // pred_fallthru
          _
        %s823 = sand.u32 %s32, 1
        %s824 = scalar_lea.sflag [#allocation4], %s823
        %s825 = sand.u32 %s316, 1
        %s826 = scalar_lea.vmem [#allocation13], %s825
        // Predicated region
        $region121: #{tpu_custom_call.1} parent=91 // pred_check
          %p827 = pneg %p329
        $region122: #{tpu_custom_call.1} parent=91 // pred_check_branch
          %829 = sbr.rel (%p827) target = $region124
        $region123: #{tpu_custom_call.1} parent=91 // pred_region
          %830 = dma.done %s824, 16
        $region124: #{tpu_custom_call.1} parent=91 // pred_fallthru
          _
        %s831 = sand.u32 %s32, 1
        %s832 = scalar_lea.sflag [#allocation4], %s831
        %s833 = sand.u32 %s420, 1
        %s834 = smul.addr %s833, 8
        %s835 = scalar_lea.vmem [#allocation14], %s834
        // Predicated region
        $region125: #{tpu_custom_call.1} parent=91 // pred_check
          %p836 = pneg %p433
        $region126: #{tpu_custom_call.1} parent=91 // pred_check_branch
          %838 = sbr.rel (%p836) target = $region128
        $region127: #{tpu_custom_call.1} parent=91 // pred_region
          %839 = dma.done %s832, 128
        $region128: #{tpu_custom_call.1} parent=91 // pred_fallthru
          _
        %s840 = sand.u32 %s32, 1
        %s841 = scalar_lea.sflag [#allocation4], %s840
        %s842 = sand.u32 %s446, 1
        %s843 = smul.addr %s842, 8
        %s844 = scalar_lea.vmem [#allocation15], %s843
        // Predicated region
        $region129: #{tpu_custom_call.1} parent=91 // pred_check
          %p845 = pneg %p459
        $region130: #{tpu_custom_call.1} parent=91 // pred_check_branch
          %847 = sbr.rel (%p845) target = $region132
        $region131: #{tpu_custom_call.1} parent=91 // pred_region
          %848 = dma.done %s841, 128
        $region132: #{tpu_custom_call.1} parent=91 // pred_fallthru
          _
        %s849 = sand.u32 %s32, 1
        %s850 = scalar_lea.sflag [#allocation4], %s849
        %s851 = sand.u32 %s472, 1
        %s852 = smul.addr %s851, 8
        %s853 = scalar_lea.vmem [#allocation16], %s852
        // Predicated region
        $region133: #{tpu_custom_call.1} parent=91 // pred_check
          %p854 = pneg %p485
        $region134: #{tpu_custom_call.1} parent=91 // pred_check_branch
          %856 = sbr.rel (%p854) target = $region136
        $region135: #{tpu_custom_call.1} parent=91 // pred_region
          %857 = dma.done %s850, 128
        $region136: #{tpu_custom_call.1} parent=91 // pred_fallthru
          _
        %p858 = pneg %p48
        %p859 = pneg %p45
        %p860 = pneg %p69
        %p861 = pneg %p66
        %p862 = scmp.lt.s32.totalorder %s32, 1
        %s863 = scalar_select %p862, %s32, 1
        %s864 = smul.addr %s863, 4
        %s865 = smul.addr %s864, 8
        %s866 = scalar_lea.vmem %s2, %s865
        %p867 = pneg %p95
        %p868 = pneg %p92
        %p869 = scmp.lt.s32.totalorder %s32, 1
        %s870 = scalar_select %p869, %s32, 1
        %s871 = scalar_lea.vmem %s3, %s870
        %p872 = pneg %p121
        %p873 = pneg %p118
        %p874 = scmp.lt.s32.totalorder %s32, 1
        %s875 = scalar_select %p874, %s32, 1
        %s876 = smul.addr %s875, 4
        %s877 = smul.addr %s876, 8
        %s878 = scalar_lea.vmem %s4, %s877
        %p879 = pneg %p147
        %p880 = pneg %p144
        %s881 = sand.u32 %s32, 1
        %s882 = scalar_lea.sflag [#allocation4], %s881
        %s883 = sand.u32 %s160, 1
        %s884 = scalar_lea.vmem [#allocation8], %s883
        %p885 = pneg %p173
        %p886 = pneg %p170
        %p887 = scmp.lt.s32.totalorder %s32, 1
        %s888 = scalar_select %p887, %s32, 1
        %s889 = smul.addr %s888, 4
        %s890 = smul.addr %s889, 8
        %s891 = scalar_lea.vmem %s6, %s890
        %p892 = pneg %p199
        %p893 = pneg %p196
        %s894 = sand.u32 %s32, 1
        %s895 = scalar_lea.sflag [#allocation4], %s894
        %s896 = sand.u32 %s212, 1
        %s897 = scalar_lea.vmem [#allocation9], %s896
        %p898 = pneg %p225
        %p899 = pneg %p222
        %s900 = sand.u32 %s32, 1
        %s901 = scalar_lea.sflag [#allocation4], %s900
        %s902 = sand.u32 %s238, 1
        %s903 = smul.addr %s902, 32
        %s904 = scalar_lea.vmem [#allocation10], %s903
        %p905 = pneg %p251
        %p906 = pneg %p248
        %s907 = sand.u32 %s32, 1
        %s908 = scalar_lea.sflag [#allocation4], %s907
        %s909 = sand.u32 %s264, 1
        %s910 = scalar_lea.vmem [#allocation11], %s909
        %p911 = pneg %p277
        %p912 = pneg %p274
        %s913 = sand.u32 %s32, 1
        %s914 = scalar_lea.sflag [#allocation4], %s913
        %s915 = sand.u32 %s290, 1
        %s916 = smul.addr %s915, 32
        %s917 = scalar_lea.vmem [#allocation12], %s916
        %p918 = pneg %p303
        %p919 = pneg %p300
        %s920 = sand.u32 %s32, 1
        %s921 = scalar_lea.sflag [#allocation4], %s920
        %s922 = sand.u32 %s316, 1
        %s923 = scalar_lea.vmem [#allocation13], %s922
        %p924 = pneg %p329
        %p925 = pneg %p326
        %p926 = scmp.lt.s32.totalorder %s32, 1
        %s927 = scalar_select %p926, %s32, 1
        %s928 = smul.addr %s927, 8
        %s929 = smul.addr %s928, 8
        %s930 = scalar_lea.vmem %s12, %s929
        %p931 = pneg %p355
        %p932 = pneg %p352
        %p933 = scmp.lt.s32.totalorder %s32, 1
        %s934 = scalar_select %p933, %s32, 1
        %s935 = scalar_lea.vmem %s13, %s934
        %p936 = pneg %p381
        %p937 = pneg %p378
        %p938 = scmp.lt.s32.totalorder %s32, 1
        %s939 = scalar_select %p938, %s32, 1
        %s940 = smul.addr %s939, 8
        %s941 = scalar_lea.vmem %s14, %s940
        %p942 = pneg %p407
        %p943 = pneg %p404
        %s944 = sand.u32 %s32, 1
        %s945 = scalar_lea.sflag [#allocation4], %s944
        %s946 = sand.u32 %s420, 1
        %s947 = smul.addr %s946, 8
        %s948 = scalar_lea.vmem [#allocation14], %s947
        %p949 = pneg %p433
        %p950 = pneg %p430
        %s951 = sand.u32 %s32, 1
        %s952 = scalar_lea.sflag [#allocation4], %s951
        %s953 = sand.u32 %s446, 1
        %s954 = smul.addr %s953, 8
        %s955 = scalar_lea.vmem [#allocation15], %s954
        %p956 = pneg %p459
        %p957 = pneg %p456
        %s958 = sand.u32 %s32, 1
        %s959 = scalar_lea.sflag [#allocation4], %s958
        %s960 = sand.u32 %s472, 1
        %s961 = smul.addr %s960, 8
        %s962 = scalar_lea.vmem [#allocation16], %s961
        %p963 = pneg %p485
        %p964 = pneg %p482
        %p965 = pneg %p506
        %p966 = pneg %p503
        %p967 = scmp.lt.s32.totalorder %s32, 1
        %s968 = scalar_select %p967, %s32, 1
        %s969 = smul.addr %s968, 4
        %s970 = smul.addr %s969, 8
        %s971 = scalar_lea.vmem %s2, %s970
        %p972 = scmp.lt.s32.totalorder %s32, 1
        %s973 = scalar_select %p972, %s32, 1
        %s974 = scalar_lea.vmem %s3, %s973
        %p975 = scmp.lt.s32.totalorder %s32, 1
        %s976 = scalar_select %p975, %s32, 1
        %s977 = smul.addr %s976, 4
        %s978 = smul.addr %s977, 8
        %s979 = scalar_lea.vmem %s4, %s978
        %p980 = scmp.lt.s32.totalorder %s32, 1
        %s981 = scalar_select %p980, %s32, 1
        %s982 = smul.addr %s981, 4
        %s983 = smul.addr %s982, 8
        %s984 = scalar_lea.vmem %s6, %s983
        %p985 = scmp.lt.s32.totalorder %s32, 1
        %s986 = scalar_select %p985, %s32, 1
        %s987 = smul.addr %s986, 8
        %s988 = smul.addr %s987, 8
        %s989 = scalar_lea.vmem %s12, %s988
        %p990 = scmp.lt.s32.totalorder %s32, 1
        %s991 = scalar_select %p990, %s32, 1
        %s992 = scalar_lea.vmem %s13, %s991
        %p993 = scmp.lt.s32.totalorder %s32, 1
        %s994 = scalar_select %p993, %s32, 1
        %s995 = smul.addr %s994, 8
        %s996 = scalar_lea.vmem %s14, %s995
        %p997 = scmp.eq.s32.totalorder %s32, 0
        // Predicated region
        $region137: #{tpu_custom_call.1} parent=91 // pred_check
          %p998 = pneg %p997
        $region138: #{tpu_custom_call.1} parent=91 // pred_check_branch
          %1000 = sbr.rel (%p998) target = $region140
        $region139: #{tpu_custom_call.1} parent=91 // pred_region
          %v1001 = vld [vmem:[#allocation3] sm:$0xff]
          %v1002 = vld [vmem:[#allocation3 + $0x8] sm:$0xff]
          %vm1003 = vcmask 261120
          %1004 = vst.msk [vmem:[#allocation2] sm:$0xff] %vm1003, %v1001
          %1005 = vst.msk [vmem:[#allocation2 + $0x8] sm:$0xff] %vm1003, %v1002
        $region140: #{tpu_custom_call.1} parent=91 // pred_fallthru
          _
        %v1006 = vld [vmem:[#allocation2] sm:$0xff]
        %v1007 = vld [vmem:[#allocation2 + $0x8] sm:$0xff]
        %v1008 = vld [vmem:[%s971] sm:$0xff]
        %v1009 = vld [vmem:[%s971 + $0x8] sm:$0xff]
        %v1010 = vld [vmem:[%s971 + $0x10] sm:$0xff]
        %v1011 = vld [vmem:[%s971 + $0x18] sm:$0xff]
        %v1012 = vld [vmem:[%s974] sm:$0x1]
        %v1014 = vlaneseq
        %v1015 = vshrl.u32 %v1014, 7
        %v1016 = vsub.s32 0, %v1015
        %v1017 = vrot.slane %v1012, %v1016
        %vm1019 = vcmask 261120
        %v1021 = vsel %vm1019, %v1006, 0
        %v1024 = vsel %vm1019, %v1007, 0
        %1026 = vmatprep.subr.mxu0 0.0
        %1027 = vmatpush1.msra.mxu0 0.0
        %1028 = vmatprep.subr.mxu0 0.0
        %1029 = vmatpush1.msra.mxu0 0.0
        %1030 = vmatprep.subr.mxu0 0.0
        %1031 = vmatpush1.msra.mxu0 0.0
        %1032 = vmatprep.subr.mxu0 0.0
        %1033 = vmatpush1.msra.mxu0 0.0
        %1034 = vmatprep.subr.mxu0 0.0
        %1035 = vmatpush1.msra.mxu0 0.0
        %1036 = vmatprep.subr.mxu0 0.0
        %1037 = vmatpush1.msra.mxu0 0.0
        %1038 = vmatprep.subr.mxu0 0.0
        %1039 = vmatpush1.msra.mxu0 0.0
        %1040 = vmatprep.subr.mxu0 0.0
        %1041 = vmatpush1.msra.mxu0 0.0
        %1042 = vmatprep.subr.mxu0 0.0
        %1043 = vmatpush1.msra.mxu0 0.0
        %1044 = vmatprep.subr.mxu0 0.0
        %1045 = vmatpush1.msra.mxu0 0.0
        %1046 = vmatprep.subr.mxu0 0.0
        %1047 = vmatpush1.msra.mxu0 0.0
        %1048 = vmatprep.subr.mxu0 0.0
        %1049 = vmatpush1.msra.mxu0 0.0
        %1050 = vmatprep.subr.mxu0 0.0
        %1051 = vmatpush1.msra.mxu0 %v1011
        %1052 = vmatprep.subr.mxu0 0.0
        %1053 = vmatpush1.msra.mxu0 %v1010
        %1054 = vmatprep.subr.mxu0 0.0
        %1055 = vmatpush1.msra.mxu0 %v1009
        %1056 = vmatprep.subr.mxu0 0.0
        %1057 = vmatpush1.msra.mxu0 %v1008
        %1058 = vmatprep.subr.mxu0 0.0
        %1059 = vmatpush2.msra.mxu0 0.0
        %1060 = vmatprep.subr.mxu0 0.0
        %1061 = vmatpush2.msra.mxu0 0.0
        %1062 = vmatprep.subr.mxu0 0.0
        %1063 = vmatpush2.msra.mxu0 0.0
        %1064 = vmatprep.subr.mxu0 0.0
        %1065 = vmatpush2.msra.mxu0 0.0
        %1066 = vmatprep.subr.mxu0 0.0
        %1067 = vmatpush2.msra.mxu0 0.0
        %1068 = vmatprep.subr.mxu0 0.0
        %1069 = vmatpush2.msra.mxu0 0.0
        %1070 = vmatprep.subr.mxu0 0.0
        %1071 = vmatpush2.msra.mxu0 0.0
        %1072 = vmatprep.subr.mxu0 0.0
        %1073 = vmatpush2.msra.mxu0 0.0
        %1074 = vmatprep.subr.mxu0 0.0
        %1075 = vmatpush2.msra.mxu0 0.0
        %1076 = vmatprep.subr.mxu0 0.0
        %1077 = vmatpush2.msra.mxu0 0.0
        %1078 = vmatprep.subr.mxu0 0.0
        %1079 = vmatpush2.msra.mxu0 0.0
        %1080 = vmatprep.subr.mxu0 0.0
        %1081 = vmatpush2.msra.mxu0 0.0
        %1082 = vmatprep.subr.mxu0 0.0
        %1083 = vmatpush2.msra.mxu0 0.0
        %1084 = vmatprep.subr.mxu0 0.0
        %1085 = vmatpush2.msra.mxu0 0.0
        %1086 = vmatprep.subr.mxu0 0.0
        %1087 = vmatpush2.msra.mxu0 0.0
        %1088 = vmatprep.subr.mxu0 0.0
        %1089 = vmatpush2.msra.mxu0 0.0
        %1090 = vmatprep.mubr.f32.mxu0 0.0
        %1091 = vmatmul.mubr.f32.gmra.mxu0 %v1021
        %v1092 = vpop.f32.mrf.mxu0
        %v1093 = vadd.f32 %v1017, %v1092
        %v1094 = vpop.f32.mrf.mxu0
        %1095 = vmatprep.mubr.f32.mxu0 0.0
        %1096 = vmatmul.mubr.f32.gmra.mxu0 %v1024
        %v1097 = vpop.f32.mrf.mxu0
        %v1098 = vadd.f32 %v1017, %v1097
        %v1099 = vpop.f32.mrf.mxu0
        %1100 = vdwg.mxu0
        %v1101 = vld [vmem:[%s979] sm:$0xff]
        %v1102 = vld [vmem:[%s979 + $0x8] sm:$0xff]
        %v1103 = vld [vmem:[%s979 + $0x10] sm:$0xff]
        %v1104 = vld [vmem:[%s979 + $0x18] sm:$0xff]
        %v1105 = vld [vmem:[%s784] sm:$0x1]
        %v1107 = vlaneseq
        %v1108 = vshrl.u32 %v1107, 7
        %v1109 = vsub.s32 0, %v1108
        %v1110 = vrot.slane %v1105, %v1109
        %1112 = vmatprep.subr.mxu0 0.0
        %1113 = vmatpush1.msra.mxu0 0.0
        %1114 = vmatprep.subr.mxu0 0.0
        %1115 = vmatpush1.msra.mxu0 0.0
        %1116 = vmatprep.subr.mxu0 0.0
        %1117 = vmatpush1.msra.mxu0 0.0
        %1118 = vmatprep.subr.mxu0 0.0
        %1119 = vmatpush1.msra.mxu0 0.0
        %1120 = vmatprep.subr.mxu0 0.0
        %1121 = vmatpush1.msra.mxu0 0.0
        %1122 = vmatprep.subr.mxu0 0.0
        %1123 = vmatpush1.msra.mxu0 0.0
        %1124 = vmatprep.subr.mxu0 0.0
        %1125 = vmatpush1.msra.mxu0 0.0
        %1126 = vmatprep.subr.mxu0 0.0
        %1127 = vmatpush1.msra.mxu0 0.0
        %1128 = vmatprep.subr.mxu0 0.0
        %1129 = vmatpush1.msra.mxu0 0.0
        %1130 = vmatprep.subr.mxu0 0.0
        %1131 = vmatpush1.msra.mxu0 0.0
        %1132 = vmatprep.subr.mxu0 0.0
        %1133 = vmatpush1.msra.mxu0 0.0
        %1134 = vmatprep.subr.mxu0 0.0
        %1135 = vmatpush1.msra.mxu0 0.0
        %1136 = vmatprep.subr.mxu0 0.0
        %1137 = vmatpush1.msra.mxu0 %v1104
        %1138 = vmatprep.subr.mxu0 0.0
        %1139 = vmatpush1.msra.mxu0 %v1103
        %1140 = vmatprep.subr.mxu0 0.0
        %1141 = vmatpush1.msra.mxu0 %v1102
        %1142 = vmatprep.subr.mxu0 0.0
        %1143 = vmatpush1.msra.mxu0 %v1101
        %1144 = vmatprep.subr.mxu0 0.0
        %1145 = vmatpush2.msra.mxu0 0.0
        %1146 = vmatprep.subr.mxu0 0.0
        %1147 = vmatpush2.msra.mxu0 0.0
        %1148 = vmatprep.subr.mxu0 0.0
        %1149 = vmatpush2.msra.mxu0 0.0
        %1150 = vmatprep.subr.mxu0 0.0
        %1151 = vmatpush2.msra.mxu0 0.0
        %1152 = vmatprep.subr.mxu0 0.0
        %1153 = vmatpush2.msra.mxu0 0.0
        %1154 = vmatprep.subr.mxu0 0.0
        %1155 = vmatpush2.msra.mxu0 0.0
        %1156 = vmatprep.subr.mxu0 0.0
        %1157 = vmatpush2.msra.mxu0 0.0
        %1158 = vmatprep.subr.mxu0 0.0
        %1159 = vmatpush2.msra.mxu0 0.0
        %1160 = vmatprep.subr.mxu0 0.0
        %1161 = vmatpush2.msra.mxu0 0.0
        %1162 = vmatprep.subr.mxu0 0.0
        %1163 = vmatpush2.msra.mxu0 0.0
        %1164 = vmatprep.subr.mxu0 0.0
        %1165 = vmatpush2.msra.mxu0 0.0
        %1166 = vmatprep.subr.mxu0 0.0
        %1167 = vmatpush2.msra.mxu0 0.0
        %1168 = vmatprep.subr.mxu0 0.0
        %1169 = vmatpush2.msra.mxu0 0.0
        %1170 = vmatprep.subr.mxu0 0.0
        %1171 = vmatpush2.msra.mxu0 0.0
        %1172 = vmatprep.subr.mxu0 0.0
        %1173 = vmatpush2.msra.mxu0 0.0
        %1174 = vmatprep.subr.mxu0 0.0
        %1175 = vmatpush2.msra.mxu0 0.0
        %1176 = vmatprep.mubr.f32.mxu0 0.0
        %1177 = vmatmul.mubr.f32.gmra.mxu0 %v1021
        %v1178 = vpop.f32.mrf.mxu0
        %v1179 = vadd.f32 %v1110, %v1178
        %v1180 = vpop.f32.mrf.mxu0
        %1181 = vmatprep.mubr.f32.mxu0 0.0
        %1182 = vmatmul.mubr.f32.gmra.mxu0 %v1024
        %v1183 = vpop.f32.mrf.mxu0
        %v1184 = vadd.f32 %v1110, %v1183
        %v1185 = vpop.f32.mrf.mxu0
        %1186 = vdwg.mxu0
        %v1187 = vld [vmem:[%s984] sm:$0xff]
        %v1188 = vld [vmem:[%s984 + $0x8] sm:$0xff]
        %v1189 = vld [vmem:[%s984 + $0x10] sm:$0xff]
        %v1190 = vld [vmem:[%s984 + $0x18] sm:$0xff]
        %v1191 = vld [vmem:[%s792] sm:$0x1]
        %v1193 = vlaneseq
        %v1194 = vshrl.u32 %v1193, 7
        %v1195 = vsub.s32 0, %v1194
        %v1196 = vrot.slane %v1191, %v1195
        %1198 = vmatprep.subr.mxu0 0.0
        %1199 = vmatpush1.msra.mxu0 0.0
        %1200 = vmatprep.subr.mxu0 0.0
        %1201 = vmatpush1.msra.mxu0 0.0
        %1202 = vmatprep.subr.mxu0 0.0
        %1203 = vmatpush1.msra.mxu0 0.0
        %1204 = vmatprep.subr.mxu0 0.0
        %1205 = vmatpush1.msra.mxu0 0.0
        %1206 = vmatprep.subr.mxu0 0.0
        %1207 = vmatpush1.msra.mxu0 0.0
        %1208 = vmatprep.subr.mxu0 0.0
        %1209 = vmatpush1.msra.mxu0 0.0
        %1210 = vmatprep.subr.mxu0 0.0
        %1211 = vmatpush1.msra.mxu0 0.0
        %1212 = vmatprep.subr.mxu0 0.0
        %1213 = vmatpush1.msra.mxu0 0.0
        %1214 = vmatprep.subr.mxu0 0.0
        %1215 = vmatpush1.msra.mxu0 0.0
        %1216 = vmatprep.subr.mxu0 0.0
        %1217 = vmatpush1.msra.mxu0 0.0
        %1218 = vmatprep.subr.mxu0 0.0
        %1219 = vmatpush1.msra.mxu0 0.0
        %1220 = vmatprep.subr.mxu0 0.0
        %1221 = vmatpush1.msra.mxu0 0.0
        %1222 = vmatprep.subr.mxu0 0.0
        %1223 = vmatpush1.msra.mxu0 %v1190
        %1224 = vmatprep.subr.mxu0 0.0
        %1225 = vmatpush1.msra.mxu0 %v1189
        %1226 = vmatprep.subr.mxu0 0.0
        %1227 = vmatpush1.msra.mxu0 %v1188
        %1228 = vmatprep.subr.mxu0 0.0
        %1229 = vmatpush1.msra.mxu0 %v1187
        %1230 = vmatprep.subr.mxu0 0.0
        %1231 = vmatpush2.msra.mxu0 0.0
        %1232 = vmatprep.subr.mxu0 0.0
        %1233 = vmatpush2.msra.mxu0 0.0
        %1234 = vmatprep.subr.mxu0 0.0
        %1235 = vmatpush2.msra.mxu0 0.0
        %1236 = vmatprep.subr.mxu0 0.0
        %1237 = vmatpush2.msra.mxu0 0.0
        %1238 = vmatprep.subr.mxu0 0.0
        %1239 = vmatpush2.msra.mxu0 0.0
        %1240 = vmatprep.subr.mxu0 0.0
        %1241 = vmatpush2.msra.mxu0 0.0
        %1242 = vmatprep.subr.mxu0 0.0
        %1243 = vmatpush2.msra.mxu0 0.0
        %1244 = vmatprep.subr.mxu0 0.0
        %1245 = vmatpush2.msra.mxu0 0.0
        %1246 = vmatprep.subr.mxu0 0.0
        %1247 = vmatpush2.msra.mxu0 0.0
        %1248 = vmatprep.subr.mxu0 0.0
        %1249 = vmatpush2.msra.mxu0 0.0
        %1250 = vmatprep.subr.mxu0 0.0
        %1251 = vmatpush2.msra.mxu0 0.0
        %1252 = vmatprep.subr.mxu0 0.0
        %1253 = vmatpush2.msra.mxu0 0.0
        %1254 = vmatprep.subr.mxu0 0.0
        %1255 = vmatpush2.msra.mxu0 0.0
        %1256 = vmatprep.subr.mxu0 0.0
        %1257 = vmatpush2.msra.mxu0 0.0
        %1258 = vmatprep.subr.mxu0 0.0
        %1259 = vmatpush2.msra.mxu0 0.0
        %1260 = vmatprep.subr.mxu0 0.0
        %1261 = vmatpush2.msra.mxu0 0.0
        %1262 = vmatprep.mubr.f32.mxu0 0.0
        %1263 = vmatmul.mubr.f32.gmra.mxu0 %v1021
        %v1264 = vpop.f32.mrf.mxu0
        %v1265 = vadd.f32 %v1196, %v1264
        %v1266 = vpop.f32.mrf.mxu0
        %1267 = vmatprep.mubr.f32.mxu0 0.0
        %1268 = vmatmul.mubr.f32.gmra.mxu0 %v1024
        %v1269 = vpop.f32.mrf.mxu0
        %v1270 = vadd.f32 %v1196, %v1269
        %v1271 = vpop.f32.mrf.mxu0
        %1272 = vdwg.mxu0
        %v1273 = vld [vmem:[#allocation6] sm:$0x1]
        %v1274 = vld [vmem:[#allocation6 + $0x1] sm:$0x1]
        %v1275 = vmul.f32 %v1273, -1e+09
        %v1276 = vmul.f32 %v1274, -1e+09
        %v1277 = vld [vmem:[%s801] sm:$0xff]
        %v1278 = vld [vmem:[%s801 + $0x8] sm:$0xff]
        %v1279 = vld [vmem:[%s801 + $0x10] sm:$0xff]
        %v1280 = vld [vmem:[%s801 + $0x18] sm:$0xff]
        %vm1281 = vcmask 64512
        %v1283 = vsel %vm1281, %v1093, 0
        %v1286 = vsel %vm1281, %v1179, 0
        %1288 = vmatprep.subr.mxu0 0.0
        %1289 = vmatpush1.xpose.msra.mxu0 0.0
        %1290 = vmatprep.subr.mxu0 0.0
        %1291 = vmatpush1.xpose.msra.mxu0 0.0
        %1292 = vmatprep.subr.mxu0 0.0
        %1293 = vmatpush1.xpose.msra.mxu0 0.0
        %1294 = vmatprep.subr.mxu0 0.0
        %1295 = vmatpush1.xpose.msra.mxu0 0.0
        %1296 = vmatprep.subr.mxu0 0.0
        %1297 = vmatpush1.xpose.msra.mxu0 0.0
        %1298 = vmatprep.subr.mxu0 0.0
        %1299 = vmatpush1.xpose.msra.mxu0 0.0
        %1300 = vmatprep.subr.mxu0 0.0
        %1301 = vmatpush1.xpose.msra.mxu0 0.0
        %1302 = vmatprep.subr.mxu0 0.0
        %1303 = vmatpush1.xpose.msra.mxu0 0.0
        %1304 = vmatprep.subr.mxu0 0.0
        %1305 = vmatpush1.xpose.msra.mxu0 0.0
        %1306 = vmatprep.subr.mxu0 0.0
        %1307 = vmatpush1.xpose.msra.mxu0 0.0
        %1308 = vmatprep.subr.mxu0 0.0
        %1309 = vmatpush1.xpose.msra.mxu0 0.0
        %1310 = vmatprep.subr.mxu0 0.0
        %1311 = vmatpush1.xpose.msra.mxu0 0.0
        %1312 = vmatprep.subr.mxu0 0.0
        %1313 = vmatpush1.xpose.msra.mxu0 0.0
        %1314 = vmatprep.subr.mxu0 0.0
        %1315 = vmatpush1.xpose.msra.mxu0 0.0
        %1316 = vmatprep.subr.mxu0 0.0
        %1317 = vmatpush1.xpose.msra.mxu0 0.0
        %1318 = vmatprep.subr.mxu0 0.0
        %1319 = vmatpush1.xpose.msra.mxu0 %v1286
        %1320 = vmatprep.subr.mxu0 0.0
        %1321 = vmatpush2.xpose.msra.mxu0 0.0
        %1322 = vmatprep.subr.mxu0 0.0
        %1323 = vmatpush2.xpose.msra.mxu0 0.0
        %1324 = vmatprep.subr.mxu0 0.0
        %1325 = vmatpush2.xpose.msra.mxu0 0.0
        %1326 = vmatprep.subr.mxu0 0.0
        %1327 = vmatpush2.xpose.msra.mxu0 0.0
        %1328 = vmatprep.subr.mxu0 0.0
        %1329 = vmatpush2.xpose.msra.mxu0 0.0
        %1330 = vmatprep.subr.mxu0 0.0
        %1331 = vmatpush2.xpose.msra.mxu0 0.0
        %1332 = vmatprep.subr.mxu0 0.0
        %1333 = vmatpush2.xpose.msra.mxu0 0.0
        %1334 = vmatprep.subr.mxu0 0.0
        %1335 = vmatpush2.xpose.msra.mxu0 0.0
        %1336 = vmatprep.subr.mxu0 0.0
        %1337 = vmatpush2.xpose.msra.mxu0 0.0
        %1338 = vmatprep.subr.mxu0 0.0
        %1339 = vmatpush2.xpose.msra.mxu0 0.0
        %1340 = vmatprep.subr.mxu0 0.0
        %1341 = vmatpush2.xpose.msra.mxu0 0.0
        %1342 = vmatprep.subr.mxu0 0.0
        %1343 = vmatpush2.xpose.msra.mxu0 0.0
        %1344 = vmatprep.subr.mxu0 0.0
        %1345 = vmatpush2.xpose.msra.mxu0 0.0
        %1346 = vmatprep.subr.mxu0 0.0
        %1347 = vmatpush2.xpose.msra.mxu0 0.0
        %1348 = vmatprep.subr.mxu0 0.0
        %1349 = vmatpush2.xpose.msra.mxu0 0.0
        %1350 = vmatprep.subr.mxu0 0.0
        %1351 = vmatpush2.xpose.msra.mxu0 0.0
        %1352 = vmatprep.mubr.f32.mxu0 0.0
        %1353 = vmatmul.mubr.f32.gmra.mxu0 %v1283
        %v1354 = vpop.f32.mrf.mxu0
        %v1355 = vadd.f32 0.0, %v1354
        %v1356 = vpop.f32.mrf.mxu0
        %1357 = vdwg.mxu0
        %v1359 = vsel %vm1281, %v1098, 0
        %v1362 = vsel %vm1281, %v1184, 0
        %1364 = vmatprep.subr.mxu0 0.0
        %1365 = vmatpush1.xpose.msra.mxu0 0.0
        %1366 = vmatprep.subr.mxu0 0.0
        %1367 = vmatpush1.xpose.msra.mxu0 0.0
        %1368 = vmatprep.subr.mxu0 0.0
        %1369 = vmatpush1.xpose.msra.mxu0 0.0
        %1370 = vmatprep.subr.mxu0 0.0
        %1371 = vmatpush1.xpose.msra.mxu0 0.0
        %1372 = vmatprep.subr.mxu0 0.0
        %1373 = vmatpush1.xpose.msra.mxu0 0.0
        %1374 = vmatprep.subr.mxu0 0.0
        %1375 = vmatpush1.xpose.msra.mxu0 0.0
        %1376 = vmatprep.subr.mxu0 0.0
        %1377 = vmatpush1.xpose.msra.mxu0 0.0
        %1378 = vmatprep.subr.mxu0 0.0
        %1379 = vmatpush1.xpose.msra.mxu0 0.0
        %1380 = vmatprep.subr.mxu0 0.0
        %1381 = vmatpush1.xpose.msra.mxu0 0.0
        %1382 = vmatprep.subr.mxu0 0.0
        %1383 = vmatpush1.xpose.msra.mxu0 0.0
        %1384 = vmatprep.subr.mxu0 0.0
        %1385 = vmatpush1.xpose.msra.mxu0 0.0
        %1386 = vmatprep.subr.mxu0 0.0
        %1387 = vmatpush1.xpose.msra.mxu0 0.0
        %1388 = vmatprep.subr.mxu0 0.0
        %1389 = vmatpush1.xpose.msra.mxu0 0.0
        %1390 = vmatprep.subr.mxu0 0.0
        %1391 = vmatpush1.xpose.msra.mxu0 0.0
        %1392 = vmatprep.subr.mxu0 0.0
        %1393 = vmatpush1.xpose.msra.mxu0 0.0
        %1394 = vmatprep.subr.mxu0 0.0
        %1395 = vmatpush1.xpose.msra.mxu0 %v1362
        %1396 = vmatprep.subr.mxu0 0.0
        %1397 = vmatpush2.xpose.msra.mxu0 0.0
        %1398 = vmatprep.subr.mxu0 0.0
        %1399 = vmatpush2.xpose.msra.mxu0 0.0
        %1400 = vmatprep.subr.mxu0 0.0
        %1401 = vmatpush2.xpose.msra.mxu0 0.0
        %1402 = vmatprep.subr.mxu0 0.0
        %1403 = vmatpush2.xpose.msra.mxu0 0.0
        %1404 = vmatprep.subr.mxu0 0.0
        %1405 = vmatpush2.xpose.msra.mxu0 0.0
        %1406 = vmatprep.subr.mxu0 0.0
        %1407 = vmatpush2.xpose.msra.mxu0 0.0
        %1408 = vmatprep.subr.mxu0 0.0
        %1409 = vmatpush2.xpose.msra.mxu0 0.0
        %1410 = vmatprep.subr.mxu0 0.0
        %1411 = vmatpush2.xpose.msra.mxu0 0.0
        %1412 = vmatprep.subr.mxu0 0.0
        %1413 = vmatpush2.xpose.msra.mxu0 0.0
        %1414 = vmatprep.subr.mxu0 0.0
        %1415 = vmatpush2.xpose.msra.mxu0 0.0
        %1416 = vmatprep.subr.mxu0 0.0
        %1417 = vmatpush2.xpose.msra.mxu0 0.0
        %1418 = vmatprep.subr.mxu0 0.0
        %1419 = vmatpush2.xpose.msra.mxu0 0.0
        %1420 = vmatprep.subr.mxu0 0.0
        %1421 = vmatpush2.xpose.msra.mxu0 0.0
        %1422 = vmatprep.subr.mxu0 0.0
        %1423 = vmatpush2.xpose.msra.mxu0 0.0
        %1424 = vmatprep.subr.mxu0 0.0
        %1425 = vmatpush2.xpose.msra.mxu0 0.0
        %1426 = vmatprep.subr.mxu0 0.0
        %1427 = vmatpush2.xpose.msra.mxu0 0.0
        %1428 = vmatprep.mubr.f32.mxu0 0.0
        %1429 = vmatmul.mubr.f32.gmra.mxu0 %v1359
        %v1430 = vpop.f32.mrf.mxu0
        %v1431 = vadd.f32 0.0, %v1430
        %v1432 = vpop.f32.mrf.mxu0
        %1433 = vdwg.mxu0
        %v1434 = vmul.f32 %v1355, 0.35355338
        %v1435 = vmul.f32 %v1431, 0.35355338
        %v1438 = vlaneseq
        %v1439 = vshrl.u32 %v1438, 7
        %v1440 = vsub.s32 0, %v1439
        %v1441 = vrot.slane %v1275, %v1440
        %v1442 = vlaneseq
        %v1443 = vshrl.u32 %v1442, 7
        %v1444 = vsub.s32 0, %v1443
        %v1445 = vrot.slane %v1276, %v1444
        %v1448 = vadd.f32 %v1434, %v1441
        %v1449 = vadd.f32 %v1435, %v1445
        %v1450 = vsel %vm1281, %v1448, -inf
        %1451 = vmax.xlane.f32.xlu0 %v1450
        %v1452 = vpop.xlane.xlu0 %1451
        %v1453 = vsel %vm1281, %v1449, -inf
        %1454 = vmax.xlane.f32.xlu0 %v1453
        %v1455 = vpop.xlane.xlu0 %1454
        %v1456 = vsub.f32 %v1448, %v1452
        %v1457 = vsub.f32 %v1449, %v1455
        %v1458 = vmul.f32 %v1456, 1.442695
        %v1459 = vpow.pop %v1458
        %v1460 = vmul.f32 %v1457, 1.442695
        %v1461 = vpow.pop %v1460
        %v1462 = vsel %vm1281, %v1459, 0.0
        %1463 = vadd.xlane.f32.xlu0 %v1462
        %v1464 = vpop.xlane.xlu0 %1463
        %v1465 = vsel %vm1281, %v1461, 0.0
        %1466 = vadd.xlane.f32.xlu0 %v1465
        %v1467 = vpop.xlane.xlu0 %1466
        %v1468 = vrcp.pop %v1464
        %v1469 = vrcp.pop %v1467
        %v1470 = vmul.f32 %v1459, %v1468
        %v1471 = vmul.f32 %v1461, %v1469
        %v1473 = vsel %vm1281, %v1470, 0
        %1475 = vmatprep.subr.mxu0 0.0
        %1476 = vmatpush1.msra.mxu0 0.0
        %1477 = vmatprep.subr.mxu0 0.0
        %1478 = vmatpush1.msra.mxu0 0.0
        %1479 = vmatprep.subr.mxu0 0.0
        %1480 = vmatpush1.msra.mxu0 0.0
        %1481 = vmatprep.subr.mxu0 0.0
        %1482 = vmatpush1.msra.mxu0 0.0
        %1483 = vmatprep.subr.mxu0 0.0
        %1484 = vmatpush1.msra.mxu0 0.0
        %1485 = vmatprep.subr.mxu0 0.0
        %1486 = vmatpush1.msra.mxu0 0.0
        %1487 = vmatprep.subr.mxu0 0.0
        %1488 = vmatpush1.msra.mxu0 0.0
        %1489 = vmatprep.subr.mxu0 0.0
        %1490 = vmatpush1.msra.mxu0 0.0
        %1491 = vmatprep.subr.mxu0 0.0
        %1492 = vmatpush1.msra.mxu0 0.0
        %1493 = vmatprep.subr.mxu0 0.0
        %1494 = vmatpush1.msra.mxu0 0.0
        %1495 = vmatprep.subr.mxu0 0.0
        %1496 = vmatpush1.msra.mxu0 0.0
        %1497 = vmatprep.subr.mxu0 0.0
        %1498 = vmatpush1.msra.mxu0 0.0
        %1499 = vmatprep.subr.mxu0 0.0
        %1500 = vmatpush1.msra.mxu0 0.0
        %1501 = vmatprep.subr.mxu0 0.0
        %1502 = vmatpush1.msra.mxu0 0.0
        %1503 = vmatprep.subr.mxu0 0.0
        %1504 = vmatpush1.msra.mxu0 0.0
        %1505 = vmatprep.subr.mxu0 0.0
        %1506 = vmatpush1.msra.mxu0 %v1265
        %1507 = vmatprep.subr.mxu0 0.0
        %1508 = vmatpush2.msra.mxu0 0.0
        %1509 = vmatprep.subr.mxu0 0.0
        %1510 = vmatpush2.msra.mxu0 0.0
        %1511 = vmatprep.subr.mxu0 0.0
        %1512 = vmatpush2.msra.mxu0 0.0
        %1513 = vmatprep.subr.mxu0 0.0
        %1514 = vmatpush2.msra.mxu0 0.0
        %1515 = vmatprep.subr.mxu0 0.0
        %1516 = vmatpush2.msra.mxu0 0.0
        %1517 = vmatprep.subr.mxu0 0.0
        %1518 = vmatpush2.msra.mxu0 0.0
        %1519 = vmatprep.subr.mxu0 0.0
        %1520 = vmatpush2.msra.mxu0 0.0
        %1521 = vmatprep.subr.mxu0 0.0
        %1522 = vmatpush2.msra.mxu0 0.0
        %1523 = vmatprep.subr.mxu0 0.0
        %1524 = vmatpush2.msra.mxu0 0.0
        %1525 = vmatprep.subr.mxu0 0.0
        %1526 = vmatpush2.msra.mxu0 0.0
        %1527 = vmatprep.subr.mxu0 0.0
        %1528 = vmatpush2.msra.mxu0 0.0
        %1529 = vmatprep.subr.mxu0 0.0
        %1530 = vmatpush2.msra.mxu0 0.0
        %1531 = vmatprep.subr.mxu0 0.0
        %1532 = vmatpush2.msra.mxu0 0.0
        %1533 = vmatprep.subr.mxu0 0.0
        %1534 = vmatpush2.msra.mxu0 0.0
        %1535 = vmatprep.subr.mxu0 0.0
        %1536 = vmatpush2.msra.mxu0 0.0
        %1537 = vmatprep.subr.mxu0 0.0
        %1538 = vmatpush2.msra.mxu0 0.0
        %1539 = vmatprep.mubr.f32.mxu0 0.0
        %1540 = vmatmul.mubr.f32.gmra.mxu0 %v1473
        %v1541 = vpop.f32.mrf.mxu0
        %v1542 = vadd.f32 0.0, %v1541
        %v1543 = vpop.f32.mrf.mxu0
        %1544 = vdwg.mxu0
        %v1546 = vsel %vm1281, %v1471, 0
        %1548 = vmatprep.subr.mxu0 0.0
        %1549 = vmatpush1.msra.mxu0 0.0
        %1550 = vmatprep.subr.mxu0 0.0
        %1551 = vmatpush1.msra.mxu0 0.0
        %1552 = vmatprep.subr.mxu0 0.0
        %1553 = vmatpush1.msra.mxu0 0.0
        %1554 = vmatprep.subr.mxu0 0.0
        %1555 = vmatpush1.msra.mxu0 0.0
        %1556 = vmatprep.subr.mxu0 0.0
        %1557 = vmatpush1.msra.mxu0 0.0
        %1558 = vmatprep.subr.mxu0 0.0
        %1559 = vmatpush1.msra.mxu0 0.0
        %1560 = vmatprep.subr.mxu0 0.0
        %1561 = vmatpush1.msra.mxu0 0.0
        %1562 = vmatprep.subr.mxu0 0.0
        %1563 = vmatpush1.msra.mxu0 0.0
        %1564 = vmatprep.subr.mxu0 0.0
        %1565 = vmatpush1.msra.mxu0 0.0
        %1566 = vmatprep.subr.mxu0 0.0
        %1567 = vmatpush1.msra.mxu0 0.0
        %1568 = vmatprep.subr.mxu0 0.0
        %1569 = vmatpush1.msra.mxu0 0.0
        %1570 = vmatprep.subr.mxu0 0.0
        %1571 = vmatpush1.msra.mxu0 0.0
        %1572 = vmatprep.subr.mxu0 0.0
        %1573 = vmatpush1.msra.mxu0 0.0
        %1574 = vmatprep.subr.mxu0 0.0
        %1575 = vmatpush1.msra.mxu0 0.0
        %1576 = vmatprep.subr.mxu0 0.0
        %1577 = vmatpush1.msra.mxu0 0.0
        %1578 = vmatprep.subr.mxu0 0.0
        %1579 = vmatpush1.msra.mxu0 %v1270
        %1580 = vmatprep.subr.mxu0 0.0
        %1581 = vmatpush2.msra.mxu0 0.0
        %1582 = vmatprep.subr.mxu0 0.0
        %1583 = vmatpush2.msra.mxu0 0.0
        %1584 = vmatprep.subr.mxu0 0.0
        %1585 = vmatpush2.msra.mxu0 0.0
        %1586 = vmatprep.subr.mxu0 0.0
        %1587 = vmatpush2.msra.mxu0 0.0
        %1588 = vmatprep.subr.mxu0 0.0
        %1589 = vmatpush2.msra.mxu0 0.0
        %1590 = vmatprep.subr.mxu0 0.0
        %1591 = vmatpush2.msra.mxu0 0.0
        %1592 = vmatprep.subr.mxu0 0.0
        %1593 = vmatpush2.msra.mxu0 0.0
        %1594 = vmatprep.subr.mxu0 0.0
        %1595 = vmatpush2.msra.mxu0 0.0
        %1596 = vmatprep.subr.mxu0 0.0
        %1597 = vmatpush2.msra.mxu0 0.0
        %1598 = vmatprep.subr.mxu0 0.0
        %1599 = vmatpush2.msra.mxu0 0.0
        %1600 = vmatprep.subr.mxu0 0.0
        %1601 = vmatpush2.msra.mxu0 0.0
        %1602 = vmatprep.subr.mxu0 0.0
        %1603 = vmatpush2.msra.mxu0 0.0
        %1604 = vmatprep.subr.mxu0 0.0
        %1605 = vmatpush2.msra.mxu0 0.0
        %1606 = vmatprep.subr.mxu0 0.0
        %1607 = vmatpush2.msra.mxu0 0.0
        %1608 = vmatprep.subr.mxu0 0.0
        %1609 = vmatpush2.msra.mxu0 0.0
        %1610 = vmatprep.subr.mxu0 0.0
        %1611 = vmatpush2.msra.mxu0 0.0
        %1612 = vmatprep.mubr.f32.mxu0 0.0
        %1613 = vmatmul.mubr.f32.gmra.mxu0 %v1546
        %v1614 = vpop.f32.mrf.mxu0
        %v1615 = vadd.f32 0.0, %v1614
        %v1616 = vpop.f32.mrf.mxu0
        %1617 = vdwg.mxu0
        %1618 = vrot.lane.b32.xlu0 %v1093, 120
        %v1619 = vpop.permute.xlu0 %1618
        %1620 = vrot.lane.b32.xlu0 %v1179, 120
        %v1621 = vpop.permute.xlu0 %1620
        %v1622 = vsel %vm1281, %v1619, 0
        %v1624 = vsel %vm1281, %v1621, 0
        %1626 = vmatprep.subr.mxu0 0.0
        %1627 = vmatpush1.xpose.msra.mxu0 0.0
        %1628 = vmatprep.subr.mxu0 0.0
        %1629 = vmatpush1.xpose.msra.mxu0 0.0
        %1630 = vmatprep.subr.mxu0 0.0
        %1631 = vmatpush1.xpose.msra.mxu0 0.0
        %1632 = vmatprep.subr.mxu0 0.0
        %1633 = vmatpush1.xpose.msra.mxu0 0.0
        %1634 = vmatprep.subr.mxu0 0.0
        %1635 = vmatpush1.xpose.msra.mxu0 0.0
        %1636 = vmatprep.subr.mxu0 0.0
        %1637 = vmatpush1.xpose.msra.mxu0 0.0
        %1638 = vmatprep.subr.mxu0 0.0
        %1639 = vmatpush1.xpose.msra.mxu0 0.0
        %1640 = vmatprep.subr.mxu0 0.0
        %1641 = vmatpush1.xpose.msra.mxu0 0.0
        %1642 = vmatprep.subr.mxu0 0.0
        %1643 = vmatpush1.xpose.msra.mxu0 0.0
        %1644 = vmatprep.subr.mxu0 0.0
        %1645 = vmatpush1.xpose.msra.mxu0 0.0
        %1646 = vmatprep.subr.mxu0 0.0
        %1647 = vmatpush1.xpose.msra.mxu0 0.0
        %1648 = vmatprep.subr.mxu0 0.0
        %1649 = vmatpush1.xpose.msra.mxu0 0.0
        %1650 = vmatprep.subr.mxu0 0.0
        %1651 = vmatpush1.xpose.msra.mxu0 0.0
        %1652 = vmatprep.subr.mxu0 0.0
        %1653 = vmatpush1.xpose.msra.mxu0 0.0
        %1654 = vmatprep.subr.mxu0 0.0
        %1655 = vmatpush1.xpose.msra.mxu0 0.0
        %1656 = vmatprep.subr.mxu0 0.0
        %1657 = vmatpush1.xpose.msra.mxu0 %v1624
        %1658 = vmatprep.subr.mxu0 0.0
        %1659 = vmatpush2.xpose.msra.mxu0 0.0
        %1660 = vmatprep.subr.mxu0 0.0
        %1661 = vmatpush2.xpose.msra.mxu0 0.0
        %1662 = vmatprep.subr.mxu0 0.0
        %1663 = vmatpush2.xpose.msra.mxu0 0.0
        %1664 = vmatprep.subr.mxu0 0.0
        %1665 = vmatpush2.xpose.msra.mxu0 0.0
        %1666 = vmatprep.subr.mxu0 0.0
        %1667 = vmatpush2.xpose.msra.mxu0 0.0
        %1668 = vmatprep.subr.mxu0 0.0
        %1669 = vmatpush2.xpose.msra.mxu0 0.0
        %1670 = vmatprep.subr.mxu0 0.0
        %1671 = vmatpush2.xpose.msra.mxu0 0.0
        %1672 = vmatprep.subr.mxu0 0.0
        %1673 = vmatpush2.xpose.msra.mxu0 0.0
        %1674 = vmatprep.subr.mxu0 0.0
        %1675 = vmatpush2.xpose.msra.mxu0 0.0
        %1676 = vmatprep.subr.mxu0 0.0
        %1677 = vmatpush2.xpose.msra.mxu0 0.0
        %1678 = vmatprep.subr.mxu0 0.0
        %1679 = vmatpush2.xpose.msra.mxu0 0.0
        %1680 = vmatprep.subr.mxu0 0.0
        %1681 = vmatpush2.xpose.msra.mxu0 0.0
        %1682 = vmatprep.subr.mxu0 0.0
        %1683 = vmatpush2.xpose.msra.mxu0 0.0
        %1684 = vmatprep.subr.mxu0 0.0
        %1685 = vmatpush2.xpose.msra.mxu0 0.0
        %1686 = vmatprep.subr.mxu0 0.0
        %1687 = vmatpush2.xpose.msra.mxu0 0.0
        %1688 = vmatprep.subr.mxu0 0.0
        %1689 = vmatpush2.xpose.msra.mxu0 0.0
        %1690 = vmatprep.mubr.f32.mxu0 0.0
        %1691 = vmatmul.mubr.f32.gmra.mxu0 %v1622
        %v1692 = vpop.f32.mrf.mxu0
        %v1693 = vadd.f32 0.0, %v1692
        %v1694 = vpop.f32.mrf.mxu0
        %1695 = vdwg.mxu0
        %1696 = vrot.lane.b32.xlu0 %v1098, 120
        %v1697 = vpop.permute.xlu0 %1696
        %1698 = vrot.lane.b32.xlu0 %v1184, 120
        %v1699 = vpop.permute.xlu0 %1698
        %v1700 = vsel %vm1281, %v1697, 0
        %v1702 = vsel %vm1281, %v1699, 0
        %1704 = vmatprep.subr.mxu0 0.0
        %1705 = vmatpush1.xpose.msra.mxu0 0.0
        %1706 = vmatprep.subr.mxu0 0.0
        %1707 = vmatpush1.xpose.msra.mxu0 0.0
        %1708 = vmatprep.subr.mxu0 0.0
        %1709 = vmatpush1.xpose.msra.mxu0 0.0
        %1710 = vmatprep.subr.mxu0 0.0
        %1711 = vmatpush1.xpose.msra.mxu0 0.0
        %1712 = vmatprep.subr.mxu0 0.0
        %1713 = vmatpush1.xpose.msra.mxu0 0.0
        %1714 = vmatprep.subr.mxu0 0.0
        %1715 = vmatpush1.xpose.msra.mxu0 0.0
        %1716 = vmatprep.subr.mxu0 0.0
        %1717 = vmatpush1.xpose.msra.mxu0 0.0
        %1718 = vmatprep.subr.mxu0 0.0
        %1719 = vmatpush1.xpose.msra.mxu0 0.0
        %1720 = vmatprep.subr.mxu0 0.0
        %1721 = vmatpush1.xpose.msra.mxu0 0.0
        %1722 = vmatprep.subr.mxu0 0.0
        %1723 = vmatpush1.xpose.msra.mxu0 0.0
        %1724 = vmatprep.subr.mxu0 0.0
        %1725 = vmatpush1.xpose.msra.mxu0 0.0
        %1726 = vmatprep.subr.mxu0 0.0
        %1727 = vmatpush1.xpose.msra.mxu0 0.0
        %1728 = vmatprep.subr.mxu0 0.0
        %1729 = vmatpush1.xpose.msra.mxu0 0.0
        %1730 = vmatprep.subr.mxu0 0.0
        %1731 = vmatpush1.xpose.msra.mxu0 0.0
        %1732 = vmatprep.subr.mxu0 0.0
        %1733 = vmatpush1.xpose.msra.mxu0 0.0
        %1734 = vmatprep.subr.mxu0 0.0
        %1735 = vmatpush1.xpose.msra.mxu0 %v1702
        %1736 = vmatprep.subr.mxu0 0.0
        %1737 = vmatpush2.xpose.msra.mxu0 0.0
        %1738 = vmatprep.subr.mxu0 0.0
        %1739 = vmatpush2.xpose.msra.mxu0 0.0
        %1740 = vmatprep.subr.mxu0 0.0
        %1741 = vmatpush2.xpose.msra.mxu0 0.0
        %1742 = vmatprep.subr.mxu0 0.0
        %1743 = vmatpush2.xpose.msra.mxu0 0.0
        %1744 = vmatprep.subr.mxu0 0.0
        %1745 = vmatpush2.xpose.msra.mxu0 0.0
        %1746 = vmatprep.subr.mxu0 0.0
        %1747 = vmatpush2.xpose.msra.mxu0 0.0
        %1748 = vmatprep.subr.mxu0 0.0
        %1749 = vmatpush2.xpose.msra.mxu0 0.0
        %1750 = vmatprep.subr.mxu0 0.0
        %1751 = vmatpush2.xpose.msra.mxu0 0.0
        %1752 = vmatprep.subr.mxu0 0.0
        %1753 = vmatpush2.xpose.msra.mxu0 0.0
        %1754 = vmatprep.subr.mxu0 0.0
        %1755 = vmatpush2.xpose.msra.mxu0 0.0
        %1756 = vmatprep.subr.mxu0 0.0
        %1757 = vmatpush2.xpose.msra.mxu0 0.0
        %1758 = vmatprep.subr.mxu0 0.0
        %1759 = vmatpush2.xpose.msra.mxu0 0.0
        %1760 = vmatprep.subr.mxu0 0.0
        %1761 = vmatpush2.xpose.msra.mxu0 0.0
        %1762 = vmatprep.subr.mxu0 0.0
        %1763 = vmatpush2.xpose.msra.mxu0 0.0
        %1764 = vmatprep.subr.mxu0 0.0
        %1765 = vmatpush2.xpose.msra.mxu0 0.0
        %1766 = vmatprep.subr.mxu0 0.0
        %1767 = vmatpush2.xpose.msra.mxu0 0.0
        %1768 = vmatprep.mubr.f32.mxu0 0.0
        %1769 = vmatmul.mubr.f32.gmra.mxu0 %v1700
        %v1770 = vpop.f32.mrf.mxu0
        %v1771 = vadd.f32 0.0, %v1770
        %v1772 = vpop.f32.mrf.mxu0
        %1773 = vdwg.mxu0
        %v1774 = vmul.f32 %v1693, 0.35355338
        %v1775 = vmul.f32 %v1771, 0.35355338
        %v1776 = vadd.f32 %v1774, %v1441
        %v1777 = vadd.f32 %v1775, %v1445
        %v1778 = vsel %vm1281, %v1776, -inf
        %1779 = vmax.xlane.f32.xlu0 %v1778
        %v1780 = vpop.xlane.xlu0 %1779
        %v1781 = vsel %vm1281, %v1777, -inf
        %1782 = vmax.xlane.f32.xlu0 %v1781
        %v1783 = vpop.xlane.xlu0 %1782
        %v1784 = vsub.f32 %v1776, %v1780
        %v1785 = vsub.f32 %v1777, %v1783
        %v1786 = vmul.f32 %v1784, 1.442695
        %v1787 = vpow.pop %v1786
        %v1788 = vmul.f32 %v1785, 1.442695
        %v1789 = vpow.pop %v1788
        %v1790 = vsel %vm1281, %v1787, 0.0
        %1791 = vadd.xlane.f32.xlu0 %v1790
        %v1792 = vpop.xlane.xlu0 %1791
        %v1793 = vsel %vm1281, %v1789, 0.0
        %1794 = vadd.xlane.f32.xlu0 %v1793
        %v1795 = vpop.xlane.xlu0 %1794
        %v1796 = vrcp.pop %v1792
        %v1797 = vrcp.pop %v1795
        %v1798 = vmul.f32 %v1787, %v1796
        %v1799 = vmul.f32 %v1789, %v1797
        %1801 = vrot.lane.b32.xlu0 %v1265, 120
        %v1802 = vpop.permute.xlu0 %1801
        %v1805 = vsel %vm1281, %v1798, 0
        %1807 = vmatprep.subr.mxu0 0.0
        %1808 = vmatpush1.msra.mxu0 0.0
        %1809 = vmatprep.subr.mxu0 0.0
        %1810 = vmatpush1.msra.mxu0 0.0
        %1811 = vmatprep.subr.mxu0 0.0
        %1812 = vmatpush1.msra.mxu0 0.0
        %1813 = vmatprep.subr.mxu0 0.0
        %1814 = vmatpush1.msra.mxu0 0.0
        %1815 = vmatprep.subr.mxu0 0.0
        %1816 = vmatpush1.msra.mxu0 0.0
        %1817 = vmatprep.subr.mxu0 0.0
        %1818 = vmatpush1.msra.mxu0 0.0
        %1819 = vmatprep.subr.mxu0 0.0
        %1820 = vmatpush1.msra.mxu0 0.0
        %1821 = vmatprep.subr.mxu0 0.0
        %1822 = vmatpush1.msra.mxu0 0.0
        %1823 = vmatprep.subr.mxu0 0.0
        %1824 = vmatpush1.msra.mxu0 0.0
        %1825 = vmatprep.subr.mxu0 0.0
        %1826 = vmatpush1.msra.mxu0 0.0
        %1827 = vmatprep.subr.mxu0 0.0
        %1828 = vmatpush1.msra.mxu0 0.0
        %1829 = vmatprep.subr.mxu0 0.0
        %1830 = vmatpush1.msra.mxu0 0.0
        %1831 = vmatprep.subr.mxu0 0.0
        %1832 = vmatpush1.msra.mxu0 0.0
        %1833 = vmatprep.subr.mxu0 0.0
        %1834 = vmatpush1.msra.mxu0 0.0
        %1835 = vmatprep.subr.mxu0 0.0
        %1836 = vmatpush1.msra.mxu0 0.0
        %1837 = vmatprep.subr.mxu0 0.0
        %1838 = vmatpush1.msra.mxu0 %v1802
        %1839 = vmatprep.subr.mxu0 0.0
        %1840 = vmatpush2.msra.mxu0 0.0
        %1841 = vmatprep.subr.mxu0 0.0
        %1842 = vmatpush2.msra.mxu0 0.0
        %1843 = vmatprep.subr.mxu0 0.0
        %1844 = vmatpush2.msra.mxu0 0.0
        %1845 = vmatprep.subr.mxu0 0.0
        %1846 = vmatpush2.msra.mxu0 0.0
        %1847 = vmatprep.subr.mxu0 0.0
        %1848 = vmatpush2.msra.mxu0 0.0
        %1849 = vmatprep.subr.mxu0 0.0
        %1850 = vmatpush2.msra.mxu0 0.0
        %1851 = vmatprep.subr.mxu0 0.0
        %1852 = vmatpush2.msra.mxu0 0.0
        %1853 = vmatprep.subr.mxu0 0.0
        %1854 = vmatpush2.msra.mxu0 0.0
        %1855 = vmatprep.subr.mxu0 0.0
        %1856 = vmatpush2.msra.mxu0 0.0
        %1857 = vmatprep.subr.mxu0 0.0
        %1858 = vmatpush2.msra.mxu0 0.0
        %1859 = vmatprep.subr.mxu0 0.0
        %1860 = vmatpush2.msra.mxu0 0.0
        %1861 = vmatprep.subr.mxu0 0.0
        %1862 = vmatpush2.msra.mxu0 0.0
        %1863 = vmatprep.subr.mxu0 0.0
        %1864 = vmatpush2.msra.mxu0 0.0
        %1865 = vmatprep.subr.mxu0 0.0
        %1866 = vmatpush2.msra.mxu0 0.0
        %1867 = vmatprep.subr.mxu0 0.0
        %1868 = vmatpush2.msra.mxu0 0.0
        %1869 = vmatprep.subr.mxu0 0.0
        %1870 = vmatpush2.msra.mxu0 0.0
        %1871 = vmatprep.mubr.f32.mxu0 0.0
        %1872 = vmatmul.mubr.f32.gmra.mxu0 %v1805
        %v1873 = vpop.f32.mrf.mxu0
        %v1874 = vadd.f32 0.0, %v1873
        %v1875 = vpop.f32.mrf.mxu0
        %1876 = vdwg.mxu0
        %1878 = vrot.lane.b32.xlu0 %v1270, 120
        %v1879 = vpop.permute.xlu0 %1878
        %v1882 = vsel %vm1281, %v1799, 0
        %1884 = vmatprep.subr.mxu0 0.0
        %1885 = vmatpush1.msra.mxu0 0.0
        %1886 = vmatprep.subr.mxu0 0.0
        %1887 = vmatpush1.msra.mxu0 0.0
        %1888 = vmatprep.subr.mxu0 0.0
        %1889 = vmatpush1.msra.mxu0 0.0
        %1890 = vmatprep.subr.mxu0 0.0
        %1891 = vmatpush1.msra.mxu0 0.0
        %1892 = vmatprep.subr.mxu0 0.0
        %1893 = vmatpush1.msra.mxu0 0.0
        %1894 = vmatprep.subr.mxu0 0.0
        %1895 = vmatpush1.msra.mxu0 0.0
        %1896 = vmatprep.subr.mxu0 0.0
        %1897 = vmatpush1.msra.mxu0 0.0
        %1898 = vmatprep.subr.mxu0 0.0
        %1899 = vmatpush1.msra.mxu0 0.0
        %1900 = vmatprep.subr.mxu0 0.0
        %1901 = vmatpush1.msra.mxu0 0.0
        %1902 = vmatprep.subr.mxu0 0.0
        %1903 = vmatpush1.msra.mxu0 0.0
        %1904 = vmatprep.subr.mxu0 0.0
        %1905 = vmatpush1.msra.mxu0 0.0
        %1906 = vmatprep.subr.mxu0 0.0
        %1907 = vmatpush1.msra.mxu0 0.0
        %1908 = vmatprep.subr.mxu0 0.0
        %1909 = vmatpush1.msra.mxu0 0.0
        %1910 = vmatprep.subr.mxu0 0.0
        %1911 = vmatpush1.msra.mxu0 0.0
        %1912 = vmatprep.subr.mxu0 0.0
        %1913 = vmatpush1.msra.mxu0 0.0
        %1914 = vmatprep.subr.mxu0 0.0
        %1915 = vmatpush1.msra.mxu0 %v1879
        %1916 = vmatprep.subr.mxu0 0.0
        %1917 = vmatpush2.msra.mxu0 0.0
        %1918 = vmatprep.subr.mxu0 0.0
        %1919 = vmatpush2.msra.mxu0 0.0
        %1920 = vmatprep.subr.mxu0 0.0
        %1921 = vmatpush2.msra.mxu0 0.0
        %1922 = vmatprep.subr.mxu0 0.0
        %1923 = vmatpush2.msra.mxu0 0.0
        %1924 = vmatprep.subr.mxu0 0.0
        %1925 = vmatpush2.msra.mxu0 0.0
        %1926 = vmatprep.subr.mxu0 0.0
        %1927 = vmatpush2.msra.mxu0 0.0
        %1928 = vmatprep.subr.mxu0 0.0
        %1929 = vmatpush2.msra.mxu0 0.0
        %1930 = vmatprep.subr.mxu0 0.0
        %1931 = vmatpush2.msra.mxu0 0.0
        %1932 = vmatprep.subr.mxu0 0.0
        %1933 = vmatpush2.msra.mxu0 0.0
        %1934 = vmatprep.subr.mxu0 0.0
        %1935 = vmatpush2.msra.mxu0 0.0
        %1936 = vmatprep.subr.mxu0 0.0
        %1937 = vmatpush2.msra.mxu0 0.0
        %1938 = vmatprep.subr.mxu0 0.0
        %1939 = vmatpush2.msra.mxu0 0.0
        %1940 = vmatprep.subr.mxu0 0.0
        %1941 = vmatpush2.msra.mxu0 0.0
        %1942 = vmatprep.subr.mxu0 0.0
        %1943 = vmatpush2.msra.mxu0 0.0
        %1944 = vmatprep.subr.mxu0 0.0
        %1945 = vmatpush2.msra.mxu0 0.0
        %1946 = vmatprep.subr.mxu0 0.0
        %1947 = vmatpush2.msra.mxu0 0.0
        %1948 = vmatprep.mubr.f32.mxu0 0.0
        %1949 = vmatmul.mubr.f32.gmra.mxu0 %v1882
        %v1950 = vpop.f32.mrf.mxu0
        %v1951 = vadd.f32 0.0, %v1950
        %v1952 = vpop.f32.mrf.mxu0
        %1953 = vdwg.mxu0
        %v1955 = vsel %vm1281, %v1874, 0
        %v1958 = vsel %vm1281, %v1951, 0
        %1960 = vmatprep.subr.mxu0 0.0
        %1961 = vmatpush1.msra.mxu0 0.0
        %1962 = vmatprep.subr.mxu0 0.0
        %1963 = vmatpush1.msra.mxu0 0.0
        %1964 = vmatprep.subr.mxu0 0.0
        %1965 = vmatpush1.msra.mxu0 0.0
        %1966 = vmatprep.subr.mxu0 0.0
        %1967 = vmatpush1.msra.mxu0 0.0
        %1968 = vmatprep.subr.mxu0 0.0
        %1969 = vmatpush1.msra.mxu0 0.0
        %1970 = vmatprep.subr.mxu0 0.0
        %1971 = vmatpush1.msra.mxu0 0.0
        %1972 = vmatprep.subr.mxu0 0.0
        %1973 = vmatpush1.msra.mxu0 0.0
        %1974 = vmatprep.subr.mxu0 0.0
        %1975 = vmatpush1.msra.mxu0 0.0
        %1976 = vmatprep.subr.mxu0 0.0
        %1977 = vmatpush1.msra.mxu0 0.0
        %1978 = vmatprep.subr.mxu0 0.0
        %1979 = vmatpush1.msra.mxu0 0.0
        %1980 = vmatprep.subr.mxu0 0.0
        %1981 = vmatpush1.msra.mxu0 0.0
        %1982 = vmatprep.subr.mxu0 0.0
        %1983 = vmatpush1.msra.mxu0 0.0
        %1984 = vmatprep.subr.mxu0 0.0
        %1985 = vmatpush1.msra.mxu0 0.0
        %1986 = vmatprep.subr.mxu0 0.0
        %1987 = vmatpush1.msra.mxu0 0.0
        %1988 = vmatprep.subr.mxu0 0.0
        %1989 = vmatpush1.msra.mxu0 0.0
        %1990 = vmatprep.subr.mxu0 0.0
        %1991 = vmatpush1.msra.mxu0 %v1278
        %1992 = vmatprep.subr.mxu0 0.0
        %1993 = vmatpush2.msra.mxu0 0.0
        %1994 = vmatprep.subr.mxu0 0.0
        %1995 = vmatpush2.msra.mxu0 0.0
        %1996 = vmatprep.subr.mxu0 0.0
        %1997 = vmatpush2.msra.mxu0 0.0
        %1998 = vmatprep.subr.mxu0 0.0
        %1999 = vmatpush2.msra.mxu0 0.0
        %2000 = vmatprep.subr.mxu0 0.0
        %2001 = vmatpush2.msra.mxu0 0.0
        %2002 = vmatprep.subr.mxu0 0.0
        %2003 = vmatpush2.msra.mxu0 0.0
        %2004 = vmatprep.subr.mxu0 0.0
        %2005 = vmatpush2.msra.mxu0 0.0
        %2006 = vmatprep.subr.mxu0 0.0
        %2007 = vmatpush2.msra.mxu0 0.0
        %2008 = vmatprep.subr.mxu0 0.0
        %2009 = vmatpush2.msra.mxu0 0.0
        %2010 = vmatprep.subr.mxu0 0.0
        %2011 = vmatpush2.msra.mxu0 0.0
        %2012 = vmatprep.subr.mxu0 0.0
        %2013 = vmatpush2.msra.mxu0 0.0
        %2014 = vmatprep.subr.mxu0 0.0
        %2015 = vmatpush2.msra.mxu0 0.0
        %2016 = vmatprep.subr.mxu0 0.0
        %2017 = vmatpush2.msra.mxu0 0.0
        %2018 = vmatprep.subr.mxu0 0.0
        %2019 = vmatpush2.msra.mxu0 0.0
        %2020 = vmatprep.subr.mxu0 0.0
        %2021 = vmatpush2.msra.mxu0 0.0
        %2022 = vmatprep.subr.mxu0 0.0
        %2023 = vmatpush2.msra.mxu0 0.0
        %2024 = vmatprep.mubr.f32.mxu0 0.0
        %2025 = vmatmul.mubr.f32.gmra.mxu0 %v1955
        %v2026 = vpop.f32.mrf.mxu0
        %v2027 = vadd.f32 0.0, %v2026
        %v2028 = vpop.f32.mrf.mxu0
        %2029 = vmatprep.mubr.f32.mxu0 0.0
        %2030 = vmatmul.mubr.f32.gmra.mxu0 %v1958
        %v2031 = vpop.f32.mrf.mxu0
        %v2032 = vadd.f32 0.0, %v2031
        %v2033 = vpop.f32.mrf.mxu0
        %2034 = vdwg.mxu0
        %v2036 = vsel %vm1281, %v1542, 0
        %v2039 = vsel %vm1281, %v1615, 0
        %2041 = vmatprep.subr.mxu0 0.0
        %2042 = vmatpush1.msra.mxu0 0.0
        %2043 = vmatprep.subr.mxu0 0.0
        %2044 = vmatpush1.msra.mxu0 0.0
        %2045 = vmatprep.subr.mxu0 0.0
        %2046 = vmatpush1.msra.mxu0 0.0
        %2047 = vmatprep.subr.mxu0 0.0
        %2048 = vmatpush1.msra.mxu0 0.0
        %2049 = vmatprep.subr.mxu0 0.0
        %2050 = vmatpush1.msra.mxu0 0.0
        %2051 = vmatprep.subr.mxu0 0.0
        %2052 = vmatpush1.msra.mxu0 0.0
        %2053 = vmatprep.subr.mxu0 0.0
        %2054 = vmatpush1.msra.mxu0 0.0
        %2055 = vmatprep.subr.mxu0 0.0
        %2056 = vmatpush1.msra.mxu0 0.0
        %2057 = vmatprep.subr.mxu0 0.0
        %2058 = vmatpush1.msra.mxu0 0.0
        %2059 = vmatprep.subr.mxu0 0.0
        %2060 = vmatpush1.msra.mxu0 0.0
        %2061 = vmatprep.subr.mxu0 0.0
        %2062 = vmatpush1.msra.mxu0 0.0
        %2063 = vmatprep.subr.mxu0 0.0
        %2064 = vmatpush1.msra.mxu0 0.0
        %2065 = vmatprep.subr.mxu0 0.0
        %2066 = vmatpush1.msra.mxu0 0.0
        %2067 = vmatprep.subr.mxu0 0.0
        %2068 = vmatpush1.msra.mxu0 0.0
        %2069 = vmatprep.subr.mxu0 0.0
        %2070 = vmatpush1.msra.mxu0 0.0
        %2071 = vmatprep.subr.mxu0 0.0
        %2072 = vmatpush1.msra.mxu0 %v1277
        %2073 = vmatprep.subr.mxu0 0.0
        %2074 = vmatpush2.msra.mxu0 0.0
        %2075 = vmatprep.subr.mxu0 0.0
        %2076 = vmatpush2.msra.mxu0 0.0
        %2077 = vmatprep.subr.mxu0 0.0
        %2078 = vmatpush2.msra.mxu0 0.0
        %2079 = vmatprep.subr.mxu0 0.0
        %2080 = vmatpush2.msra.mxu0 0.0
        %2081 = vmatprep.subr.mxu0 0.0
        %2082 = vmatpush2.msra.mxu0 0.0
        %2083 = vmatprep.subr.mxu0 0.0
        %2084 = vmatpush2.msra.mxu0 0.0
        %2085 = vmatprep.subr.mxu0 0.0
        %2086 = vmatpush2.msra.mxu0 0.0
        %2087 = vmatprep.subr.mxu0 0.0
        %2088 = vmatpush2.msra.mxu0 0.0
        %2089 = vmatprep.subr.mxu0 0.0
        %2090 = vmatpush2.msra.mxu0 0.0
        %2091 = vmatprep.subr.mxu0 0.0
        %2092 = vmatpush2.msra.mxu0 0.0
        %2093 = vmatprep.subr.mxu0 0.0
        %2094 = vmatpush2.msra.mxu0 0.0
        %2095 = vmatprep.subr.mxu0 0.0
        %2096 = vmatpush2.msra.mxu0 0.0
        %2097 = vmatprep.subr.mxu0 0.0
        %2098 = vmatpush2.msra.mxu0 0.0
        %2099 = vmatprep.subr.mxu0 0.0
        %2100 = vmatpush2.msra.mxu0 0.0
        %2101 = vmatprep.subr.mxu0 0.0
        %2102 = vmatpush2.msra.mxu0 0.0
        %2103 = vmatprep.subr.mxu0 0.0
        %2104 = vmatpush2.msra.mxu0 0.0
        %2105 = vmatprep.mubr.f32.mxu0 0.0
        %2106 = vmatmul.mubr.f32.gmra.mxu0 %v2036
        %v2107 = vpop.f32.mrf.mxu0
        %v2108 = vadd.f32 %v2027, %v2107
        %v2109 = vpop.f32.mrf.mxu0
        %2110 = vmatprep.mubr.f32.mxu0 0.0
        %2111 = vmatmul.mubr.f32.gmra.mxu0 %v2039
        %v2112 = vpop.f32.mrf.mxu0
        %v2113 = vadd.f32 %v2032, %v2112
        %v2114 = vpop.f32.mrf.mxu0
        %2115 = vdwg.mxu0
        %2116 = vrot.lane.b32.xlu0 %v1093, 112
        %v2117 = vpop.permute.xlu0 %2116
        %2118 = vrot.lane.b32.xlu0 %v1179, 112
        %v2119 = vpop.permute.xlu0 %2118
        %v2120 = vsel %vm1281, %v2117, 0
        %v2122 = vsel %vm1281, %v2119, 0
        %2124 = vmatprep.subr.mxu0 0.0
        %2125 = vmatpush1.xpose.msra.mxu0 0.0
        %2126 = vmatprep.subr.mxu0 0.0
        %2127 = vmatpush1.xpose.msra.mxu0 0.0
        %2128 = vmatprep.subr.mxu0 0.0
        %2129 = vmatpush1.xpose.msra.mxu0 0.0
        %2130 = vmatprep.subr.mxu0 0.0
        %2131 = vmatpush1.xpose.msra.mxu0 0.0
        %2132 = vmatprep.subr.mxu0 0.0
        %2133 = vmatpush1.xpose.msra.mxu0 0.0
        %2134 = vmatprep.subr.mxu0 0.0
        %2135 = vmatpush1.xpose.msra.mxu0 0.0
        %2136 = vmatprep.subr.mxu0 0.0
        %2137 = vmatpush1.xpose.msra.mxu0 0.0
        %2138 = vmatprep.subr.mxu0 0.0
        %2139 = vmatpush1.xpose.msra.mxu0 0.0
        %2140 = vmatprep.subr.mxu0 0.0
        %2141 = vmatpush1.xpose.msra.mxu0 0.0
        %2142 = vmatprep.subr.mxu0 0.0
        %2143 = vmatpush1.xpose.msra.mxu0 0.0
        %2144 = vmatprep.subr.mxu0 0.0
        %2145 = vmatpush1.xpose.msra.mxu0 0.0
        %2146 = vmatprep.subr.mxu0 0.0
        %2147 = vmatpush1.xpose.msra.mxu0 0.0
        %2148 = vmatprep.subr.mxu0 0.0
        %2149 = vmatpush1.xpose.msra.mxu0 0.0
        %2150 = vmatprep.subr.mxu0 0.0
        %2151 = vmatpush1.xpose.msra.mxu0 0.0
        %2152 = vmatprep.subr.mxu0 0.0
        %2153 = vmatpush1.xpose.msra.mxu0 0.0
        %2154 = vmatprep.subr.mxu0 0.0
        %2155 = vmatpush1.xpose.msra.mxu0 %v2122
        %2156 = vmatprep.subr.mxu0 0.0
        %2157 = vmatpush2.xpose.msra.mxu0 0.0
        %2158 = vmatprep.subr.mxu0 0.0
        %2159 = vmatpush2.xpose.msra.mxu0 0.0
        %2160 = vmatprep.subr.mxu0 0.0
        %2161 = vmatpush2.xpose.msra.mxu0 0.0
        %2162 = vmatprep.subr.mxu0 0.0
        %2163 = vmatpush2.xpose.msra.mxu0 0.0
        %2164 = vmatprep.subr.mxu0 0.0
        %2165 = vmatpush2.xpose.msra.mxu0 0.0
        %2166 = vmatprep.subr.mxu0 0.0
        %2167 = vmatpush2.xpose.msra.mxu0 0.0
        %2168 = vmatprep.subr.mxu0 0.0
        %2169 = vmatpush2.xpose.msra.mxu0 0.0
        %2170 = vmatprep.subr.mxu0 0.0
        %2171 = vmatpush2.xpose.msra.mxu0 0.0
        %2172 = vmatprep.subr.mxu0 0.0
        %2173 = vmatpush2.xpose.msra.mxu0 0.0
        %2174 = vmatprep.subr.mxu0 0.0
        %2175 = vmatpush2.xpose.msra.mxu0 0.0
        %2176 = vmatprep.subr.mxu0 0.0
        %2177 = vmatpush2.xpose.msra.mxu0 0.0
        %2178 = vmatprep.subr.mxu0 0.0
        %2179 = vmatpush2.xpose.msra.mxu0 0.0
        %2180 = vmatprep.subr.mxu0 0.0
        %2181 = vmatpush2.xpose.msra.mxu0 0.0
        %2182 = vmatprep.subr.mxu0 0.0
        %2183 = vmatpush2.xpose.msra.mxu0 0.0
        %2184 = vmatprep.subr.mxu0 0.0
        %2185 = vmatpush2.xpose.msra.mxu0 0.0
        %2186 = vmatprep.subr.mxu0 0.0
        %2187 = vmatpush2.xpose.msra.mxu0 0.0
        %2188 = vmatprep.mubr.f32.mxu0 0.0
        %2189 = vmatmul.mubr.f32.gmra.mxu0 %v2120
        %v2190 = vpop.f32.mrf.mxu0
        %v2191 = vadd.f32 0.0, %v2190
        %v2192 = vpop.f32.mrf.mxu0
        %2193 = vdwg.mxu0
        %2194 = vrot.lane.b32.xlu0 %v1098, 112
        %v2195 = vpop.permute.xlu0 %2194
        %2196 = vrot.lane.b32.xlu0 %v1184, 112
        %v2197 = vpop.permute.xlu0 %2196
        %v2198 = vsel %vm1281, %v2195, 0
        %v2200 = vsel %vm1281, %v2197, 0
        %2202 = vmatprep.subr.mxu0 0.0
        %2203 = vmatpush1.xpose.msra.mxu0 0.0
        %2204 = vmatprep.subr.mxu0 0.0
        %2205 = vmatpush1.xpose.msra.mxu0 0.0
        %2206 = vmatprep.subr.mxu0 0.0
        %2207 = vmatpush1.xpose.msra.mxu0 0.0
        %2208 = vmatprep.subr.mxu0 0.0
        %2209 = vmatpush1.xpose.msra.mxu0 0.0
        %2210 = vmatprep.subr.mxu0 0.0
        %2211 = vmatpush1.xpose.msra.mxu0 0.0
        %2212 = vmatprep.subr.mxu0 0.0
        %2213 = vmatpush1.xpose.msra.mxu0 0.0
        %2214 = vmatprep.subr.mxu0 0.0
        %2215 = vmatpush1.xpose.msra.mxu0 0.0
        %2216 = vmatprep.subr.mxu0 0.0
        %2217 = vmatpush1.xpose.msra.mxu0 0.0
        %2218 = vmatprep.subr.mxu0 0.0
        %2219 = vmatpush1.xpose.msra.mxu0 0.0
        %2220 = vmatprep.subr.mxu0 0.0
        %2221 = vmatpush1.xpose.msra.mxu0 0.0
        %2222 = vmatprep.subr.mxu0 0.0
        %2223 = vmatpush1.xpose.msra.mxu0 0.0
        %2224 = vmatprep.subr.mxu0 0.0
        %2225 = vmatpush1.xpose.msra.mxu0 0.0
        %2226 = vmatprep.subr.mxu0 0.0
        %2227 = vmatpush1.xpose.msra.mxu0 0.0
        %2228 = vmatprep.subr.mxu0 0.0
        %2229 = vmatpush1.xpose.msra.mxu0 0.0
        %2230 = vmatprep.subr.mxu0 0.0
        %2231 = vmatpush1.xpose.msra.mxu0 0.0
        %2232 = vmatprep.subr.mxu0 0.0
        %2233 = vmatpush1.xpose.msra.mxu0 %v2200
        %2234 = vmatprep.subr.mxu0 0.0
        %2235 = vmatpush2.xpose.msra.mxu0 0.0
        %2236 = vmatprep.subr.mxu0 0.0
        %2237 = vmatpush2.xpose.msra.mxu0 0.0
        %2238 = vmatprep.subr.mxu0 0.0
        %2239 = vmatpush2.xpose.msra.mxu0 0.0
        %2240 = vmatprep.subr.mxu0 0.0
        %2241 = vmatpush2.xpose.msra.mxu0 0.0
        %2242 = vmatprep.subr.mxu0 0.0
        %2243 = vmatpush2.xpose.msra.mxu0 0.0
        %2244 = vmatprep.subr.mxu0 0.0
        %2245 = vmatpush2.xpose.msra.mxu0 0.0
        %2246 = vmatprep.subr.mxu0 0.0
        %2247 = vmatpush2.xpose.msra.mxu0 0.0
        %2248 = vmatprep.subr.mxu0 0.0
        %2249 = vmatpush2.xpose.msra.mxu0 0.0
        %2250 = vmatprep.subr.mxu0 0.0
        %2251 = vmatpush2.xpose.msra.mxu0 0.0
        %2252 = vmatprep.subr.mxu0 0.0
        %2253 = vmatpush2.xpose.msra.mxu0 0.0
        %2254 = vmatprep.subr.mxu0 0.0
        %2255 = vmatpush2.xpose.msra.mxu0 0.0
        %2256 = vmatprep.subr.mxu0 0.0
        %2257 = vmatpush2.xpose.msra.mxu0 0.0
        %2258 = vmatprep.subr.mxu0 0.0
        %2259 = vmatpush2.xpose.msra.mxu0 0.0
        %2260 = vmatprep.subr.mxu0 0.0
        %2261 = vmatpush2.xpose.msra.mxu0 0.0
        %2262 = vmatprep.subr.mxu0 0.0
        %2263 = vmatpush2.xpose.msra.mxu0 0.0
        %2264 = vmatprep.subr.mxu0 0.0
        %2265 = vmatpush2.xpose.msra.mxu0 0.0
        %2266 = vmatprep.mubr.f32.mxu0 0.0
        %2267 = vmatmul.mubr.f32.gmra.mxu0 %v2198
        %v2268 = vpop.f32.mrf.mxu0
        %v2269 = vadd.f32 0.0, %v2268
        %v2270 = vpop.f32.mrf.mxu0
        %2271 = vdwg.mxu0
        %v2272 = vmul.f32 %v2191, 0.35355338
        %v2273 = vmul.f32 %v2269, 0.35355338
        %v2274 = vadd.f32 %v2272, %v1441
        %v2275 = vadd.f32 %v2273, %v1445
        %v2276 = vsel %vm1281, %v2274, -inf
        %2277 = vmax.xlane.f32.xlu0 %v2276
        %v2278 = vpop.xlane.xlu0 %2277
        %v2279 = vsel %vm1281, %v2275, -inf
        %2280 = vmax.xlane.f32.xlu0 %v2279
        %v2281 = vpop.xlane.xlu0 %2280
        %v2282 = vsub.f32 %v2274, %v2278
        %v2283 = vsub.f32 %v2275, %v2281
        %v2284 = vmul.f32 %v2282, 1.442695
        %v2285 = vpow.pop %v2284
        %v2286 = vmul.f32 %v2283, 1.442695
        %v2287 = vpow.pop %v2286
        %v2288 = vsel %vm1281, %v2285, 0.0
        %2289 = vadd.xlane.f32.xlu0 %v2288
        %v2290 = vpop.xlane.xlu0 %2289
        %v2291 = vsel %vm1281, %v2287, 0.0
        %2292 = vadd.xlane.f32.xlu0 %v2291
        %v2293 = vpop.xlane.xlu0 %2292
        %v2294 = vrcp.pop %v2290
        %v2295 = vrcp.pop %v2293
        %v2296 = vmul.f32 %v2285, %v2294
        %v2297 = vmul.f32 %v2287, %v2295
        %2298 = vrot.lane.b32.xlu0 %v1265, 112
        %v2299 = vpop.permute.xlu0 %2298
        %v2302 = vsel %vm1281, %v2296, 0
        %2304 = vmatprep.subr.mxu0 0.0
        %2305 = vmatpush1.msra.mxu0 0.0
        %2306 = vmatprep.subr.mxu0 0.0
        %2307 = vmatpush1.msra.mxu0 0.0
        %2308 = vmatprep.subr.mxu0 0.0
        %2309 = vmatpush1.msra.mxu0 0.0
        %2310 = vmatprep.subr.mxu0 0.0
        %2311 = vmatpush1.msra.mxu0 0.0
        %2312 = vmatprep.subr.mxu0 0.0
        %2313 = vmatpush1.msra.mxu0 0.0
        %2314 = vmatprep.subr.mxu0 0.0
        %2315 = vmatpush1.msra.mxu0 0.0
        %2316 = vmatprep.subr.mxu0 0.0
        %2317 = vmatpush1.msra.mxu0 0.0
        %2318 = vmatprep.subr.mxu0 0.0
        %2319 = vmatpush1.msra.mxu0 0.0
        %2320 = vmatprep.subr.mxu0 0.0
        %2321 = vmatpush1.msra.mxu0 0.0
        %2322 = vmatprep.subr.mxu0 0.0
        %2323 = vmatpush1.msra.mxu0 0.0
        %2324 = vmatprep.subr.mxu0 0.0
        %2325 = vmatpush1.msra.mxu0 0.0
        %2326 = vmatprep.subr.mxu0 0.0
        %2327 = vmatpush1.msra.mxu0 0.0
        %2328 = vmatprep.subr.mxu0 0.0
        %2329 = vmatpush1.msra.mxu0 0.0
        %2330 = vmatprep.subr.mxu0 0.0
        %2331 = vmatpush1.msra.mxu0 0.0
        %2332 = vmatprep.subr.mxu0 0.0
        %2333 = vmatpush1.msra.mxu0 0.0
        %2334 = vmatprep.subr.mxu0 0.0
        %2335 = vmatpush1.msra.mxu0 %v2299
        %2336 = vmatprep.subr.mxu0 0.0
        %2337 = vmatpush2.msra.mxu0 0.0
        %2338 = vmatprep.subr.mxu0 0.0
        %2339 = vmatpush2.msra.mxu0 0.0
        %2340 = vmatprep.subr.mxu0 0.0
        %2341 = vmatpush2.msra.mxu0 0.0
        %2342 = vmatprep.subr.mxu0 0.0
        %2343 = vmatpush2.msra.mxu0 0.0
        %2344 = vmatprep.subr.mxu0 0.0
        %2345 = vmatpush2.msra.mxu0 0.0
        %2346 = vmatprep.subr.mxu0 0.0
        %2347 = vmatpush2.msra.mxu0 0.0
        %2348 = vmatprep.subr.mxu0 0.0
        %2349 = vmatpush2.msra.mxu0 0.0
        %2350 = vmatprep.subr.mxu0 0.0
        %2351 = vmatpush2.msra.mxu0 0.0
        %2352 = vmatprep.subr.mxu0 0.0
        %2353 = vmatpush2.msra.mxu0 0.0
        %2354 = vmatprep.subr.mxu0 0.0
        %2355 = vmatpush2.msra.mxu0 0.0
        %2356 = vmatprep.subr.mxu0 0.0
        %2357 = vmatpush2.msra.mxu0 0.0
        %2358 = vmatprep.subr.mxu0 0.0
        %2359 = vmatpush2.msra.mxu0 0.0
        %2360 = vmatprep.subr.mxu0 0.0
        %2361 = vmatpush2.msra.mxu0 0.0
        %2362 = vmatprep.subr.mxu0 0.0
        %2363 = vmatpush2.msra.mxu0 0.0
        %2364 = vmatprep.subr.mxu0 0.0
        %2365 = vmatpush2.msra.mxu0 0.0
        %2366 = vmatprep.subr.mxu0 0.0
        %2367 = vmatpush2.msra.mxu0 0.0
        %2368 = vmatprep.mubr.f32.mxu0 0.0
        %2369 = vmatmul.mubr.f32.gmra.mxu0 %v2302
        %v2370 = vpop.f32.mrf.mxu0
        %v2371 = vadd.f32 0.0, %v2370
        %v2372 = vpop.f32.mrf.mxu0
        %2373 = vdwg.mxu0
        %2374 = vrot.lane.b32.xlu0 %v1270, 112
        %v2375 = vpop.permute.xlu0 %2374
        %v2378 = vsel %vm1281, %v2297, 0
        %2380 = vmatprep.subr.mxu0 0.0
        %2381 = vmatpush1.msra.mxu0 0.0
        %2382 = vmatprep.subr.mxu0 0.0
        %2383 = vmatpush1.msra.mxu0 0.0
        %2384 = vmatprep.subr.mxu0 0.0
        %2385 = vmatpush1.msra.mxu0 0.0
        %2386 = vmatprep.subr.mxu0 0.0
        %2387 = vmatpush1.msra.mxu0 0.0
        %2388 = vmatprep.subr.mxu0 0.0
        %2389 = vmatpush1.msra.mxu0 0.0
        %2390 = vmatprep.subr.mxu0 0.0
        %2391 = vmatpush1.msra.mxu0 0.0
        %2392 = vmatprep.subr.mxu0 0.0
        %2393 = vmatpush1.msra.mxu0 0.0
        %2394 = vmatprep.subr.mxu0 0.0
        %2395 = vmatpush1.msra.mxu0 0.0
        %2396 = vmatprep.subr.mxu0 0.0
        %2397 = vmatpush1.msra.mxu0 0.0
        %2398 = vmatprep.subr.mxu0 0.0
        %2399 = vmatpush1.msra.mxu0 0.0
        %2400 = vmatprep.subr.mxu0 0.0
        %2401 = vmatpush1.msra.mxu0 0.0
        %2402 = vmatprep.subr.mxu0 0.0
        %2403 = vmatpush1.msra.mxu0 0.0
        %2404 = vmatprep.subr.mxu0 0.0
        %2405 = vmatpush1.msra.mxu0 0.0
        %2406 = vmatprep.subr.mxu0 0.0
        %2407 = vmatpush1.msra.mxu0 0.0
        %2408 = vmatprep.subr.mxu0 0.0
        %2409 = vmatpush1.msra.mxu0 0.0
        %2410 = vmatprep.subr.mxu0 0.0
        %2411 = vmatpush1.msra.mxu0 %v2375
        %2412 = vmatprep.subr.mxu0 0.0
        %2413 = vmatpush2.msra.mxu0 0.0
        %2414 = vmatprep.subr.mxu0 0.0
        %2415 = vmatpush2.msra.mxu0 0.0
        %2416 = vmatprep.subr.mxu0 0.0
        %2417 = vmatpush2.msra.mxu0 0.0
        %2418 = vmatprep.subr.mxu0 0.0
        %2419 = vmatpush2.msra.mxu0 0.0
        %2420 = vmatprep.subr.mxu0 0.0
        %2421 = vmatpush2.msra.mxu0 0.0
        %2422 = vmatprep.subr.mxu0 0.0
        %2423 = vmatpush2.msra.mxu0 0.0
        %2424 = vmatprep.subr.mxu0 0.0
        %2425 = vmatpush2.msra.mxu0 0.0
        %2426 = vmatprep.subr.mxu0 0.0
        %2427 = vmatpush2.msra.mxu0 0.0
        %2428 = vmatprep.subr.mxu0 0.0
        %2429 = vmatpush2.msra.mxu0 0.0
        %2430 = vmatprep.subr.mxu0 0.0
        %2431 = vmatpush2.msra.mxu0 0.0
        %2432 = vmatprep.subr.mxu0 0.0
        %2433 = vmatpush2.msra.mxu0 0.0
        %2434 = vmatprep.subr.mxu0 0.0
        %2435 = vmatpush2.msra.mxu0 0.0
        %2436 = vmatprep.subr.mxu0 0.0
        %2437 = vmatpush2.msra.mxu0 0.0
        %2438 = vmatprep.subr.mxu0 0.0
        %2439 = vmatpush2.msra.mxu0 0.0
        %2440 = vmatprep.subr.mxu0 0.0
        %2441 = vmatpush2.msra.mxu0 0.0
        %2442 = vmatprep.subr.mxu0 0.0
        %2443 = vmatpush2.msra.mxu0 0.0
        %2444 = vmatprep.mubr.f32.mxu0 0.0
        %2445 = vmatmul.mubr.f32.gmra.mxu0 %v2378
        %v2446 = vpop.f32.mrf.mxu0
        %v2447 = vadd.f32 0.0, %v2446
        %v2448 = vpop.f32.mrf.mxu0
        %2449 = vdwg.mxu0
        %v2451 = vsel %vm1281, %v2371, 0
        %v2454 = vsel %vm1281, %v2447, 0
        %2456 = vmatprep.subr.mxu0 0.0
        %2457 = vmatpush1.msra.mxu0 0.0
        %2458 = vmatprep.subr.mxu0 0.0
        %2459 = vmatpush1.msra.mxu0 0.0
        %2460 = vmatprep.subr.mxu0 0.0
        %2461 = vmatpush1.msra.mxu0 0.0
        %2462 = vmatprep.subr.mxu0 0.0
        %2463 = vmatpush1.msra.mxu0 0.0
        %2464 = vmatprep.subr.mxu0 0.0
        %2465 = vmatpush1.msra.mxu0 0.0
        %2466 = vmatprep.subr.mxu0 0.0
        %2467 = vmatpush1.msra.mxu0 0.0
        %2468 = vmatprep.subr.mxu0 0.0
        %2469 = vmatpush1.msra.mxu0 0.0
        %2470 = vmatprep.subr.mxu0 0.0
        %2471 = vmatpush1.msra.mxu0 0.0
        %2472 = vmatprep.subr.mxu0 0.0
        %2473 = vmatpush1.msra.mxu0 0.0
        %2474 = vmatprep.subr.mxu0 0.0
        %2475 = vmatpush1.msra.mxu0 0.0
        %2476 = vmatprep.subr.mxu0 0.0
        %2477 = vmatpush1.msra.mxu0 0.0
        %2478 = vmatprep.subr.mxu0 0.0
        %2479 = vmatpush1.msra.mxu0 0.0
        %2480 = vmatprep.subr.mxu0 0.0
        %2481 = vmatpush1.msra.mxu0 0.0
        %2482 = vmatprep.subr.mxu0 0.0
        %2483 = vmatpush1.msra.mxu0 0.0
        %2484 = vmatprep.subr.mxu0 0.0
        %2485 = vmatpush1.msra.mxu0 0.0
        %2486 = vmatprep.subr.mxu0 0.0
        %2487 = vmatpush1.msra.mxu0 %v1279
        %2488 = vmatprep.subr.mxu0 0.0
        %2489 = vmatpush2.msra.mxu0 0.0
        %2490 = vmatprep.subr.mxu0 0.0
        %2491 = vmatpush2.msra.mxu0 0.0
        %2492 = vmatprep.subr.mxu0 0.0
        %2493 = vmatpush2.msra.mxu0 0.0
        %2494 = vmatprep.subr.mxu0 0.0
        %2495 = vmatpush2.msra.mxu0 0.0
        %2496 = vmatprep.subr.mxu0 0.0
        %2497 = vmatpush2.msra.mxu0 0.0
        %2498 = vmatprep.subr.mxu0 0.0
        %2499 = vmatpush2.msra.mxu0 0.0
        %2500 = vmatprep.subr.mxu0 0.0
        %2501 = vmatpush2.msra.mxu0 0.0
        %2502 = vmatprep.subr.mxu0 0.0
        %2503 = vmatpush2.msra.mxu0 0.0
        %2504 = vmatprep.subr.mxu0 0.0
        %2505 = vmatpush2.msra.mxu0 0.0
        %2506 = vmatprep.subr.mxu0 0.0
        %2507 = vmatpush2.msra.mxu0 0.0
        %2508 = vmatprep.subr.mxu0 0.0
        %2509 = vmatpush2.msra.mxu0 0.0
        %2510 = vmatprep.subr.mxu0 0.0
        %2511 = vmatpush2.msra.mxu0 0.0
        %2512 = vmatprep.subr.mxu0 0.0
        %2513 = vmatpush2.msra.mxu0 0.0
        %2514 = vmatprep.subr.mxu0 0.0
        %2515 = vmatpush2.msra.mxu0 0.0
        %2516 = vmatprep.subr.mxu0 0.0
        %2517 = vmatpush2.msra.mxu0 0.0
        %2518 = vmatprep.subr.mxu0 0.0
        %2519 = vmatpush2.msra.mxu0 0.0
        %2520 = vmatprep.mubr.f32.mxu0 0.0
        %2521 = vmatmul.mubr.f32.gmra.mxu0 %v2451
        %v2522 = vpop.f32.mrf.mxu0
        %v2523 = vadd.f32 0.0, %v2522
        %v2524 = vpop.f32.mrf.mxu0
        %2525 = vmatprep.mubr.f32.mxu0 0.0
        %2526 = vmatmul.mubr.f32.gmra.mxu0 %v2454
        %v2527 = vpop.f32.mrf.mxu0
        %v2528 = vadd.f32 0.0, %v2527
        %v2529 = vpop.f32.mrf.mxu0
        %2530 = vdwg.mxu0
        %v2531 = vadd.f32 %v2108, %v2523
        %v2532 = vadd.f32 %v2113, %v2528
        %2533 = vrot.lane.b32.xlu0 %v1093, 104
        %v2534 = vpop.permute.xlu0 %2533
        %2535 = vrot.lane.b32.xlu0 %v1179, 104
        %v2536 = vpop.permute.xlu0 %2535
        %v2537 = vsel %vm1281, %v2534, 0
        %v2539 = vsel %vm1281, %v2536, 0
        %2541 = vmatprep.subr.mxu0 0.0
        %2542 = vmatpush1.xpose.msra.mxu0 0.0
        %2543 = vmatprep.subr.mxu0 0.0
        %2544 = vmatpush1.xpose.msra.mxu0 0.0
        %2545 = vmatprep.subr.mxu0 0.0
        %2546 = vmatpush1.xpose.msra.mxu0 0.0
        %2547 = vmatprep.subr.mxu0 0.0
        %2548 = vmatpush1.xpose.msra.mxu0 0.0
        %2549 = vmatprep.subr.mxu0 0.0
        %2550 = vmatpush1.xpose.msra.mxu0 0.0
        %2551 = vmatprep.subr.mxu0 0.0
        %2552 = vmatpush1.xpose.msra.mxu0 0.0
        %2553 = vmatprep.subr.mxu0 0.0
        %2554 = vmatpush1.xpose.msra.mxu0 0.0
        %2555 = vmatprep.subr.mxu0 0.0
        %2556 = vmatpush1.xpose.msra.mxu0 0.0
        %2557 = vmatprep.subr.mxu0 0.0
        %2558 = vmatpush1.xpose.msra.mxu0 0.0
        %2559 = vmatprep.subr.mxu0 0.0
        %2560 = vmatpush1.xpose.msra.mxu0 0.0
        %2561 = vmatprep.subr.mxu0 0.0
        %2562 = vmatpush1.xpose.msra.mxu0 0.0
        %2563 = vmatprep.subr.mxu0 0.0
        %2564 = vmatpush1.xpose.msra.mxu0 0.0
        %2565 = vmatprep.subr.mxu0 0.0
        %2566 = vmatpush1.xpose.msra.mxu0 0.0
        %2567 = vmatprep.subr.mxu0 0.0
        %2568 = vmatpush1.xpose.msra.mxu0 0.0
        %2569 = vmatprep.subr.mxu0 0.0
        %2570 = vmatpush1.xpose.msra.mxu0 0.0
        %2571 = vmatprep.subr.mxu0 0.0
        %2572 = vmatpush1.xpose.msra.mxu0 %v2539
        %2573 = vmatprep.subr.mxu0 0.0
        %2574 = vmatpush2.xpose.msra.mxu0 0.0
        %2575 = vmatprep.subr.mxu0 0.0
        %2576 = vmatpush2.xpose.msra.mxu0 0.0
        %2577 = vmatprep.subr.mxu0 0.0
        %2578 = vmatpush2.xpose.msra.mxu0 0.0
        %2579 = vmatprep.subr.mxu0 0.0
        %2580 = vmatpush2.xpose.msra.mxu0 0.0
        %2581 = vmatprep.subr.mxu0 0.0
        %2582 = vmatpush2.xpose.msra.mxu0 0.0
        %2583 = vmatprep.subr.mxu0 0.0
        %2584 = vmatpush2.xpose.msra.mxu0 0.0
        %2585 = vmatprep.subr.mxu0 0.0
        %2586 = vmatpush2.xpose.msra.mxu0 0.0
        %2587 = vmatprep.subr.mxu0 0.0
        %2588 = vmatpush2.xpose.msra.mxu0 0.0
        %2589 = vmatprep.subr.mxu0 0.0
        %2590 = vmatpush2.xpose.msra.mxu0 0.0
        %2591 = vmatprep.subr.mxu0 0.0
        %2592 = vmatpush2.xpose.msra.mxu0 0.0
        %2593 = vmatprep.subr.mxu0 0.0
        %2594 = vmatpush2.xpose.msra.mxu0 0.0
        %2595 = vmatprep.subr.mxu0 0.0
        %2596 = vmatpush2.xpose.msra.mxu0 0.0
        %2597 = vmatprep.subr.mxu0 0.0
        %2598 = vmatpush2.xpose.msra.mxu0 0.0
        %2599 = vmatprep.subr.mxu0 0.0
        %2600 = vmatpush2.xpose.msra.mxu0 0.0
        %2601 = vmatprep.subr.mxu0 0.0
        %2602 = vmatpush2.xpose.msra.mxu0 0.0
        %2603 = vmatprep.subr.mxu0 0.0
        %2604 = vmatpush2.xpose.msra.mxu0 0.0
        %2605 = vmatprep.mubr.f32.mxu0 0.0
        %2606 = vmatmul.mubr.f32.gmra.mxu0 %v2537
        %v2607 = vpop.f32.mrf.mxu0
        %v2608 = vadd.f32 0.0, %v2607
        %v2609 = vpop.f32.mrf.mxu0
        %2610 = vdwg.mxu0
        %2611 = vrot.lane.b32.xlu0 %v1098, 104
        %v2612 = vpop.permute.xlu0 %2611
        %2613 = vrot.lane.b32.xlu0 %v1184, 104
        %v2614 = vpop.permute.xlu0 %2613
        %v2615 = vsel %vm1281, %v2612, 0
        %v2617 = vsel %vm1281, %v2614, 0
        %2619 = vmatprep.subr.mxu0 0.0
        %2620 = vmatpush1.xpose.msra.mxu0 0.0
        %2621 = vmatprep.subr.mxu0 0.0
        %2622 = vmatpush1.xpose.msra.mxu0 0.0
        %2623 = vmatprep.subr.mxu0 0.0
        %2624 = vmatpush1.xpose.msra.mxu0 0.0
        %2625 = vmatprep.subr.mxu0 0.0
        %2626 = vmatpush1.xpose.msra.mxu0 0.0
        %2627 = vmatprep.subr.mxu0 0.0
        %2628 = vmatpush1.xpose.msra.mxu0 0.0
        %2629 = vmatprep.subr.mxu0 0.0
        %2630 = vmatpush1.xpose.msra.mxu0 0.0
        %2631 = vmatprep.subr.mxu0 0.0
        %2632 = vmatpush1.xpose.msra.mxu0 0.0
        %2633 = vmatprep.subr.mxu0 0.0
        %2634 = vmatpush1.xpose.msra.mxu0 0.0
        %2635 = vmatprep.subr.mxu0 0.0
        %2636 = vmatpush1.xpose.msra.mxu0 0.0
        %2637 = vmatprep.subr.mxu0 0.0
        %2638 = vmatpush1.xpose.msra.mxu0 0.0
        %2639 = vmatprep.subr.mxu0 0.0
        %2640 = vmatpush1.xpose.msra.mxu0 0.0
        %2641 = vmatprep.subr.mxu0 0.0
        %2642 = vmatpush1.xpose.msra.mxu0 0.0
        %2643 = vmatprep.subr.mxu0 0.0
        %2644 = vmatpush1.xpose.msra.mxu0 0.0
        %2645 = vmatprep.subr.mxu0 0.0
        %2646 = vmatpush1.xpose.msra.mxu0 0.0
        %2647 = vmatprep.subr.mxu0 0.0
        %2648 = vmatpush1.xpose.msra.mxu0 0.0
        %2649 = vmatprep.subr.mxu0 0.0
        %2650 = vmatpush1.xpose.msra.mxu0 %v2617
        %2651 = vmatprep.subr.mxu0 0.0
        %2652 = vmatpush2.xpose.msra.mxu0 0.0
        %2653 = vmatprep.subr.mxu0 0.0
        %2654 = vmatpush2.xpose.msra.mxu0 0.0
        %2655 = vmatprep.subr.mxu0 0.0
        %2656 = vmatpush2.xpose.msra.mxu0 0.0
        %2657 = vmatprep.subr.mxu0 0.0
        %2658 = vmatpush2.xpose.msra.mxu0 0.0
        %2659 = vmatprep.subr.mxu0 0.0
        %2660 = vmatpush2.xpose.msra.mxu0 0.0
        %2661 = vmatprep.subr.mxu0 0.0
        %2662 = vmatpush2.xpose.msra.mxu0 0.0
        %2663 = vmatprep.subr.mxu0 0.0
        %2664 = vmatpush2.xpose.msra.mxu0 0.0
        %2665 = vmatprep.subr.mxu0 0.0
        %2666 = vmatpush2.xpose.msra.mxu0 0.0
        %2667 = vmatprep.subr.mxu0 0.0
        %2668 = vmatpush2.xpose.msra.mxu0 0.0
        %2669 = vmatprep.subr.mxu0 0.0
        %2670 = vmatpush2.xpose.msra.mxu0 0.0
        %2671 = vmatprep.subr.mxu0 0.0
        %2672 = vmatpush2.xpose.msra.mxu0 0.0
        %2673 = vmatprep.subr.mxu0 0.0
        %2674 = vmatpush2.xpose.msra.mxu0 0.0
        %2675 = vmatprep.subr.mxu0 0.0
        %2676 = vmatpush2.xpose.msra.mxu0 0.0
        %2677 = vmatprep.subr.mxu0 0.0
        %2678 = vmatpush2.xpose.msra.mxu0 0.0
        %2679 = vmatprep.subr.mxu0 0.0
        %2680 = vmatpush2.xpose.msra.mxu0 0.0
        %2681 = vmatprep.subr.mxu0 0.0
        %2682 = vmatpush2.xpose.msra.mxu0 0.0
        %2683 = vmatprep.mubr.f32.mxu0 0.0
        %2684 = vmatmul.mubr.f32.gmra.mxu0 %v2615
        %v2685 = vpop.f32.mrf.mxu0
        %v2686 = vadd.f32 0.0, %v2685
        %v2687 = vpop.f32.mrf.mxu0
        %2688 = vdwg.mxu0
        %v2689 = vmul.f32 %v2608, 0.35355338
        %v2690 = vmul.f32 %v2686, 0.35355338
        %v2691 = vadd.f32 %v2689, %v1441
        %v2692 = vadd.f32 %v2690, %v1445
        %v2693 = vsel %vm1281, %v2691, -inf
        %2694 = vmax.xlane.f32.xlu0 %v2693
        %v2695 = vpop.xlane.xlu0 %2694
        %v2696 = vsel %vm1281, %v2692, -inf
        %2697 = vmax.xlane.f32.xlu0 %v2696
        %v2698 = vpop.xlane.xlu0 %2697
        %v2699 = vsub.f32 %v2691, %v2695
        %v2700 = vsub.f32 %v2692, %v2698
        %v2701 = vmul.f32 %v2699, 1.442695
        %v2702 = vpow.pop %v2701
        %v2703 = vmul.f32 %v2700, 1.442695
        %v2704 = vpow.pop %v2703
        %v2705 = vsel %vm1281, %v2702, 0.0
        %2706 = vadd.xlane.f32.xlu0 %v2705
        %v2707 = vpop.xlane.xlu0 %2706
        %v2708 = vsel %vm1281, %v2704, 0.0
        %2709 = vadd.xlane.f32.xlu0 %v2708
        %v2710 = vpop.xlane.xlu0 %2709
        %v2711 = vrcp.pop %v2707
        %v2712 = vrcp.pop %v2710
        %v2713 = vmul.f32 %v2702, %v2711
        %v2714 = vmul.f32 %v2704, %v2712
        %2715 = vrot.lane.b32.xlu0 %v1265, 104
        %v2716 = vpop.permute.xlu0 %2715
        %v2719 = vsel %vm1281, %v2713, 0
        %2721 = vmatprep.subr.mxu0 0.0
        %2722 = vmatpush1.msra.mxu0 0.0
        %2723 = vmatprep.subr.mxu0 0.0
        %2724 = vmatpush1.msra.mxu0 0.0
        %2725 = vmatprep.subr.mxu0 0.0
        %2726 = vmatpush1.msra.mxu0 0.0
        %2727 = vmatprep.subr.mxu0 0.0
        %2728 = vmatpush1.msra.mxu0 0.0
        %2729 = vmatprep.subr.mxu0 0.0
        %2730 = vmatpush1.msra.mxu0 0.0
        %2731 = vmatprep.subr.mxu0 0.0
        %2732 = vmatpush1.msra.mxu0 0.0
        %2733 = vmatprep.subr.mxu0 0.0
        %2734 = vmatpush1.msra.mxu0 0.0
        %2735 = vmatprep.subr.mxu0 0.0
        %2736 = vmatpush1.msra.mxu0 0.0
        %2737 = vmatprep.subr.mxu0 0.0
        %2738 = vmatpush1.msra.mxu0 0.0
        %2739 = vmatprep.subr.mxu0 0.0
        %2740 = vmatpush1.msra.mxu0 0.0
        %2741 = vmatprep.subr.mxu0 0.0
        %2742 = vmatpush1.msra.mxu0 0.0
        %2743 = vmatprep.subr.mxu0 0.0
        %2744 = vmatpush1.msra.mxu0 0.0
        %2745 = vmatprep.subr.mxu0 0.0
        %2746 = vmatpush1.msra.mxu0 0.0
        %2747 = vmatprep.subr.mxu0 0.0
        %2748 = vmatpush1.msra.mxu0 0.0
        %2749 = vmatprep.subr.mxu0 0.0
        %2750 = vmatpush1.msra.mxu0 0.0
        %2751 = vmatprep.subr.mxu0 0.0
        %2752 = vmatpush1.msra.mxu0 %v2716
        %2753 = vmatprep.subr.mxu0 0.0
        %2754 = vmatpush2.msra.mxu0 0.0
        %2755 = vmatprep.subr.mxu0 0.0
        %2756 = vmatpush2.msra.mxu0 0.0
        %2757 = vmatprep.subr.mxu0 0.0
        %2758 = vmatpush2.msra.mxu0 0.0
        %2759 = vmatprep.subr.mxu0 0.0
        %2760 = vmatpush2.msra.mxu0 0.0
        %2761 = vmatprep.subr.mxu0 0.0
        %2762 = vmatpush2.msra.mxu0 0.0
        %2763 = vmatprep.subr.mxu0 0.0
        %2764 = vmatpush2.msra.mxu0 0.0
        %2765 = vmatprep.subr.mxu0 0.0
        %2766 = vmatpush2.msra.mxu0 0.0
        %2767 = vmatprep.subr.mxu0 0.0
        %2768 = vmatpush2.msra.mxu0 0.0
        %2769 = vmatprep.subr.mxu0 0.0
        %2770 = vmatpush2.msra.mxu0 0.0
        %2771 = vmatprep.subr.mxu0 0.0
        %2772 = vmatpush2.msra.mxu0 0.0
        %2773 = vmatprep.subr.mxu0 0.0
        %2774 = vmatpush2.msra.mxu0 0.0
        %2775 = vmatprep.subr.mxu0 0.0
        %2776 = vmatpush2.msra.mxu0 0.0
        %2777 = vmatprep.subr.mxu0 0.0
        %2778 = vmatpush2.msra.mxu0 0.0
        %2779 = vmatprep.subr.mxu0 0.0
        %2780 = vmatpush2.msra.mxu0 0.0
        %2781 = vmatprep.subr.mxu0 0.0
        %2782 = vmatpush2.msra.mxu0 0.0
        %2783 = vmatprep.subr.mxu0 0.0
        %2784 = vmatpush2.msra.mxu0 0.0
        %2785 = vmatprep.mubr.f32.mxu0 0.0
        %2786 = vmatmul.mubr.f32.gmra.mxu0 %v2719
        %v2787 = vpop.f32.mrf.mxu0
        %v2788 = vadd.f32 0.0, %v2787
        %v2789 = vpop.f32.mrf.mxu0
        %2790 = vdwg.mxu0
        %2791 = vrot.lane.b32.xlu0 %v1270, 104
        %v2792 = vpop.permute.xlu0 %2791
        %v2795 = vsel %vm1281, %v2714, 0
        %2797 = vmatprep.subr.mxu0 0.0
        %2798 = vmatpush1.msra.mxu0 0.0
        %2799 = vmatprep.subr.mxu0 0.0
        %2800 = vmatpush1.msra.mxu0 0.0
        %2801 = vmatprep.subr.mxu0 0.0
        %2802 = vmatpush1.msra.mxu0 0.0
        %2803 = vmatprep.subr.mxu0 0.0
        %2804 = vmatpush1.msra.mxu0 0.0
        %2805 = vmatprep.subr.mxu0 0.0
        %2806 = vmatpush1.msra.mxu0 0.0
        %2807 = vmatprep.subr.mxu0 0.0
        %2808 = vmatpush1.msra.mxu0 0.0
        %2809 = vmatprep.subr.mxu0 0.0
        %2810 = vmatpush1.msra.mxu0 0.0
        %2811 = vmatprep.subr.mxu0 0.0
        %2812 = vmatpush1.msra.mxu0 0.0
        %2813 = vmatprep.subr.mxu0 0.0
        %2814 = vmatpush1.msra.mxu0 0.0
        %2815 = vmatprep.subr.mxu0 0.0
        %2816 = vmatpush1.msra.mxu0 0.0
        %2817 = vmatprep.subr.mxu0 0.0
        %2818 = vmatpush1.msra.mxu0 0.0
        %2819 = vmatprep.subr.mxu0 0.0
        %2820 = vmatpush1.msra.mxu0 0.0
        %2821 = vmatprep.subr.mxu0 0.0
        %2822 = vmatpush1.msra.mxu0 0.0
        %2823 = vmatprep.subr.mxu0 0.0
        %2824 = vmatpush1.msra.mxu0 0.0
        %2825 = vmatprep.subr.mxu0 0.0
        %2826 = vmatpush1.msra.mxu0 0.0
        %2827 = vmatprep.subr.mxu0 0.0
        %2828 = vmatpush1.msra.mxu0 %v2792
        %2829 = vmatprep.subr.mxu0 0.0
        %2830 = vmatpush2.msra.mxu0 0.0
        %2831 = vmatprep.subr.mxu0 0.0
        %2832 = vmatpush2.msra.mxu0 0.0
        %2833 = vmatprep.subr.mxu0 0.0
        %2834 = vmatpush2.msra.mxu0 0.0
        %2835 = vmatprep.subr.mxu0 0.0
        %2836 = vmatpush2.msra.mxu0 0.0
        %2837 = vmatprep.subr.mxu0 0.0
        %2838 = vmatpush2.msra.mxu0 0.0
        %2839 = vmatprep.subr.mxu0 0.0
        %2840 = vmatpush2.msra.mxu0 0.0
        %2841 = vmatprep.subr.mxu0 0.0
        %2842 = vmatpush2.msra.mxu0 0.0
        %2843 = vmatprep.subr.mxu0 0.0
        %2844 = vmatpush2.msra.mxu0 0.0
        %2845 = vmatprep.subr.mxu0 0.0
        %2846 = vmatpush2.msra.mxu0 0.0
        %2847 = vmatprep.subr.mxu0 0.0
        %2848 = vmatpush2.msra.mxu0 0.0
        %2849 = vmatprep.subr.mxu0 0.0
        %2850 = vmatpush2.msra.mxu0 0.0
        %2851 = vmatprep.subr.mxu0 0.0
        %2852 = vmatpush2.msra.mxu0 0.0
        %2853 = vmatprep.subr.mxu0 0.0
        %2854 = vmatpush2.msra.mxu0 0.0
        %2855 = vmatprep.subr.mxu0 0.0
        %2856 = vmatpush2.msra.mxu0 0.0
        %2857 = vmatprep.subr.mxu0 0.0
        %2858 = vmatpush2.msra.mxu0 0.0
        %2859 = vmatprep.subr.mxu0 0.0
        %2860 = vmatpush2.msra.mxu0 0.0
        %2861 = vmatprep.mubr.f32.mxu0 0.0
        %2862 = vmatmul.mubr.f32.gmra.mxu0 %v2795
        %v2863 = vpop.f32.mrf.mxu0
        %v2864 = vadd.f32 0.0, %v2863
        %v2865 = vpop.f32.mrf.mxu0
        %2866 = vdwg.mxu0
        %v2868 = vsel %vm1281, %v2788, 0
        %v2871 = vsel %vm1281, %v2864, 0
        %2873 = vmatprep.subr.mxu0 0.0
        %2874 = vmatpush1.msra.mxu0 0.0
        %2875 = vmatprep.subr.mxu0 0.0
        %2876 = vmatpush1.msra.mxu0 0.0
        %2877 = vmatprep.subr.mxu0 0.0
        %2878 = vmatpush1.msra.mxu0 0.0
        %2879 = vmatprep.subr.mxu0 0.0
        %2880 = vmatpush1.msra.mxu0 0.0
        %2881 = vmatprep.subr.mxu0 0.0
        %2882 = vmatpush1.msra.mxu0 0.0
        %2883 = vmatprep.subr.mxu0 0.0
        %2884 = vmatpush1.msra.mxu0 0.0
        %2885 = vmatprep.subr.mxu0 0.0
        %2886 = vmatpush1.msra.mxu0 0.0
        %2887 = vmatprep.subr.mxu0 0.0
        %2888 = vmatpush1.msra.mxu0 0.0
        %2889 = vmatprep.subr.mxu0 0.0
        %2890 = vmatpush1.msra.mxu0 0.0
        %2891 = vmatprep.subr.mxu0 0.0
        %2892 = vmatpush1.msra.mxu0 0.0
        %2893 = vmatprep.subr.mxu0 0.0
        %2894 = vmatpush1.msra.mxu0 0.0
        %2895 = vmatprep.subr.mxu0 0.0
        %2896 = vmatpush1.msra.mxu0 0.0
        %2897 = vmatprep.subr.mxu0 0.0
        %2898 = vmatpush1.msra.mxu0 0.0
        %2899 = vmatprep.subr.mxu0 0.0
        %2900 = vmatpush1.msra.mxu0 0.0
        %2901 = vmatprep.subr.mxu0 0.0
        %2902 = vmatpush1.msra.mxu0 0.0
        %2903 = vmatprep.subr.mxu0 0.0
        %2904 = vmatpush1.msra.mxu0 %v1280
        %2905 = vmatprep.subr.mxu0 0.0
        %2906 = vmatpush2.msra.mxu0 0.0
        %2907 = vmatprep.subr.mxu0 0.0
        %2908 = vmatpush2.msra.mxu0 0.0
        %2909 = vmatprep.subr.mxu0 0.0
        %2910 = vmatpush2.msra.mxu0 0.0
        %2911 = vmatprep.subr.mxu0 0.0
        %2912 = vmatpush2.msra.mxu0 0.0
        %2913 = vmatprep.subr.mxu0 0.0
        %2914 = vmatpush2.msra.mxu0 0.0
        %2915 = vmatprep.subr.mxu0 0.0
        %2916 = vmatpush2.msra.mxu0 0.0
        %2917 = vmatprep.subr.mxu0 0.0
        %2918 = vmatpush2.msra.mxu0 0.0
        %2919 = vmatprep.subr.mxu0 0.0
        %2920 = vmatpush2.msra.mxu0 0.0
        %2921 = vmatprep.subr.mxu0 0.0
        %2922 = vmatpush2.msra.mxu0 0.0
        %2923 = vmatprep.subr.mxu0 0.0
        %2924 = vmatpush2.msra.mxu0 0.0
        %2925 = vmatprep.subr.mxu0 0.0
        %2926 = vmatpush2.msra.mxu0 0.0
        %2927 = vmatprep.subr.mxu0 0.0
        %2928 = vmatpush2.msra.mxu0 0.0
        %2929 = vmatprep.subr.mxu0 0.0
        %2930 = vmatpush2.msra.mxu0 0.0
        %2931 = vmatprep.subr.mxu0 0.0
        %2932 = vmatpush2.msra.mxu0 0.0
        %2933 = vmatprep.subr.mxu0 0.0
        %2934 = vmatpush2.msra.mxu0 0.0
        %2935 = vmatprep.subr.mxu0 0.0
        %2936 = vmatpush2.msra.mxu0 0.0
        %2937 = vmatprep.mubr.f32.mxu0 0.0
        %2938 = vmatmul.mubr.f32.gmra.mxu0 %v2868
        %v2939 = vpop.f32.mrf.mxu0
        %v2940 = vadd.f32 0.0, %v2939
        %v2941 = vpop.f32.mrf.mxu0
        %2942 = vmatprep.mubr.f32.mxu0 0.0
        %2943 = vmatmul.mubr.f32.gmra.mxu0 %v2871
        %v2944 = vpop.f32.mrf.mxu0
        %v2945 = vadd.f32 0.0, %v2944
        %v2946 = vpop.f32.mrf.mxu0
        %2947 = vdwg.mxu0
        %v2948 = vadd.f32 %v2531, %v2940
        %v2949 = vadd.f32 %v2532, %v2945
        %v2950 = vld [vmem:[%s809] sm:$0x1]
        %v2952 = vlaneseq
        %v2953 = vshrl.u32 %v2952, 7
        %v2954 = vsub.s32 0, %v2953
        %v2955 = vrot.slane %v2950, %v2954
        %v2957 = vadd.f32 %v2948, %v2955
        %v2958 = vadd.f32 %v2949, %v2955
        %v2959 = vadd.f32 %v1006, %v2957
        %v2960 = vadd.f32 %v1007, %v2958
        %v2961 = vld [vmem:[%s996] sm:$0xff]
        %v2962 = vld [vmem:[%s835] sm:$0xff]
        %v2963 = vsel %vm1019, %v2959, 0.0
        %2964 = vadd.xlane.f32.xlu0 %v2963
        %v2965 = vpop.xlane.xlu0 %2964
        %v2966 = vsel %vm1019, %v2960, 0.0
        %2967 = vadd.xlane.f32.xlu0 %v2966
        %v2968 = vpop.xlane.xlu0 %2967
        %v2969 = vrot.slane %v2965, 4
        %v2970 = vadd.f32 %v2965, %v2969
        %v2971 = vrot.slane %v2970, 2
        %v2972 = vadd.f32 %v2970, %v2971
        %v2973 = vrot.slane %v2972, 1
        %v2974 = vadd.f32 %v2972, %v2973
        %v2975 = vrot.slane %v2968, 4
        %v2976 = vadd.f32 %v2968, %v2975
        %v2977 = vrot.slane %v2976, 2
        %v2978 = vadd.f32 %v2976, %v2977
        %v2979 = vrot.slane %v2978, 1
        %v2980 = vadd.f32 %v2978, %v2979
        %v2981 = vmul.f32 %v2974, 0.00390625
        %v2982 = vmul.f32 %v2980, 0.00390625
        %v2983 = vsub.f32 %v2959, %v2981
        %v2984 = vsub.f32 %v2960, %v2982
        %v2985 = vmul.f32 %v2983, %v2983
        %v2986 = vmul.f32 %v2984, %v2984
        %v2987 = vsel %vm1019, %v2985, 0.0
        %2988 = vadd.xlane.f32.xlu0 %v2987
        %v2989 = vpop.xlane.xlu0 %2988
        %v2990 = vsel %vm1019, %v2986, 0.0
        %2991 = vadd.xlane.f32.xlu0 %v2990
        %v2992 = vpop.xlane.xlu0 %2991
        %v2993 = vrot.slane %v2989, 4
        %v2994 = vadd.f32 %v2989, %v2993
        %v2995 = vrot.slane %v2994, 2
        %v2996 = vadd.f32 %v2994, %v2995
        %v2997 = vrot.slane %v2996, 1
        %v2998 = vadd.f32 %v2996, %v2997
        %v2999 = vrot.slane %v2992, 4
        %v3000 = vadd.f32 %v2992, %v2999
        %v3001 = vrot.slane %v3000, 2
        %v3002 = vadd.f32 %v3000, %v3001
        %v3003 = vrot.slane %v3002, 1
        %v3004 = vadd.f32 %v3002, %v3003
        %v3005 = vmul.f32 %v2998, 0.00390625
        %v3006 = vmul.f32 %v3004, 0.00390625
        %v3007 = vadd.f32 %v3005, 1e-05
        %v3008 = vadd.f32 %v3006, 1e-05
        %v3009 = vrsqrt.pop %v3007
        %v3010 = vrsqrt.pop %v3008
        %v3011 = vmul.f32 %v2983, %v3009
        %v3012 = vmul.f32 %v2984, %v3010
        %v3013 = vmul.f32 %v3011, %v2961
        %v3014 = vmul.f32 %v3012, %v2961
        %v3015 = vadd.f32 %v3013, %v2962
        %v3016 = vadd.f32 %v3014, %v2962
        %v3017 = vld [vmem:[%s818] sm:$0xff]
        %v3018 = vld [vmem:[%s818 + $0x8] sm:$0xff]
        %v3019 = vld [vmem:[%s818 + $0x10] sm:$0xff]
        %v3020 = vld [vmem:[%s818 + $0x18] sm:$0xff]
        %v3021 = vld [vmem:[%s826] sm:$0x1]
        %v3023 = vlaneseq
        %v3024 = vshrl.u32 %v3023, 7
        %v3025 = vsub.s32 0, %v3024
        %v3026 = vrot.slane %v3021, %v3025
        %v3029 = vsel %vm1019, %v3015, 0
        %v3032 = vsel %vm1019, %v3016, 0
        %3034 = vmatprep.subr.mxu0 0.0
        %3035 = vmatpush1.msra.mxu0 0.0
        %3036 = vmatprep.subr.mxu0 0.0
        %3037 = vmatpush1.msra.mxu0 0.0
        %3038 = vmatprep.subr.mxu0 0.0
        %3039 = vmatpush1.msra.mxu0 0.0
        %3040 = vmatprep.subr.mxu0 0.0
        %3041 = vmatpush1.msra.mxu0 0.0
        %3042 = vmatprep.subr.mxu0 0.0
        %3043 = vmatpush1.msra.mxu0 0.0
        %3044 = vmatprep.subr.mxu0 0.0
        %3045 = vmatpush1.msra.mxu0 0.0
        %3046 = vmatprep.subr.mxu0 0.0
        %3047 = vmatpush1.msra.mxu0 0.0
        %3048 = vmatprep.subr.mxu0 0.0
        %3049 = vmatpush1.msra.mxu0 0.0
        %3050 = vmatprep.subr.mxu0 0.0
        %3051 = vmatpush1.msra.mxu0 0.0
        %3052 = vmatprep.subr.mxu0 0.0
        %3053 = vmatpush1.msra.mxu0 0.0
        %3054 = vmatprep.subr.mxu0 0.0
        %3055 = vmatpush1.msra.mxu0 0.0
        %3056 = vmatprep.subr.mxu0 0.0
        %3057 = vmatpush1.msra.mxu0 0.0
        %3058 = vmatprep.subr.mxu0 0.0
        %3059 = vmatpush1.msra.mxu0 %v3020
        %3060 = vmatprep.subr.mxu0 0.0
        %3061 = vmatpush1.msra.mxu0 %v3019
        %3062 = vmatprep.subr.mxu0 0.0
        %3063 = vmatpush1.msra.mxu0 %v3018
        %3064 = vmatprep.subr.mxu0 0.0
        %3065 = vmatpush1.msra.mxu0 %v3017
        %3066 = vmatprep.subr.mxu0 0.0
        %3067 = vmatpush2.msra.mxu0 0.0
        %3068 = vmatprep.subr.mxu0 0.0
        %3069 = vmatpush2.msra.mxu0 0.0
        %3070 = vmatprep.subr.mxu0 0.0
        %3071 = vmatpush2.msra.mxu0 0.0
        %3072 = vmatprep.subr.mxu0 0.0
        %3073 = vmatpush2.msra.mxu0 0.0
        %3074 = vmatprep.subr.mxu0 0.0
        %3075 = vmatpush2.msra.mxu0 0.0
        %3076 = vmatprep.subr.mxu0 0.0
        %3077 = vmatpush2.msra.mxu0 0.0
        %3078 = vmatprep.subr.mxu0 0.0
        %3079 = vmatpush2.msra.mxu0 0.0
        %3080 = vmatprep.subr.mxu0 0.0
        %3081 = vmatpush2.msra.mxu0 0.0
        %3082 = vmatprep.subr.mxu0 0.0
        %3083 = vmatpush2.msra.mxu0 0.0
        %3084 = vmatprep.subr.mxu0 0.0
        %3085 = vmatpush2.msra.mxu0 0.0
        %3086 = vmatprep.subr.mxu0 0.0
        %3087 = vmatpush2.msra.mxu0 0.0
        %3088 = vmatprep.subr.mxu0 0.0
        %3089 = vmatpush2.msra.mxu0 0.0
        %3090 = vmatprep.subr.mxu0 0.0
        %3091 = vmatpush2.msra.mxu0 0.0
        %3092 = vmatprep.subr.mxu0 0.0
        %3093 = vmatpush2.msra.mxu0 0.0
        %3094 = vmatprep.subr.mxu0 0.0
        %3095 = vmatpush2.msra.mxu0 0.0
        %3096 = vmatprep.subr.mxu0 0.0
        %3097 = vmatpush2.msra.mxu0 0.0
        %3098 = vmatprep.mubr.f32.mxu0 0.0
        %3099 = vmatmul.mubr.f32.gmra.mxu0 %v3029
        %v3100 = vpop.f32.mrf.mxu0
        %v3101 = vadd.f32 %v3026, %v3100
        %v3102 = vpop.f32.mrf.mxu0
        %3103 = vmatprep.mubr.f32.mxu0 0.0
        %3104 = vmatmul.mubr.f32.gmra.mxu0 %v3032
        %v3105 = vpop.f32.mrf.mxu0
        %v3106 = vadd.f32 %v3026, %v3105
        %v3107 = vpop.f32.mrf.mxu0
        %3108 = vdwg.mxu0
        %v3109 = vmax.f32 %v3101, 0.0
        %v3110 = vmax.f32 %v3106, 0.0
        %v3111 = vld [vmem:[%s989] sm:$0xff]
        %v3112 = vld [vmem:[%s989 + $0x8] sm:$0xff]
        %v3113 = vld [vmem:[%s989 + $0x10] sm:$0xff]
        %v3114 = vld [vmem:[%s989 + $0x18] sm:$0xff]
        %v3115 = vld [vmem:[%s989 + $0x20] sm:$0xff]
        %v3116 = vld [vmem:[%s989 + $0x28] sm:$0xff]
        %v3117 = vld [vmem:[%s989 + $0x30] sm:$0xff]
        %v3118 = vld [vmem:[%s989 + $0x38] sm:$0xff]
        %v3119 = vld [vmem:[%s992] sm:$0x1]
        %v3121 = vlaneseq
        %v3122 = vshrl.u32 %v3121, 7
        %v3123 = vsub.s32 0, %v3122
        %v3124 = vrot.slane %v3119, %v3123
        %vm3126 = vcmask 523264
        %v3128 = vsel %vm3126, %v3109, 0
        %v3131 = vsel %vm3126, %v3110, 0
        %3133 = vmatprep.subr.mxu0 0.0
        %3134 = vmatpush1.msra.mxu0 0.0
        %3135 = vmatprep.subr.mxu0 0.0
        %3136 = vmatpush1.msra.mxu0 0.0
        %3137 = vmatprep.subr.mxu0 0.0
        %3138 = vmatpush1.msra.mxu0 0.0
        %3139 = vmatprep.subr.mxu0 0.0
        %3140 = vmatpush1.msra.mxu0 0.0
        %3141 = vmatprep.subr.mxu0 0.0
        %3142 = vmatpush1.msra.mxu0 0.0
        %3143 = vmatprep.subr.mxu0 0.0
        %3144 = vmatpush1.msra.mxu0 0.0
        %3145 = vmatprep.subr.mxu0 0.0
        %3146 = vmatpush1.msra.mxu0 0.0
        %3147 = vmatprep.subr.mxu0 0.0
        %3148 = vmatpush1.msra.mxu0 0.0
        %3149 = vmatprep.subr.mxu0 0.0
        %3150 = vmatpush1.msra.mxu0 %v3118
        %3151 = vmatprep.subr.mxu0 0.0
        %3152 = vmatpush1.msra.mxu0 %v3117
        %3153 = vmatprep.subr.mxu0 0.0
        %3154 = vmatpush1.msra.mxu0 %v3116
        %3155 = vmatprep.subr.mxu0 0.0
        %3156 = vmatpush1.msra.mxu0 %v3115
        %3157 = vmatprep.subr.mxu0 0.0
        %3158 = vmatpush1.msra.mxu0 %v3114
        %3159 = vmatprep.subr.mxu0 0.0
        %3160 = vmatpush1.msra.mxu0 %v3113
        %3161 = vmatprep.subr.mxu0 0.0
        %3162 = vmatpush1.msra.mxu0 %v3112
        %3163 = vmatprep.subr.mxu0 0.0
        %3164 = vmatpush1.msra.mxu0 %v3111
        %3165 = vmatprep.subr.mxu0 0.0
        %3166 = vmatpush2.msra.mxu0 0.0
        %3167 = vmatprep.subr.mxu0 0.0
        %3168 = vmatpush2.msra.mxu0 0.0
        %3169 = vmatprep.subr.mxu0 0.0
        %3170 = vmatpush2.msra.mxu0 0.0
        %3171 = vmatprep.subr.mxu0 0.0
        %3172 = vmatpush2.msra.mxu0 0.0
        %3173 = vmatprep.subr.mxu0 0.0
        %3174 = vmatpush2.msra.mxu0 0.0
        %3175 = vmatprep.subr.mxu0 0.0
        %3176 = vmatpush2.msra.mxu0 0.0
        %3177 = vmatprep.subr.mxu0 0.0
        %3178 = vmatpush2.msra.mxu0 0.0
        %3179 = vmatprep.subr.mxu0 0.0
        %3180 = vmatpush2.msra.mxu0 0.0
        %3181 = vmatprep.subr.mxu0 0.0
        %3182 = vmatpush2.msra.mxu0 0.0
        %3183 = vmatprep.subr.mxu0 0.0
        %3184 = vmatpush2.msra.mxu0 0.0
        %3185 = vmatprep.subr.mxu0 0.0
        %3186 = vmatpush2.msra.mxu0 0.0
        %3187 = vmatprep.subr.mxu0 0.0
        %3188 = vmatpush2.msra.mxu0 0.0
        %3189 = vmatprep.subr.mxu0 0.0
        %3190 = vmatpush2.msra.mxu0 0.0
        %3191 = vmatprep.subr.mxu0 0.0
        %3192 = vmatpush2.msra.mxu0 0.0
        %3193 = vmatprep.subr.mxu0 0.0
        %3194 = vmatpush2.msra.mxu0 0.0
        %3195 = vmatprep.subr.mxu0 0.0
        %3196 = vmatpush2.msra.mxu0 0.0
        %3197 = vmatprep.mubr.f32.mxu0 0.0
        %3198 = vmatmul.mubr.f32.gmra.mxu0 %v3128
        %v3199 = vpop.f32.mrf.mxu0
        %v3200 = vadd.f32 %v3124, %v3199
        %v3201 = vpop.f32.mrf.mxu0
        %3202 = vmatprep.mubr.f32.mxu0 0.0
        %3203 = vmatmul.mubr.f32.gmra.mxu0 %v3131
        %v3204 = vpop.f32.mrf.mxu0
        %v3205 = vadd.f32 %v3124, %v3204
        %v3206 = vpop.f32.mrf.mxu0
        %3207 = vdwg.mxu0
        %v3208 = vadd.f32 %v3015, %v3200
        %v3209 = vadd.f32 %v3016, %v3205
        %v3210 = vld [vmem:[%s844] sm:$0xff]
        %v3211 = vld [vmem:[%s853] sm:$0xff]
        %v3212 = vsel %vm1019, %v3208, 0.0
        %3213 = vadd.xlane.f32.xlu0 %v3212
        %v3214 = vpop.xlane.xlu0 %3213
        %v3215 = vsel %vm1019, %v3209, 0.0
        %3216 = vadd.xlane.f32.xlu0 %v3215
        %v3217 = vpop.xlane.xlu0 %3216
        %v3218 = vrot.slane %v3214, 4
        %v3219 = vadd.f32 %v3214, %v3218
        %v3220 = vrot.slane %v3219, 2
        %v3221 = vadd.f32 %v3219, %v3220
        %v3222 = vrot.slane %v3221, 1
        %v3223 = vadd.f32 %v3221, %v3222
        %v3224 = vrot.slane %v3217, 4
        %v3225 = vadd.f32 %v3217, %v3224
        %v3226 = vrot.slane %v3225, 2
        %v3227 = vadd.f32 %v3225, %v3226
        %v3228 = vrot.slane %v3227, 1
        %v3229 = vadd.f32 %v3227, %v3228
        %v3230 = vmul.f32 %v3223, 0.00390625
        %v3231 = vmul.f32 %v3229, 0.00390625
        %v3232 = vsub.f32 %v3208, %v3230
        %v3233 = vsub.f32 %v3209, %v3231
        %v3234 = vmul.f32 %v3232, %v3232
        %v3235 = vmul.f32 %v3233, %v3233
        %v3236 = vsel %vm1019, %v3234, 0.0
        %3237 = vadd.xlane.f32.xlu0 %v3236
        %v3238 = vpop.xlane.xlu0 %3237
        %v3239 = vsel %vm1019, %v3235, 0.0
        %3240 = vadd.xlane.f32.xlu0 %v3239
        %v3241 = vpop.xlane.xlu0 %3240
        %v3242 = vrot.slane %v3238, 4
        %v3243 = vadd.f32 %v3238, %v3242
        %v3244 = vrot.slane %v3243, 2
        %v3245 = vadd.f32 %v3243, %v3244
        %v3246 = vrot.slane %v3245, 1
        %v3247 = vadd.f32 %v3245, %v3246
        %v3248 = vrot.slane %v3241, 4
        %v3249 = vadd.f32 %v3241, %v3248
        %v3250 = vrot.slane %v3249, 2
        %v3251 = vadd.f32 %v3249, %v3250
        %v3252 = vrot.slane %v3251, 1
        %v3253 = vadd.f32 %v3251, %v3252
        %v3254 = vmul.f32 %v3247, 0.00390625
        %v3255 = vmul.f32 %v3253, 0.00390625
        %v3256 = vadd.f32 %v3254, 1e-05
        %v3257 = vadd.f32 %v3255, 1e-05
        %v3258 = vrsqrt.pop %v3256
        %v3259 = vrsqrt.pop %v3257
        %v3260 = vmul.f32 %v3232, %v3258
        %v3261 = vmul.f32 %v3233, %v3259
        %v3262 = vmul.f32 %v3260, %v3210
        %v3263 = vmul.f32 %v3261, %v3210
        %v3264 = vadd.f32 %v3262, %v3211
        %v3265 = vadd.f32 %v3263, %v3211
        %3266 = vst.msk [vmem:[#allocation2] sm:$0xff] %vm1019, %v3264
        %3267 = vst.msk [vmem:[#allocation2 + $0x8] sm:$0xff] %vm1019, %v3265
        %p3268 = scmp.eq.s32.totalorder %s32, 1
        // Predicated region
        $region141: #{tpu_custom_call.1} parent=91 // pred_check
          %p3269 = pneg %p3268
        $region142: #{tpu_custom_call.1} parent=91 // pred_check_branch
          %3271 = sbr.rel (%p3269) target = $region144
        $region143: #{tpu_custom_call.1} parent=91 // pred_region
          %3272 = vst.msk [vmem:[#allocation17] sm:$0xff] %vm1019, %v3264
          %3273 = vst.msk [vmem:[#allocation17 + $0x8] sm:$0xff] %vm1019, %v3265
        $region144: #{tpu_custom_call.1} parent=91 // pred_fallthru
          _
        // Predicated region
        $region145: #{tpu_custom_call.1} parent=91 // pred_check
          %p3274 = pneg %p503
        $region146: #{tpu_custom_call.1} parent=91 // pred_check_branch
          %3276 = sbr.rel (%p3274) target = $region148
        $region147: #{tpu_custom_call.1} parent=91 // pred_region
          %s3278 = ssub.s32 256, 256
          %3279 = vsyncadd [#allocation5], %s3278
          %s3280 = sshll.u32 [#allocation17], 4
          %s3281 = int_to_ptr.vmem [resolvable:$true] %s3280
          %3286 = dma.vmem_to_hbm [thread:$0]  %s3281, 256, %s18, [#allocation5], 128, 128, 8
        $region148: #{tpu_custom_call.1} parent=91 // pred_fallthru
          _
        // Predicated region
        $region149: #{tpu_custom_call.1} parent=91 // pred_check
          %p3287 = pneg %p503
        $region150: #{tpu_custom_call.1} parent=91 // pred_check_branch
          %3289 = sbr.rel (%p3287) target = $region152
        $region151: #{tpu_custom_call.1} parent=91 // pred_region
          %3290 = dma.done [#allocation5], 256
        $region152: #{tpu_custom_call.1} parent=91 // pred_fallthru
          _
      $region92: #{tpu_custom_call.1} parent=5 // pred_fallthru
        _
      %p3291 = scmp.le.s32.totalorder 2, %s27
      // Predicated region
      $region153: #{tpu_custom_call.1} parent=5 // pred_check
        %p3292 = pneg %p3291
      $region154: #{tpu_custom_call.1} parent=5 // pred_check_branch
        %3294 = sbr.rel (%p3292) target = $region156
      $region155: #{tpu_custom_call.1} parent=5 // pred_region
        %s3295 = ssub.s32 %s27, 2
      $region156: #{tpu_custom_call.1} parent=5 // pred_fallthru
        _
    $region6: #{tpu_custom_call.1} parent=1 // loop_footer
      %s31 = sadd.s32 1, %s27
    $region7: #{tpu_custom_call.1} parent=1 // loop_footer_branch
      %26 = sbr.rel target = $region3
    $region8: #{tpu_custom_call.1} parent=1 // loop_exit
      _
    %3296 = vsyncpa [#allocation4], 1
    %s3297 = scalar_lea.sflag [#allocation4], 1
    %3298 = vsyncpa %s3297, 1
    %3299 = vsyncpa [#allocation7], 1
    %3300 = vsyncpa [#allocation5], 1
    %s3301 = scalar_lea.sflag [#allocation5], 1
    %3302 = vsyncpa %s3301, 1

</llo_original>
